<compile_context>
chip_gen: v6e
topology: v6e:2x2x1
jax: 0.10.0
libtpu: 0.0.40
codegen_flags: <defaults>
</compile_context>

<pallas_src>
import functools
import math

import jax
import jax.numpy as jnp
from jax.experimental import pallas as pl
from jax.experimental.pallas import tpu as pltpu


def _round_up(x, m):
    return (x + m - 1) // m * m


# ----------------------------------------------------------------------------
# Fused kernel: one grid step == one sample (all T frames in VMEM).
# ----------------------------------------------------------------------------
def _gag_fused_kernel(x_ref, wt_ref, tsh_ref, wp_ref, psh_ref, a_ref, ash_ref,
                      o_ref, *, T, V, Cin, segE, segC, approx_recip):
    rows = T * V
    xc = x_ref[0]                                         # (T*V, Cin) bf16, rows=(t,v)

    # ---- stage 1: temporal conv (3,1) pad (1,0) + folded BN + identity residual
    zero_v = jnp.zeros((V, Cin), dtype=xc.dtype)
    x_prev = jnp.concatenate([zero_v, xc[:rows - V]], axis=0)   # frame t-1 (zero halo)
    x_next = jnp.concatenate([xc[V:], zero_v], axis=0)          # frame t+1 (zero halo)
    if Cin < 128:
        # Cin underfills the MXU K dim: fuse the 3 taps into one push.
        slab3 = jnp.concatenate([x_prev, xc, x_next], axis=1)   # (rows, 3*Cin) bf16
        acc = jnp.dot(slab3, wt_ref[...], preferred_element_type=jnp.float32)
    else:
        acc = jnp.dot(x_prev, wt_ref[pl.ds(0, Cin), :],
                      preferred_element_type=jnp.float32)
        acc = acc + jnp.dot(xc, wt_ref[pl.ds(Cin, Cin), :],
                            preferred_element_type=jnp.float32)
        acc = acc + jnp.dot(x_next, wt_ref[pl.ds(2 * Cin, Cin), :],
                            preferred_element_type=jnp.float32)
    x1 = acc + tsh_ref[...] + xc.astype(jnp.float32)            # (rows, Cin) f32

    # ---- stage 2: fused 5-way 1x1 projection (lane-aligned segments)
    proj = jnp.dot(x1.astype(jnp.bfloat16), wp_ref[...],
                   preferred_element_type=jnp.float32) + psh_ref[...]
    q = proj[:, 0:segE].reshape(T, V, segE)                     # 1/sqrt(E) folded
    k = proj[:, segE:2 * segE].reshape(T, V, segE)
    g = proj[:, 2 * segE:2 * segE + segC].reshape(T, V, segC)   # attn-BN scale folded
    res = proj[:, 2 * segE + segC:2 * segE + 2 * segC]          # residual_s (BN folded)
    dwn = proj[:, 2 * segE + 2 * segC:2 * segE + 3 * segC]      # down (BN folded)

    # per-frame graph attention: softmax(Q K^T) + structural incidence A
    s = jax.lax.dot_general(q.astype(jnp.bfloat16), k.astype(jnp.bfloat16),
                            (((2,), (2,)), ((0,), (0,))),
                            preferred_element_type=jnp.float32)  # (T, V, V)
    s = s - jnp.max(s, axis=-1, keepdims=True)
    p = jnp.exp(s)
    denom = jnp.sum(p, axis=-1, keepdims=True)
    if approx_recip:
        p = p * pl.reciprocal(denom, approx=True)
    else:
        p = p / denom
    m = p + a_ref[...]                                           # (T, V, V)

    # y[t, w, c] = sum_v m[t, v, w] * g[t, v, c]  (no explicit transpose)
    y = jax.lax.dot_general(m.astype(jnp.bfloat16), g.astype(jnp.bfloat16),
                            (((1,), (1,)), ((0,), (0,))),
                            preferred_element_type=jnp.float32)  # (T, V, segC)
    y = jnp.maximum(y + ash_ref[...], 0.0)                       # attn BN shift + ReLU

    out = y.reshape(rows, segC) + res + jnp.maximum(dwn, 0.0)    # + res_s + relu(down)
    o_ref[0] = out.astype(o_ref.dtype)


# ----------------------------------------------------------------------------
# Parameter folding (eval-mode BN -> scale folded into weights, shift kept)
# ----------------------------------------------------------------------------
def fold_params(p, eps=1e-5):
    f32, bf16 = jnp.float32, jnp.bfloat16

    # TNN: conv (3,1) + BN
    t = p["tnn"]
    s_t = t["bn_g"] / jnp.sqrt(t["bn_v"] + eps)                   # (Cin,)
    sh_t = (t["b"] - t["bn_m"]) * s_t + t["bn_b"]                 # (Cin,)
    w = t["w"][..., 0]                                            # (Cin, Cin, 3)
    w_taps = jnp.transpose(w, (2, 1, 0)) * s_t[None, None, :]     # (3, Cin_in, Cin_out)
    cin = w_taps.shape[1]

    # attention projections + residual_s + down (all 1x1), BN scales folded
    a = p["attn"]
    E = a["theta_w"].shape[0]
    Cout = a["g_w"].shape[0]
    segE = _round_up(E, 128)
    segC = _round_up(Cout, 128)
    inv_sqrt_e = 1.0 / math.sqrt(E)
    s_a = a["bn_g"] / jnp.sqrt(a["bn_v"] + eps)
    sh_a = a["bn_b"] - a["bn_m"] * s_a                            # (Cout,)
    rbn, dbn = p["res_bn"], p["down_bn"]
    s_r = rbn["g"] / jnp.sqrt(rbn["v"] + eps)
    sh_r = (p["res_b"] - rbn["m"]) * s_r + rbn["b"]
    s_d = dbn["g"] / jnp.sqrt(dbn["v"] + eps)
    sh_d = (p["down_b"] - dbn["m"]) * s_d + dbn["b"]

    def pc(w2d, n):     # zero-pad columns to n (lane-align the segment)
        return jnp.pad(w2d, ((0, 0), (0, n - w2d.shape[1])))

    def pv(v1d, n):
        return jnp.pad(v1d, (0, n - v1d.shape[0]))

    w_fused = jnp.concatenate([
        pc(a["theta_w"].T * inv_sqrt_e, segE),        # 1/sqrt(E) folded
        pc(a["phi_w"].T, segE),
        pc(a["g_w"].T * s_a[None, :], segC),          # attn-BN scale folded
        pc(p["res_w"].T * s_r[None, :], segC),        # res-BN scale folded
        pc(p["down_w"].T * s_d[None, :], segC),       # down-BN scale folded
    ], axis=1)
    shift_fused = jnp.concatenate([
        pv(a["theta_b"] * inv_sqrt_e, segE), pv(a["phi_b"], segE),
        pv(a["g_b"] * s_a, segC), pv(sh_r, segC), pv(sh_d, segC),
    ]).reshape(1, -1)

    return dict(
        tnn_w=w_taps.reshape(3 * cin, cin).astype(bf16),
        tnn_shift=sh_t.reshape(1, -1).astype(f32),
        proj_w=w_fused.astype(bf16),
        proj_shift=shift_fused.astype(f32),
        attn_shift=pv(sh_a, segC).reshape(1, -1).astype(f32),
        A=p["A"].astype(f32),
    )


# ----------------------------------------------------------------------------
# Block forward:  x1 = tnn(x) + x ;  y = attn(x1) + residual_s(x1) + down(x1)
# ----------------------------------------------------------------------------
def gag_block_forward(x, params, *, approx_softmax=True):
    N, Cin, T, V = x.shape
    E = params["attn"]["theta_w"].shape[0]
    Cout = params["attn"]["g_w"].shape[0]
    segE = _round_up(E, 128)
    segC = _round_up(Cout, 128)
    nf = 2 * segE + 3 * segC
    folded = fold_params(params)

    # Single entry relayout: NCHW -> channel-last rows=(t, v), bf16 (halves the
    # kernel's dominant read).  The temporal halo is built in-kernel.
    x_cl = jnp.transpose(x, (0, 2, 3, 1)).reshape(N, T * V, Cin).astype(jnp.bfloat16)

    out = pl.pallas_call(
        functools.partial(_gag_fused_kernel, T=T, V=V, Cin=Cin,
                          segE=segE, segC=segC, approx_recip=approx_softmax),
        out_shape=jax.ShapeDtypeStruct((N, T * V, segC), jnp.bfloat16),
        grid_spec=pltpu.PrefetchScalarGridSpec(
            num_scalar_prefetch=0,
            grid=(N,),
            in_specs=[
                pl.BlockSpec((1, T * V, Cin), lambda n: (n, 0, 0)),
                pl.BlockSpec((3 * Cin, Cin), lambda n: (0, 0)),
                pl.BlockSpec((1, Cin), lambda n: (0, 0)),
                pl.BlockSpec((Cin, nf), lambda n: (0, 0)),
                pl.BlockSpec((1, nf), lambda n: (0, 0)),
                pl.BlockSpec((V, V), lambda n: (0, 0)),
                pl.BlockSpec((1, segC), lambda n: (0, 0)),
            ],
            out_specs=pl.BlockSpec((1, T * V, segC), lambda n: (n, 0, 0)),
        ),
        compiler_params=pltpu.CompilerParams(dimension_semantics=("parallel",)),
    )(x_cl, folded["tnn_w"], folded["tnn_shift"], folded["proj_w"],
      folded["proj_shift"], folded["A"], folded["attn_shift"])

    # Single exit relayout: lane-dense store -> slice real Cout, back to NCHW.
    y = out.reshape(N, T, V, segC)[..., :Cout]
    return jnp.transpose(y, (0, 3, 1, 2)).astype(jnp.float32)


# ----------------------------------------------------------------------------
# Pure-JAX f32 reference (same reconstructed semantics) for a sanity check.
# ----------------------------------------------------------------------------
def _reference_forward(x, p, eps=1e-5):
    N, Cin, T, V = x.shape

    def bn(z, g, b, m, v):                 # channel-last batchnorm (eval mode)
        return (z - m) / jnp.sqrt(v + eps) * g + b

    t = p["tnn"]
    w = t["w"][..., 0]                                            # (Cin, Cin, 3)
    xp = jnp.pad(x, ((0, 0), (0, 0), (1, 1), (0, 0)))
    conv = sum(jnp.einsum('oi,nitv->notv', w[:, :, k], xp[:, :, k:k + T, :])
               for k in range(3)) + t["b"][None, :, None, None]
    tnn_out = bn(conv.transpose(0, 2, 3, 1), t["bn_g"], t["bn_b"],
                 t["bn_m"], t["bn_v"]).transpose(0, 3, 1, 2)
    x1 = tnn_out + x
    xc = x1.transpose(0, 2, 3, 1)                                 # (N, T, V, Cin)

    a = p["attn"]
    E = a["theta_w"].shape[0]
    q = xc @ a["theta_w"].T + a["theta_b"]
    k = xc @ a["phi_w"].T + a["phi_b"]
    g = xc @ a["g_w"].T + a["g_b"]
    s = jnp.einsum('ntve,ntwe->ntvw', q, k) / jnp.sqrt(float(E))
    m = jax.nn.softmax(s, axis=-1) + p["A"]
    y = jnp.einsum('ntvw,ntvc->ntwc', m, g)
    y = jnp.maximum(bn(y, a["bn_g"], a["bn_b"], a["bn_m"], a["bn_v"]), 0.0)

    res = bn(xc @ p["res_w"].T + p["res_b"], p["res_bn"]["g"], p["res_bn"]["b"],
             p["res_bn"]["m"], p["res_bn"]["v"])
    dwn = jnp.maximum(bn(xc @ p["down_w"].T + p["down_b"], p["down_bn"]["g"],
                         p["down_bn"]["b"], p["down_bn"]["m"], p["down_bn"]["v"]),
                      0.0)
    return (y + res + dwn).transpose(0, 3, 1, 2)


# ----------------------------------------------------------------------------
# Deterministic parameter init (synthetic — no checkpoint load)
# ----------------------------------------------------------------------------
def init_params(key, c_in, c_out, embed, num_point):
    ks = jax.random.split(key, 16)
    f32 = jnp.float32

    def rnd(k, shape, s=0.1):
        return (s * jax.random.normal(k, shape)).astype(f32)

    def bn_params(k, c):
        k1, k2, k3, k4 = jax.random.split(k, 4)
        return dict(g=1.0 + 0.05 * jax.random.normal(k1, (c,)).astype(f32),
                    b=rnd(k2, (c,)),
                    m=rnd(k3, (c,)),
                    v=1.0 + 0.1 * jax.random.uniform(k4, (c,)).astype(f32))

    # structural incidence matrix A (normalized chain adjacency over joints)
    idx = jnp.arange(num_point)
    adj = (jnp.abs(idx[:, None] - idx[None, :]) <= 1).astype(f32)
    A = adj / adj.sum(axis=-1, keepdims=True)

    tnn_bn = bn_params(ks[5], c_in)
    attn_bn = bn_params(ks[6], c_out)
    res_bn = bn_params(ks[7], c_out)
    down_bn = bn_params(ks[8], c_out)

    return dict(
        A=A,
        tnn=dict(w=rnd(ks[0], (c_in, c_in, 3, 1)), b=rnd(ks[1], (c_in,)),
                 bn_g=tnn_bn["g"], bn_b=tnn_bn["b"],
                 bn_m=tnn_bn["m"], bn_v=tnn_bn["v"]),
        attn=dict(theta_w=rnd(ks[2], (embed, c_in)), theta_b=rnd(ks[3], (embed,)),
                  phi_w=rnd(ks[4], (embed, c_in)), phi_b=rnd(ks[9], (embed,)),
                  g_w=rnd(ks[10], (c_out, c_in)), g_b=rnd(ks[11], (c_out,)),
                  bn_g=attn_bn["g"], bn_b=attn_bn["b"],
                  bn_m=attn_bn["m"], bn_v=attn_bn["v"]),
        res_w=rnd(ks[12], (c_out, c_in)), res_b=rnd(ks[13], (c_out,)), res_bn=res_bn,
        down_w=rnd(ks[14], (c_out, c_in)), down_b=rnd(ks[15], (c_out,)), down_bn=down_bn,
    )


if __name__ == "__main__":
    key = jax.random.PRNGKey(0)
    kx, kp = jax.random.split(key)

    N, C_IN, C_OUT, T, V, EMBED = 2, 4, 8, 16, 8, 4
    x = jax.random.normal(kx, (N, C_IN, T, V), dtype=jnp.float32)   # NCHW: (N, C, T, V)
    params = init_params(kp, C_IN, C_OUT, EMBED, V)

    fwd = jax.jit(gag_block_forward)
    y = jax.block_until_ready(fwd(x, params))
    assert y.shape == (N, C_OUT, T, V)
    assert bool(jnp.all(jnp.isfinite(y)))

    # Loose check against a pure-JAX f32 reference (bf16 operands + approx
    # softmax reciprocal in the kernel -> ~1e-2-level absolute error expected).
    y_ref = jax.block_until_ready(_reference_forward(x, params))
    err = float(jnp.max(jnp.abs(y - y_ref)))
    assert err < 1e-1, f"kernel vs reference max abs err {err:.4f}"

    print("KERNEL_OK")
</pallas_src>

<mosaic_0001>
module attributes {stable_mosaic.version = 11 : i64} {
  func.func @_gag_fused_kernel(%arg0: i32, %arg1: memref<1x128x4xbf16, #tpu.memory_space<vmem>>, %arg2: memref<12x4xbf16, #tpu.memory_space<vmem>>, %arg3: memref<1x4xf32, #tpu.memory_space<vmem>>, %arg4: memref<4x640xbf16, #tpu.memory_space<vmem>>, %arg5: memref<1x640xf32, #tpu.memory_space<vmem>>, %arg6: memref<8x8xf32, #tpu.memory_space<vmem>>, %arg7: memref<1x128xf32, #tpu.memory_space<vmem>>, %arg8: memref<1x128x128xbf16, #tpu.memory_space<vmem>>) attributes {dimension_semantics = [#tpu.dimension_semantics<parallel>], iteration_bounds = array<i64: 2>, scalar_prefetch = 0 : i64, scratch_operands = 0 : i64, tpu.core_type = #tpu.core_type<tc>, window_params = [{transform_indices = @transform_0, window_bounds = array<i64: 1, 128, 4>}, {pipeline_mode = #tpu.pipeline_mode<synchronous>, transform_indices = @transform_1, window_bounds = array<i64: 12, 4>}, {pipeline_mode = #tpu.pipeline_mode<synchronous>, transform_indices = @transform_2, window_bounds = array<i64: 1, 4>}, {pipeline_mode = #tpu.pipeline_mode<synchronous>, transform_indices = @transform_3, window_bounds = array<i64: 4, 640>}, {pipeline_mode = #tpu.pipeline_mode<synchronous>, transform_indices = @transform_4, window_bounds = array<i64: 1, 640>}, {pipeline_mode = #tpu.pipeline_mode<synchronous>, transform_indices = @transform_5, window_bounds = array<i64: 8, 8>}, {pipeline_mode = #tpu.pipeline_mode<synchronous>, transform_indices = @transform_6, window_bounds = array<i64: 1, 128>}, {transform_indices = @transform_7, window_bounds = array<i64: 1, 128, 128>}]} {
    %c0 = arith.constant 0 : index
    %c0_0 = arith.constant 0 : index
    %c0_1 = arith.constant 0 : index
    %0 = vector.load %arg1[%c0, %c0_0, %c0_1] : memref<1x128x4xbf16, #tpu.memory_space<vmem>>, vector<1x128x4xbf16>
    %1 = vector.shape_cast %0 : vector<1x128x4xbf16> to vector<128x4xbf16>
    %cst = arith.constant 0.000000e+00 : bf16
    %2 = vector.broadcast %cst : bf16 to vector<8x4xbf16>
    %3 = vector.extract_strided_slice %1 {offsets = [0, 0], sizes = [120, 4], strides = [1, 1]} : vector<128x4xbf16> to vector<120x4xbf16>
    %4 = tpu.concatenate %2, %3 in 0 : vector<8x4xbf16>, vector<120x4xbf16> -> vector<128x4xbf16>
    %5 = vector.extract_strided_slice %1 {offsets = [8, 0], sizes = [120, 4], strides = [1, 1]} : vector<128x4xbf16> to vector<120x4xbf16>
    %6 = tpu.concatenate %5, %2 in 0 : vector<120x4xbf16>, vector<8x4xbf16> -> vector<128x4xbf16>
    %7 = tpu.concatenate %4, %1, %6 in 1 : vector<128x4xbf16>, vector<128x4xbf16>, vector<128x4xbf16> -> vector<128x12xbf16>
    %c0_2 = arith.constant 0 : index
    %c0_3 = arith.constant 0 : index
    %8 = vector.load %arg2[%c0_2, %c0_3] : memref<12x4xbf16, #tpu.memory_space<vmem>>, vector<12x4xbf16>
    %cst_4 = arith.constant dense<0.000000e+00> : vector<128x4xf32>
    %9 = tpu.matmul %7, %8, %cst_4 {dimension_numbers = #tpu.dot_dimension_numbers<[1], [0], [0], [1], [0, 0, 1, 1], [], []>} : vector<128x12xbf16>, vector<12x4xbf16>, vector<128x4xf32> -> vector<128x4xf32>
    %c0_5 = arith.constant 0 : index
    %c0_6 = arith.constant 0 : index
    %10 = vector.load %arg3[%c0_5, %c0_6] : memref<1x4xf32, #tpu.memory_space<vmem>>, vector<1x4xf32>
    %11 = vector.broadcast %10 : vector<1x4xf32> to vector<128x4xf32>
    %12 = arith.addf %9, %11 : vector<128x4xf32>
    %13 = arith.extf %1 : vector<128x4xbf16> to vector<128x4xf32>
    %14 = arith.addf %12, %13 : vector<128x4xf32>
    %15 = arith.truncf %14 : vector<128x4xf32> to vector<128x4xbf16>
    %c0_7 = arith.constant 0 : index
    %c0_8 = arith.constant 0 : index
    %16 = vector.load %arg4[%c0_7, %c0_8] : memref<4x640xbf16, #tpu.memory_space<vmem>>, vector<4x640xbf16>
    %cst_9 = arith.constant dense<0.000000e+00> : vector<128x640xf32>
    %17 = tpu.matmul %15, %16, %cst_9 {dimension_numbers = #tpu.dot_dimension_numbers<[1], [0], [0], [1], [0, 0, 1, 1], [], []>} : vector<128x4xbf16>, vector<4x640xbf16>, vector<128x640xf32> -> vector<128x640xf32>
    %c0_10 = arith.constant 0 : index
    %c0_11 = arith.constant 0 : index
    %18 = vector.load %arg5[%c0_10, %c0_11] : memref<1x640xf32, #tpu.memory_space<vmem>>, vector<1x640xf32>
    %19 = vector.broadcast %18 : vector<1x640xf32> to vector<128x640xf32>
    %20 = arith.addf %17, %19 : vector<128x640xf32>
    %21 = vector.extract_strided_slice %20 {offsets = [0, 0], sizes = [128, 128], strides = [1, 1]} : vector<128x640xf32> to vector<128x128xf32>
    %22 = vector.shape_cast %21 : vector<128x128xf32> to vector<16x8x128xf32>
    %23 = vector.extract_strided_slice %20 {offsets = [0, 128], sizes = [128, 128], strides = [1, 1]} : vector<128x640xf32> to vector<128x128xf32>
    %24 = vector.shape_cast %23 : vector<128x128xf32> to vector<16x8x128xf32>
    %25 = vector.extract_strided_slice %20 {offsets = [0, 256], sizes = [128, 128], strides = [1, 1]} : vector<128x640xf32> to vector<128x128xf32>
    %26 = vector.shape_cast %25 : vector<128x128xf32> to vector<16x8x128xf32>
    %27 = vector.extract_strided_slice %20 {offsets = [0, 384], sizes = [128, 128], strides = [1, 1]} : vector<128x640xf32> to vector<128x128xf32>
    %28 = vector.extract_strided_slice %20 {offsets = [0, 512], sizes = [128, 128], strides = [1, 1]} : vector<128x640xf32> to vector<128x128xf32>
    %29 = arith.truncf %22 : vector<16x8x128xf32> to vector<16x8x128xbf16>
    %30 = arith.truncf %24 : vector<16x8x128xf32> to vector<16x8x128xbf16>
    %cst_12 = arith.constant dense<0.000000e+00> : vector<16x8x8xf32>
    %31 = tpu.matmul %29, %30, %cst_12 {dimension_numbers = #tpu.dot_dimension_numbers<[2], [2], [1], [1], [0, 0, 0, 1, 1, 1], [0], [0]>} : vector<16x8x128xbf16>, vector<16x8x128xbf16>, vector<16x8x8xf32> -> vector<16x8x8xf32>
    %cst_13 = arith.constant dense<0xFF800000> : vector<16x8xf32>
    %32 = vector.multi_reduction <maximumf>, %31, %cst_13 [2] : vector<16x8x8xf32> to vector<16x8xf32>
    %33 = vector.shape_cast %32 : vector<16x8xf32> to vector<16x8x1xf32>
    %34 = vector.broadcast %33 : vector<16x8x1xf32> to vector<16x8x8xf32>
    %35 = arith.subf %31, %34 : vector<16x8x8xf32>
    %36 = math.exp %35 : vector<16x8x8xf32>
    %cst_14 = arith.constant dense<0.000000e+00> : vector<16x8xf32>
    %37 = vector.multi_reduction <add>, %36, %cst_14 [2] : vector<16x8x8xf32> to vector<16x8xf32>
    %38 = vector.shape_cast %37 : vector<16x8xf32> to vector<16x8x1xf32>
    %39 = tpu.reciprocal %38 {approx = true} : vector<16x8x1xf32> -> vector<16x8x1xf32>
    %40 = vector.broadcast %39 : vector<16x8x1xf32> to vector<16x8x8xf32>
    %41 = arith.mulf %36, %40 : vector<16x8x8xf32>
    %c0_15 = arith.constant 0 : index
    %c0_16 = arith.constant 0 : index
    %42 = vector.load %arg6[%c0_15, %c0_16] : memref<8x8xf32, #tpu.memory_space<vmem>>, vector<8x8xf32>
    %43 = vector.shape_cast %42 : vector<8x8xf32> to vector<1x8x8xf32>
    %44 = vector.broadcast %43 : vector<1x8x8xf32> to vector<16x8x8xf32>
    %45 = arith.addf %41, %44 : vector<16x8x8xf32>
    %46 = arith.truncf %45 : vector<16x8x8xf32> to vector<16x8x8xbf16>
    %47 = arith.truncf %26 : vector<16x8x128xf32> to vector<16x8x128xbf16>
    %cst_17 = arith.constant dense<0.000000e+00> : vector<16x8x128xf32>
    %48 = tpu.matmul %46, %47, %cst_17 {dimension_numbers = #tpu.dot_dimension_numbers<[1], [1], [2], [2], [0, 0, 0, 2, 1, 2], [0], [0]>} : vector<16x8x8xbf16>, vector<16x8x128xbf16>, vector<16x8x128xf32> -> vector<16x8x128xf32>
    %c0_18 = arith.constant 0 : index
    %c0_19 = arith.constant 0 : index
    %49 = vector.load %arg7[%c0_18, %c0_19] : memref<1x128xf32, #tpu.memory_space<vmem>>, vector<1x128xf32>
    %50 = vector.shape_cast %49 : vector<1x128xf32> to vector<1x1x128xf32>
    %51 = vector.broadcast %50 : vector<1x1x128xf32> to vector<16x8x128xf32>
    %52 = arith.addf %48, %51 : vector<16x8x128xf32>
    %cst_20 = arith.constant 0.000000e+00 : f32
    %53 = vector.broadcast %cst_20 : f32 to vector<16x8x128xf32>
    %54 = arith.maximumf %52, %53 : vector<16x8x128xf32>
    %55 = vector.shape_cast %54 : vector<16x8x128xf32> to vector<128x128xf32>
    %56 = arith.addf %55, %27 : vector<128x128xf32>
    %cst_21 = arith.constant 0.000000e+00 : f32
    %57 = vector.broadcast %cst_21 : f32 to vector<128x128xf32>
    %58 = arith.maximumf %28, %57 : vector<128x128xf32>
    %59 = arith.addf %56, %58 : vector<128x128xf32>
    %60 = arith.truncf %59 : vector<128x128xf32> to vector<128x128xbf16>
    %c0_22 = arith.constant 0 : index
    %c0_23 = arith.constant 0 : index
    %c0_24 = arith.constant 0 : index
    %61 = vector.load %arg8[%c0_22, %c0_23, %c0_24] : memref<1x128x128xbf16, #tpu.memory_space<vmem>>, vector<1x128x128xbf16>
    %62 = vector.shape_cast %61 : vector<1x128x128xbf16> to vector<128x128xbf16>
    %63 = vector.shape_cast %60 : vector<128x128xbf16> to vector<1x128x128xbf16>
    tpu.vector_store %arg8[%c0_22, %c0_23, %c0_24], %63 {strides = array<i32>} : memref<1x128x128xbf16, #tpu.memory_space<vmem>>, vector<1x128x128xbf16>,
    return
  }
  func.func @transform_0(%arg0: i32) -> (i32, i32, i32) {
    %c0_i32 = arith.constant 0 : i32
    %c0_i32_0 = arith.constant 0 : i32
    %c0_i32_1 = arith.constant 0 : i32
    return %arg0, %c0_i32, %c0_i32_0 : i32, i32, i32
  }
  func.func @transform_1(%arg0: i32) -> (i32, i32) {
    %c0_i32 = arith.constant 0 : i32
    %c0_i32_0 = arith.constant 0 : i32
    %c0_i32_1 = arith.constant 0 : i32
    return %c0_i32, %c0_i32_0 : i32, i32
  }
  func.func @transform_2(%arg0: i32) -> (i32, i32) {
    %c0_i32 = arith.constant 0 : i32
    %c0_i32_0 = arith.constant 0 : i32
    %c0_i32_1 = arith.constant 0 : i32
    return %c0_i32, %c0_i32_0 : i32, i32
  }
  func.func @transform_3(%arg0: i32) -> (i32, i32) {
    %c0_i32 = arith.constant 0 : i32
    %c0_i32_0 = arith.constant 0 : i32
    %c0_i32_1 = arith.constant 0 : i32
    return %c0_i32, %c0_i32_0 : i32, i32
  }
  func.func @transform_4(%arg0: i32) -> (i32, i32) {
    %c0_i32 = arith.constant 0 : i32
    %c0_i32_0 = arith.constant 0 : i32
    %c0_i32_1 = arith.constant 0 : i32
    return %c0_i32, %c0_i32_0 : i32, i32
  }
  func.func @transform_5(%arg0: i32) -> (i32, i32) {
    %c0_i32 = arith.constant 0 : i32
    %c0_i32_0 = arith.constant 0 : i32
    %c0_i32_1 = arith.constant 0 : i32
    return %c0_i32, %c0_i32_0 : i32, i32
  }
  func.func @transform_6(%arg0: i32) -> (i32, i32) {
    %c0_i32 = arith.constant 0 : i32
    %c0_i32_0 = arith.constant 0 : i32
    %c0_i32_1 = arith.constant 0 : i32
    return %c0_i32, %c0_i32_0 : i32, i32
  }
  func.func @transform_7(%arg0: i32) -> (i32, i32, i32) {
    %c0_i32 = arith.constant 0 : i32
    %c0_i32_0 = arith.constant 0 : i32
    %c0_i32_1 = arith.constant 0 : i32
    return %arg0, %c0_i32, %c0_i32_0 : i32, i32, i32
  }
}

</mosaic_0001>

<llo_original>
// kernel: mul.45
$region0: #{mul.45}
  #allocation0 [shape = 's32[1]{0}', space=sflag, size = 0x4, scoped, tag = 'scoped memory for mul.45']
  %s0 = inlined_call_operand.vmem [shape: f32[8], index: 0, kind: input, shape index: {}]
  %s1 = inlined_call_operand.vmem [shape: f32[8], index: 1, kind: input, shape index: {}]
  %s2 = inlined_call_operand.vmem [shape: f32[8], index: 2, kind: output, shape index: {}]
  %v3 = vld [vmem:[%s0] sm:$0x1]
  %v4 = vld [vmem:[%s1] sm:$0x1]
  %5 = xla_tuple %v3, %v4
  %6 = xla_tuple %5
  %v7 = vmul.f32 %v3, %v4
  %8 = xla_tuple %v7
  %9 = vst [vmem:[%s2] sm:$0x1] %v7

// kernel: custom-call
$region0: #{custom-call}
  %s0 = inlined_call_operand.vmem [shape: f32[640], index: 0, kind: output, shape index: {}]

// kernel: gag_block_forward.1
$region0: #{gag_block_forward.1}
  #allocation0 [shape = 'u32[]', space=smem, size = 0x4, offset = 0x4, fixed_abs, tag = 'smem constant byte address 0x4 - core index']
  #allocation1 [shape = 'u32[144,128]{1,0:T(1,128)}', space=vmem, size = 0x12000, scoped, tag = 'internal scratch']
  %s0 = inlined_call_operand.vmem [shape: bf16[2,128,4], index: 0, kind: input, shape index: {}]
  %s1 = inlined_call_operand.vmem [shape: bf16[12,4], index: 1, kind: input, shape index: {}]
  %s2 = inlined_call_operand.vmem [shape: f32[1,4], index: 2, kind: input, shape index: {}]
  %s3 = inlined_call_operand.vmem [shape: bf16[4,640], index: 3, kind: input, shape index: {}]
  %s4 = inlined_call_operand.vmem [shape: f32[1,640], index: 4, kind: input, shape index: {}]
  %s5 = inlined_call_operand.vmem [shape: f32[8,8], index: 5, kind: input, shape index: {}]
  %s6 = inlined_call_operand.vmem [shape: f32[1,128], index: 6, kind: input, shape index: {}]
  %s7 = inlined_call_operand.vmem [shape: bf16[2,128,128], index: 7, kind: output, shape index: {}]
  %s8 = sld [smem:[#allocation0]]
  $region61: #{gag_block_forward.1} parent=0
    _
  %s10 = ssub.s32 1, %s8
  %s11 = scalar_select 0, %s10, %s8
  loop: start=0, step=1, limit=4
  $region2: #{gag_block_forward.1} parent=0 // loop_pre_header
    _
  $region3: #{gag_block_forward.1} parent=0 // loop_header
    %s13 = sphi 0, %s17
    %p14 = scmp.ge.s32.totalorder %s13, 4
    %s23 = sphi 0, %s25
    %s26 = sphi 0, %s23
    %s27 = sphi 0, %s26
    %s43 = sphi 0, %s27
    %s47 = sphi 0, %s47
    %s49 = sphi 0, %s47
    %s50 = sphi 0, %s49
    %s64 = sphi 0, %s50
    %s68 = sphi 0, %s68
    %s70 = sphi 0, %s68
    %s71 = sphi 0, %s70
    %s85 = sphi 0, %s71
    %s89 = sphi 0, %s89
    %s91 = sphi 0, %s89
    %s92 = sphi 0, %s91
    %s106 = sphi 0, %s92
    %s110 = sphi 0, %s110
    %s112 = sphi 0, %s110
    %s113 = sphi 0, %s112
    %s127 = sphi 0, %s113
    %s131 = sphi 0, %s131
    %s133 = sphi 0, %s131
    %s134 = sphi 0, %s133
    %s148 = sphi 0, %s134
    %s152 = sphi 0, %s152
    %s154 = sphi 0, %s152
    %s155 = sphi 0, %s154
    %s169 = sphi 0, %s155
    %s175 = sphi 0, %s177
    %s178 = sphi 0, %s175
    %s179 = sphi 0, %s178
    %s195 = sphi 0, %s179
  $region4: #{gag_block_forward.1} parent=0 // loop_header_branch
    %16 = sbr.rel (%p14) target = $region8
  $region5: #{gag_block_forward.1} parent=0 // loop_body
    %s18 = ssub.s32 %s13, 1
    %s19 = ssub.s32 %s13, 2
    %s20 = sadd.s32 %s13, 1
    %s21 = ssub.s32 %s13, %s20
    %p22 = scmp.eq.s32.totalorder %s21, 0
    %s24 = sadd.s32 %s23, 1
    %s25 = scalar_select %p22, %s23, %s24
    %p28 = pneg %p22
    %p29 = scmp.eq.s32.totalorder %s13, 1
    %p30 = por %p28, %p29
    %p31 = scmp.ne.s32.totalorder %s23, %s26
    %p32 = scmp.eq.s32.totalorder %s13, 0
    %p33 = por %p31, %p32
    %p34 = scmp.ne.s32.totalorder %s23, %s26
    %p35 = scmp.eq.s32.totalorder %s18, 1
    %p36 = por %p34, %p35
    %p37 = scmp.ne.s32.totalorder %s26, %s27
    %p38 = scmp.eq.s32.totalorder %s18, 0
    %p39 = por %p37, %p38
    %p40 = scmp.ne.s32.totalorder %s26, %s27
    %p41 = scmp.eq.s32.totalorder %s19, 1
    %p42 = por %p40, %p41
    %p44 = scmp.ne.s32.totalorder %s27, %s43
    %p45 = scmp.eq.s32.totalorder %s19, 0
    %p46 = por %p44, %p45
    %s48 = sadd.s32 %s47, 1
    %p51 = scmp.eq.s32.totalorder %s13, 1
    %p52 = scmp.ne.s32.totalorder %s47, %s49
    %p53 = scmp.eq.s32.totalorder %s13, 0
    %p54 = por %p52, %p53
    %p55 = scmp.ne.s32.totalorder %s47, %s49
    %p56 = scmp.eq.s32.totalorder %s18, 1
    %p57 = por %p55, %p56
    %p58 = scmp.ne.s32.totalorder %s49, %s50
    %p59 = scmp.eq.s32.totalorder %s18, 0
    %p60 = por %p58, %p59
    %p61 = scmp.ne.s32.totalorder %s49, %s50
    %p62 = scmp.eq.s32.totalorder %s19, 1
    %p63 = por %p61, %p62
    %p65 = scmp.ne.s32.totalorder %s50, %s64
    %p66 = scmp.eq.s32.totalorder %s19, 0
    %p67 = por %p65, %p66
    %s69 = sadd.s32 %s68, 1
    %p72 = scmp.eq.s32.totalorder %s13, 1
    %p73 = scmp.ne.s32.totalorder %s68, %s70
    %p74 = scmp.eq.s32.totalorder %s13, 0
    %p75 = por %p73, %p74
    %p76 = scmp.ne.s32.totalorder %s68, %s70
    %p77 = scmp.eq.s32.totalorder %s18, 1
    %p78 = por %p76, %p77
    %p79 = scmp.ne.s32.totalorder %s70, %s71
    %p80 = scmp.eq.s32.totalorder %s18, 0
    %p81 = por %p79, %p80
    %p82 = scmp.ne.s32.totalorder %s70, %s71
    %p83 = scmp.eq.s32.totalorder %s19, 1
    %p84 = por %p82, %p83
    %p86 = scmp.ne.s32.totalorder %s71, %s85
    %p87 = scmp.eq.s32.totalorder %s19, 0
    %p88 = por %p86, %p87
    %s90 = sadd.s32 %s89, 1
    %p93 = scmp.eq.s32.totalorder %s13, 1
    %p94 = scmp.ne.s32.totalorder %s89, %s91
    %p95 = scmp.eq.s32.totalorder %s13, 0
    %p96 = por %p94, %p95
    %p97 = scmp.ne.s32.totalorder %s89, %s91
    %p98 = scmp.eq.s32.totalorder %s18, 1
    %p99 = por %p97, %p98
    %p100 = scmp.ne.s32.totalorder %s91, %s92
    %p101 = scmp.eq.s32.totalorder %s18, 0
    %p102 = por %p100, %p101
    %p103 = scmp.ne.s32.totalorder %s91, %s92
    %p104 = scmp.eq.s32.totalorder %s19, 1
    %p105 = por %p103, %p104
    %p107 = scmp.ne.s32.totalorder %s92, %s106
    %p108 = scmp.eq.s32.totalorder %s19, 0
    %p109 = por %p107, %p108
    %s111 = sadd.s32 %s110, 1
    %p114 = scmp.eq.s32.totalorder %s13, 1
    %p115 = scmp.ne.s32.totalorder %s110, %s112
    %p116 = scmp.eq.s32.totalorder %s13, 0
    %p117 = por %p115, %p116
    %p118 = scmp.ne.s32.totalorder %s110, %s112
    %p119 = scmp.eq.s32.totalorder %s18, 1
    %p120 = por %p118, %p119
    %p121 = scmp.ne.s32.totalorder %s112, %s113
    %p122 = scmp.eq.s32.totalorder %s18, 0
    %p123 = por %p121, %p122
    %p124 = scmp.ne.s32.totalorder %s112, %s113
    %p125 = scmp.eq.s32.totalorder %s19, 1
    %p126 = por %p124, %p125
    %p128 = scmp.ne.s32.totalorder %s113, %s127
    %p129 = scmp.eq.s32.totalorder %s19, 0
    %p130 = por %p128, %p129
    %s132 = sadd.s32 %s131, 1
    %p135 = scmp.eq.s32.totalorder %s13, 1
    %p136 = scmp.ne.s32.totalorder %s131, %s133
    %p137 = scmp.eq.s32.totalorder %s13, 0
    %p138 = por %p136, %p137
    %p139 = scmp.ne.s32.totalorder %s131, %s133
    %p140 = scmp.eq.s32.totalorder %s18, 1
    %p141 = por %p139, %p140
    %p142 = scmp.ne.s32.totalorder %s133, %s134
    %p143 = scmp.eq.s32.totalorder %s18, 0
    %p144 = por %p142, %p143
    %p145 = scmp.ne.s32.totalorder %s133, %s134
    %p146 = scmp.eq.s32.totalorder %s19, 1
    %p147 = por %p145, %p146
    %p149 = scmp.ne.s32.totalorder %s134, %s148
    %p150 = scmp.eq.s32.totalorder %s19, 0
    %p151 = por %p149, %p150
    %s153 = sadd.s32 %s152, 1
    %p156 = scmp.eq.s32.totalorder %s13, 1
    %p157 = scmp.ne.s32.totalorder %s152, %s154
    %p158 = scmp.eq.s32.totalorder %s13, 0
    %p159 = por %p157, %p158
    %p160 = scmp.ne.s32.totalorder %s152, %s154
    %p161 = scmp.eq.s32.totalorder %s18, 1
    %p162 = por %p160, %p161
    %p163 = scmp.ne.s32.totalorder %s154, %s155
    %p164 = scmp.eq.s32.totalorder %s18, 0
    %p165 = por %p163, %p164
    %p166 = scmp.ne.s32.totalorder %s154, %s155
    %p167 = scmp.eq.s32.totalorder %s19, 1
    %p168 = por %p166, %p167
    %p170 = scmp.ne.s32.totalorder %s155, %s169
    %p171 = scmp.eq.s32.totalorder %s19, 0
    %p172 = por %p170, %p171
    %s173 = ssub.s32 %s13, %s20
    %p174 = scmp.eq.s32.totalorder %s173, 0
    %s176 = sadd.s32 %s175, 1
    %s177 = scalar_select %p174, %s175, %s176
    %p180 = pneg %p174
    %p181 = scmp.eq.s32.totalorder %s13, 1
    %p182 = por %p180, %p181
    %p183 = scmp.ne.s32.totalorder %s175, %s178
    %p184 = scmp.eq.s32.totalorder %s13, 0
    %p185 = por %p183, %p184
    %p186 = scmp.ne.s32.totalorder %s175, %s178
    %p187 = scmp.eq.s32.totalorder %s18, 1
    %p188 = por %p186, %p187
    %p189 = scmp.ne.s32.totalorder %s178, %s179
    %p190 = scmp.eq.s32.totalorder %s18, 0
    %p191 = por %p189, %p190
    %p192 = scmp.ne.s32.totalorder %s178, %s179
    %p193 = scmp.eq.s32.totalorder %s19, 1
    %p194 = por %p192, %p193
    %p196 = scmp.ne.s32.totalorder %s179, %s195
    %p197 = scmp.eq.s32.totalorder %s19, 0
    %p198 = por %p196, %p197
    %p199 = scmp.le.s32.totalorder 1, %s13
    %p200 = scmp.lt.s32.totalorder %s13, 3
    %p201 = pnand %p199, %p200
    %p202 = pneg %p201
    // Predicated region
    $region9: #{gag_block_forward.1} parent=5 // pred_check
      _
    $region10: #{gag_block_forward.1} parent=5 // pred_check_branch
      %204 = sbr.rel (%p201) target = $region12
    $region11: #{gag_block_forward.1} parent=5 // pred_region
      %s205 = ssub.s32 %s13, 1
      // Predicated region
      $region13: #{gag_block_forward.1} parent=11 // pred_check
        %p206 = pneg %p60
      $region14: #{gag_block_forward.1} parent=11 // pred_check_branch
        %208 = sbr.rel (%p206) target = $region16
      $region15: #{gag_block_forward.1} parent=11 // pred_region
        _
      $region16: #{gag_block_forward.1} parent=11 // pred_fallthru
        _
      // Predicated region
      $region17: #{gag_block_forward.1} parent=11 // pred_check
        %p209 = pneg %p81
      $region18: #{gag_block_forward.1} parent=11 // pred_check_branch
        %211 = sbr.rel (%p209) target = $region20
      $region19: #{gag_block_forward.1} parent=11 // pred_region
        _
      $region20: #{gag_block_forward.1} parent=11 // pred_fallthru
        _
      // Predicated region
      $region21: #{gag_block_forward.1} parent=11 // pred_check
        %p212 = pneg %p102
      $region22: #{gag_block_forward.1} parent=11 // pred_check_branch
        %214 = sbr.rel (%p212) target = $region24
      $region23: #{gag_block_forward.1} parent=11 // pred_region
        _
      $region24: #{gag_block_forward.1} parent=11 // pred_fallthru
        _
      // Predicated region
      $region25: #{gag_block_forward.1} parent=11 // pred_check
        %p215 = pneg %p123
      $region26: #{gag_block_forward.1} parent=11 // pred_check_branch
        %217 = sbr.rel (%p215) target = $region28
      $region27: #{gag_block_forward.1} parent=11 // pred_region
        _
      $region28: #{gag_block_forward.1} parent=11 // pred_fallthru
        _
      // Predicated region
      $region29: #{gag_block_forward.1} parent=11 // pred_check
        %p218 = pneg %p144
      $region30: #{gag_block_forward.1} parent=11 // pred_check_branch
        %220 = sbr.rel (%p218) target = $region32
      $region31: #{gag_block_forward.1} parent=11 // pred_region
        _
      $region32: #{gag_block_forward.1} parent=11 // pred_fallthru
        _
      // Predicated region
      $region33: #{gag_block_forward.1} parent=11 // pred_check
        %p221 = pneg %p165
      $region34: #{gag_block_forward.1} parent=11 // pred_check_branch
        %223 = sbr.rel (%p221) target = $region36
      $region35: #{gag_block_forward.1} parent=11 // pred_region
        _
      $region36: #{gag_block_forward.1} parent=11 // pred_fallthru
        _
    $region12: #{gag_block_forward.1} parent=5 // pred_fallthru
      _
    %p224 = scmp.lt.s32.totalorder %s13, 2
    // Predicated region
    $region37: #{gag_block_forward.1} parent=5 // pred_check
      %p225 = pneg %p224
    $region38: #{gag_block_forward.1} parent=5 // pred_check_branch
      %227 = sbr.rel (%p225) target = $region40
    $region39: #{gag_block_forward.1} parent=5 // pred_region
      // Predicated region
      $region41: #{gag_block_forward.1} parent=39 // pred_check
        %p228 = pneg %p33
      $region42: #{gag_block_forward.1} parent=39 // pred_check_branch
        %230 = sbr.rel (%p228) target = $region44
      $region43: #{gag_block_forward.1} parent=39 // pred_region
        %p231 = scmp.lt.s32.totalorder %s13, 1
        %s232 = scalar_select %p231, %s13, 1
        %s233 = smul.addr %s232, 16
        %s234 = smul.addr %s233, 4
        %s235 = scalar_lea.vmem %s0, %s234
      $region44: #{gag_block_forward.1} parent=39 // pred_fallthru
        _
    $region40: #{gag_block_forward.1} parent=5 // pred_fallthru
      _
    %p236 = scmp.le.s32.totalorder 1, %s13
    %p237 = scmp.lt.s32.totalorder %s13, 3
    %p238 = pnand %p236, %p237
    %p239 = pneg %p238
    // Predicated region
    $region45: #{gag_block_forward.1} parent=5 // pred_check
      _
    $region46: #{gag_block_forward.1} parent=5 // pred_check_branch
      %241 = sbr.rel (%p238) target = $region48
    $region47: #{gag_block_forward.1} parent=5 // pred_region
      %s242 = ssub.s32 %s13, 1
      %p243 = scmp.lt.s32.totalorder %s18, 1
      %s244 = scalar_select %p243, %s18, 1
      %s245 = smul.addr %s244, 16
      %s246 = smul.addr %s245, 4
      %s247 = scalar_lea.vmem %s0, %s246
      %p248 = pneg %p39
      %p249 = pneg %p36
      %p250 = pneg %p60
      %p251 = pneg %p57
      %p252 = pneg %p81
      %p253 = pneg %p78
      %p254 = pneg %p102
      %p255 = pneg %p99
      %p256 = pneg %p123
      %p257 = pneg %p120
      %p258 = pneg %p144
      %p259 = pneg %p141
      %p260 = pneg %p165
      %p261 = pneg %p162
      %p262 = pneg %p191
      %p263 = pneg %p188
      %p264 = scmp.lt.s32.totalorder %s18, 1
      %s265 = scalar_select %p264, %s18, 1
      %s266 = smul.addr %s265, 16
      %s267 = smul.addr %s266, 4
      %s268 = scalar_lea.vmem %s7, %s267
      %p269 = scmp.lt.s32.totalorder %s18, 1
      %s270 = scalar_select %p269, %s18, 1
      %s271 = smul.addr %s270, 16
      %s272 = smul.addr %s271, 4
      %s273 = scalar_lea.vmem %s0, %s272
      %p274 = scmp.lt.s32.totalorder %s18, 1
      %s275 = scalar_select %p274, %s18, 1
      %s276 = smul.addr %s275, 16
      %s277 = smul.addr %s276, 4
      %s278 = scalar_lea.vmem %s7, %s277
      %v280 = vld [vmem:[%s273] sm:$0xf]
      %v281 = vld [vmem:[%s273 + $0x4] sm:$0xf]
      %v282 = vld [vmem:[%s273 + $0x8] sm:$0xf]
      %v283 = vld [vmem:[%s273 + $0xc] sm:$0xf]
      %v284 = vld [vmem:[%s273 + $0x10] sm:$0xf]
      %v285 = vld [vmem:[%s273 + $0x14] sm:$0xf]
      %v286 = vld [vmem:[%s273 + $0x18] sm:$0xf]
      %v287 = vld [vmem:[%s273 + $0x1c] sm:$0xf]
      %v288 = vld [vmem:[%s273 + $0x20] sm:$0xf]
      %v289 = vld [vmem:[%s273 + $0x24] sm:$0xf]
      %v290 = vld [vmem:[%s273 + $0x28] sm:$0xf]
      %v291 = vld [vmem:[%s273 + $0x2c] sm:$0xf]
      %v292 = vld [vmem:[%s273 + $0x30] sm:$0xf]
      %v293 = vld [vmem:[%s273 + $0x34] sm:$0xf]
      %v294 = vld [vmem:[%s273 + $0x38] sm:$0xf]
      %v295 = vld [vmem:[%s273 + $0x3c] sm:$0xf]
      %v311 = vunpack.c.l.b16 %v280
      %v312 = vunpack.c.l.b16 %v281
      %v313 = vunpack.c.l.b16 %v282
      %v314 = vunpack.c.l.b16 %v283
      %v315 = vunpack.c.l.b16 %v284
      %v316 = vunpack.c.l.b16 %v285
      %v317 = vunpack.c.l.b16 %v286
      %v318 = vunpack.c.l.b16 %v287
      %v319 = vunpack.c.l.b16 %v288
      %v320 = vunpack.c.l.b16 %v289
      %v321 = vunpack.c.l.b16 %v290
      %v322 = vunpack.c.l.b16 %v291
      %v323 = vunpack.c.l.b16 %v292
      %v324 = vunpack.c.l.b16 %v293
      %v325 = vunpack.c.l.b16 %v294
      %v326 = vpack.c.b16 %v311, %v311
      %v327 = vpack.c.b16 %v313, %v312
      %v328 = vpack.c.b16 %v315, %v314
      %v329 = vpack.c.b16 %v317, %v316
      %v330 = vpack.c.b16 %v319, %v318
      %v331 = vpack.c.b16 %v321, %v320
      %v332 = vpack.c.b16 %v323, %v322
      %v333 = vpack.c.b16 %v325, %v324
      %vm334 = vcmask 1043456
      %v337 = vsel %vm334, 0, %v326
      %v339 = vunpack.c.l.b16 %v295
      %v340 = vpack.c.b16 %v339, %v339
      %v342 = vsel %vm334, %v340, 0
      %v343 = vpack.c.b16 %v312, %v311
      %v344 = vpack.c.b16 %v314, %v313
      %v345 = vpack.c.b16 %v316, %v315
      %v346 = vpack.c.b16 %v318, %v317
      %v347 = vpack.c.b16 %v320, %v319
      %v348 = vpack.c.b16 %v322, %v321
      %v349 = vpack.c.b16 %v324, %v323
      %v350 = vpack.c.b16 %v339, %v325
      %351 = vrot.lane.b32.xlu0 %v343, 4
      %v352 = vpop.permute.xlu0 %351
      %353 = vrot.lane.b32.xlu0 %v344, 4
      %v354 = vpop.permute.xlu0 %353
      %355 = vrot.lane.b32.xlu0 %v345, 4
      %v356 = vpop.permute.xlu0 %355
      %357 = vrot.lane.b32.xlu0 %v346, 4
      %v358 = vpop.permute.xlu0 %357
      %359 = vrot.lane.b32.xlu0 %v347, 4
      %v360 = vpop.permute.xlu0 %359
      %361 = vrot.lane.b32.xlu0 %v348, 4
      %v362 = vpop.permute.xlu0 %361
      %363 = vrot.lane.b32.xlu0 %v349, 4
      %v364 = vpop.permute.xlu0 %363
      %365 = vrot.lane.b32.xlu0 %v350, 4
      %v366 = vpop.permute.xlu0 %365
      %368 = vrot.lane.b32.xlu0 %v327, 8
      %v369 = vpop.permute.xlu0 %368
      %370 = vrot.lane.b32.xlu0 %v328, 8
      %v371 = vpop.permute.xlu0 %370
      %372 = vrot.lane.b32.xlu0 %v329, 8
      %v373 = vpop.permute.xlu0 %372
      %374 = vrot.lane.b32.xlu0 %v330, 8
      %v375 = vpop.permute.xlu0 %374
      %376 = vrot.lane.b32.xlu0 %v331, 8
      %v377 = vpop.permute.xlu0 %376
      %378 = vrot.lane.b32.xlu0 %v332, 8
      %v379 = vpop.permute.xlu0 %378
      %380 = vrot.lane.b32.xlu0 %v333, 8
      %v381 = vpop.permute.xlu0 %380
      %382 = vrot.lane.b32.xlu0 %v342, 8
      %v383 = vpop.permute.xlu0 %382
      %vm384 = vcmask 31744
      %v386 = vsel %vm384, %v337, %v352
      %v389 = vsel %vm384, %v327, %v354
      %v392 = vsel %vm384, %v328, %v356
      %v395 = vsel %vm384, %v329, %v358
      %v398 = vsel %vm384, %v330, %v360
      %v401 = vsel %vm384, %v331, %v362
      %v404 = vsel %vm384, %v332, %v364
      %v407 = vsel %vm384, %v333, %v366
      %vm408 = vcmask 64512
      %v410 = vsel %vm408, %v386, %v369
      %v412 = vsel %vm408, %v389, %v371
      %v414 = vsel %vm408, %v392, %v373
      %v416 = vsel %vm408, %v395, %v375
      %v418 = vsel %vm408, %v398, %v377
      %v420 = vsel %vm408, %v401, %v379
      %v422 = vsel %vm408, %v404, %v381
      %v424 = vsel %vm408, %v407, %v383
      %v425 = vld [vmem:[%s1] sm:$0xf]
      %v426 = vld [vmem:[%s1 + $0x4] sm:$0x3]
      %v427 = vld [vmem:[%s2] sm:$0x1]
      %v429 = vlaneseq
      %v430 = vshrl.u32 %v429, 7
      %v431 = vsub.s32 0, %v430
      %v432 = vrot.slane %v427, %v431
      %v436 = vunpack.c.l.b16 %v425
      %v437 = vunpack.c.l.b16 %v426
      %v438 = vpack.c.b16 %v437, %v436
      %vm439 = vcmask 97280
      %v440 = vsel %vm439, %v410, 0
      %v442 = vsel %vm439, %v412, 0
      %v444 = vsel %vm439, %v414, 0
      %v446 = vsel %vm439, %v416, 0
      %v448 = vsel %vm439, %v418, 0
      %v450 = vsel %vm439, %v420, 0
      %v452 = vsel %vm439, %v422, 0
      %v454 = vsel %vm439, %v424, 0
      %vm456 = vcmask 1045504
      %v458 = vsel %vm456, %v438, 0
      %460 = vmatprep.subr.bf16.mxu0 0
      %461 = vmatpush1.bf16.msra.mxu0 0
      %462 = vmatprep.subr.bf16.mxu0 0
      %463 = vmatpush1.bf16.msra.mxu0 0
      %464 = vmatprep.subr.bf16.mxu0 0
      %465 = vmatpush1.bf16.msra.mxu0 0
      %466 = vmatprep.subr.bf16.mxu0 0
      %467 = vmatpush1.bf16.msra.mxu0 0
      %468 = vmatprep.subr.bf16.mxu0 0
      %469 = vmatpush1.bf16.msra.mxu0 0
      %470 = vmatprep.subr.bf16.mxu0 0
      %471 = vmatpush1.bf16.msra.mxu0 0
      %472 = vmatprep.subr.bf16.mxu0 0
      %473 = vmatpush1.bf16.msra.mxu0 0
      %474 = vmatprep.subr.bf16.mxu0 0
      %475 = vmatpush1.bf16.msra.mxu0 %v458
      %476 = vmatprep.subr.bf16.mxu0 0
      %477 = vmatpush2.bf16.msra.mxu0 0
      %478 = vmatprep.subr.bf16.mxu0 0
      %479 = vmatpush2.bf16.msra.mxu0 0
      %480 = vmatprep.subr.bf16.mxu0 0
      %481 = vmatpush2.bf16.msra.mxu0 0
      %482 = vmatprep.subr.bf16.mxu0 0
      %483 = vmatpush2.bf16.msra.mxu0 0
      %484 = vmatprep.subr.bf16.mxu0 0
      %485 = vmatpush2.bf16.msra.mxu0 0
      %486 = vmatprep.subr.bf16.mxu0 0
      %487 = vmatpush2.bf16.msra.mxu0 0
      %488 = vmatprep.subr.bf16.mxu0 0
      %489 = vmatpush2.bf16.msra.mxu0 0
      %490 = vmatprep.subr.bf16.mxu0 0
      %491 = vmatpush2.bf16.msra.mxu0 0
      %492 = vmatprep.mubr.bf16.mxu0 0
      %493 = vmatmul.mubr.bf16.gmra.mxu0 %v440
      %v494 = vpop.f32.mrf.mxu0
      %v495 = vadd.f32 %v432, %v494
      %v496 = vpop.f32.mrf.mxu0
      %v497 = vpop.f32.mrf.mxu0
      %v498 = vadd.f32 %v432, %v497
      %v499 = vpop.f32.mrf.mxu0
      %500 = vmatprep.mubr.bf16.mxu0 0
      %501 = vmatmul.mubr.bf16.gmra.mxu0 %v442
      %v502 = vpop.f32.mrf.mxu0
      %v503 = vadd.f32 %v432, %v502
      %v504 = vpop.f32.mrf.mxu0
      %v505 = vpop.f32.mrf.mxu0
      %v506 = vadd.f32 %v432, %v505
      %v507 = vpop.f32.mrf.mxu0
      %508 = vmatprep.mubr.bf16.mxu0 0
      %509 = vmatmul.mubr.bf16.gmra.mxu0 %v444
      %v510 = vpop.f32.mrf.mxu0
      %v511 = vadd.f32 %v432, %v510
      %v512 = vpop.f32.mrf.mxu0
      %v513 = vpop.f32.mrf.mxu0
      %v514 = vadd.f32 %v432, %v513
      %v515 = vpop.f32.mrf.mxu0
      %516 = vmatprep.mubr.bf16.mxu0 0
      %517 = vmatmul.mubr.bf16.gmra.mxu0 %v446
      %v518 = vpop.f32.mrf.mxu0
      %v519 = vadd.f32 %v432, %v518
      %v520 = vpop.f32.mrf.mxu0
      %v521 = vpop.f32.mrf.mxu0
      %v522 = vadd.f32 %v432, %v521
      %v523 = vpop.f32.mrf.mxu0
      %524 = vmatprep.mubr.bf16.mxu0 0
      %525 = vmatmul.mubr.bf16.gmra.mxu0 %v448
      %v526 = vpop.f32.mrf.mxu0
      %v527 = vadd.f32 %v432, %v526
      %v528 = vpop.f32.mrf.mxu0
      %v529 = vpop.f32.mrf.mxu0
      %v530 = vadd.f32 %v432, %v529
      %v531 = vpop.f32.mrf.mxu0
      %532 = vmatprep.mubr.bf16.mxu0 0
      %533 = vmatmul.mubr.bf16.gmra.mxu0 %v450
      %v534 = vpop.f32.mrf.mxu0
      %v535 = vadd.f32 %v432, %v534
      %v536 = vpop.f32.mrf.mxu0
      %v537 = vpop.f32.mrf.mxu0
      %v538 = vadd.f32 %v432, %v537
      %v539 = vpop.f32.mrf.mxu0
      %540 = vmatprep.mubr.bf16.mxu0 0
      %541 = vmatmul.mubr.bf16.gmra.mxu0 %v452
      %v542 = vpop.f32.mrf.mxu0
      %v543 = vadd.f32 %v432, %v542
      %v544 = vpop.f32.mrf.mxu0
      %v545 = vpop.f32.mrf.mxu0
      %v546 = vadd.f32 %v432, %v545
      %v547 = vpop.f32.mrf.mxu0
      %548 = vmatprep.mubr.bf16.mxu0 0
      %549 = vmatmul.mubr.bf16.gmra.mxu0 %v454
      %v550 = vpop.f32.mrf.mxu0
      %v551 = vadd.f32 %v432, %v550
      %v552 = vpop.f32.mrf.mxu0
      %v553 = vpop.f32.mrf.mxu0
      %v554 = vadd.f32 %v432, %v553
      %v555 = vpop.f32.mrf.mxu0
      %556 = vdwg.mxu0
      %v557 = vunpack.c.l.bf16 %v280
      %v558 = vunpack.c.l.bf16 %v281
      %v559 = vunpack.c.l.bf16 %v282
      %v560 = vunpack.c.l.bf16 %v283
      %v561 = vunpack.c.l.bf16 %v284
      %v562 = vunpack.c.l.bf16 %v285
      %v563 = vunpack.c.l.bf16 %v286
      %v564 = vunpack.c.l.bf16 %v287
      %v565 = vunpack.c.l.bf16 %v288
      %v566 = vunpack.c.l.bf16 %v289
      %v567 = vunpack.c.l.bf16 %v290
      %v568 = vunpack.c.l.bf16 %v291
      %v569 = vunpack.c.l.bf16 %v292
      %v570 = vunpack.c.l.bf16 %v293
      %v571 = vunpack.c.l.bf16 %v294
      %v572 = vunpack.c.l.bf16 %v295
      %v573 = vadd.f32 %v495, %v557
      %v574 = vadd.f32 %v498, %v558
      %v575 = vadd.f32 %v503, %v559
      %v576 = vadd.f32 %v506, %v560
      %v577 = vadd.f32 %v511, %v561
      %v578 = vadd.f32 %v514, %v562
      %v579 = vadd.f32 %v519, %v563
      %v580 = vadd.f32 %v522, %v564
      %v581 = vadd.f32 %v527, %v565
      %v582 = vadd.f32 %v530, %v566
      %v583 = vadd.f32 %v535, %v567
      %v584 = vadd.f32 %v538, %v568
      %v585 = vadd.f32 %v543, %v569
      %v586 = vadd.f32 %v546, %v570
      %v587 = vadd.f32 %v551, %v571
      %v588 = vadd.f32 %v554, %v572
      %v589 = vpack.c.bf16 %v574, %v573
      %v590 = vpack.c.bf16 %v576, %v575
      %v591 = vpack.c.bf16 %v578, %v577
      %v592 = vpack.c.bf16 %v580, %v579
      %v593 = vpack.c.bf16 %v582, %v581
      %v594 = vpack.c.bf16 %v584, %v583
      %v595 = vpack.c.bf16 %v586, %v585
      %v596 = vpack.c.bf16 %v588, %v587
      %v597 = vld [vmem:[%s3] sm:$0xff]
      %v598 = vld [vmem:[%s3 + $0x8] sm:$0x3]
      %v599 = vld [vmem:[%s4] sm:$0x1f]
      %v601 = vlaneseq
      %v602 = vshrl.u32 %v601, 7
      %v603 = vsub.s32 0, %v602
      %v604 = vrot.slane %v599, %v603
      %v605 = vlaneseq
      %v606 = vshrl.u32 %v605, 7
      %v607 = vsub.s32 1, %v606
      %v608 = vrot.slane %v599, %v607
      %v609 = vlaneseq
      %v610 = vshrl.u32 %v609, 7
      %v611 = vsub.s32 2, %v610
      %v612 = vrot.slane %v599, %v611
      %v613 = vlaneseq
      %v614 = vshrl.u32 %v613, 7
      %v615 = vsub.s32 3, %v614
      %v616 = vrot.slane %v599, %v615
      %v617 = vlaneseq
      %v618 = vshrl.u32 %v617, 7
      %v619 = vsub.s32 4, %v618
      %v620 = vrot.slane %v599, %v619
      %v628 = vcombine.high %v597, %v597
      %v630 = vunpack.c.l.s4 1983009808
      %v631 = vunpack.c.0.s8 %v630
      %v632 = vlaneseq
      %v633 = vshrl.u32 %v632, 7
      %v634 = vsub.s32 %v631, %v633
      %v635 = vrot.slane %v597, %v634
      %v637 = vunpack.c.l.s4 1983009808
      %v638 = vunpack.c.0.s8 %v637
      %v639 = vlaneseq
      %v640 = vshrl.u32 %v639, 7
      %v641 = vsub.s32 %v638, %v640
      %v642 = vrot.slane %v628, %v641
      %v643 = vcombine.high %v635, %v635
      %v644 = vcombine.high %v642, %v642
      %v646 = vunpack.c.l.s4 1983009808
      %v647 = vunpack.c.0.s8 %v646
      %v648 = vlaneseq
      %v649 = vshrl.u32 %v648, 7
      %v650 = vsub.s32 %v647, %v649
      %v651 = vrot.slane %v598, %v650
      %v653 = vsel %vm384, %v589, 0
      %v656 = vsel %vm384, %v590, 0
      %v659 = vsel %vm384, %v591, 0
      %v662 = vsel %vm384, %v592, 0
      %v665 = vsel %vm384, %v593, 0
      %v668 = vsel %vm384, %v594, 0
      %v671 = vsel %vm384, %v595, 0
      %v674 = vsel %vm384, %v596, 0
      %vm676 = vcmask 1041408
      %v678 = vsel %vm676, %v635, 0
      %v681 = vsel %vm676, %v643, 0
      %v684 = vsel %vm676, %v642, 0
      %v687 = vsel %vm676, %v644, 0
      %v690 = vsel %vm676, %v651, 0
      %692 = vmatprep.subr.bf16.mxu0 0
      %693 = vmatpush1.bf16.msra.mxu0 0
      %694 = vmatprep.subr.bf16.mxu0 0
      %695 = vmatpush1.bf16.msra.mxu0 0
      %696 = vmatprep.subr.bf16.mxu0 0
      %697 = vmatpush1.bf16.msra.mxu0 0
      %698 = vmatprep.subr.bf16.mxu0 0
      %699 = vmatpush1.bf16.msra.mxu0 0
      %700 = vmatprep.subr.bf16.mxu0 0
      %701 = vmatpush1.bf16.msra.mxu0 0
      %702 = vmatprep.subr.bf16.mxu0 0
      %703 = vmatpush1.bf16.msra.mxu0 0
      %704 = vmatprep.subr.bf16.mxu0 0
      %705 = vmatpush1.bf16.msra.mxu0 0
      %706 = vmatprep.subr.bf16.mxu0 %v681
      %707 = vmatpush1.bf16.msra.mxu0 %v678
      %708 = vmatprep.subr.bf16.mxu0 0
      %709 = vmatpush2.bf16.msra.mxu0 0
      %710 = vmatprep.subr.bf16.mxu0 0
      %711 = vmatpush2.bf16.msra.mxu0 0
      %712 = vmatprep.subr.bf16.mxu0 0
      %713 = vmatpush2.bf16.msra.mxu0 0
      %714 = vmatprep.subr.bf16.mxu0 0
      %715 = vmatpush2.bf16.msra.mxu0 0
      %716 = vmatprep.subr.bf16.mxu0 0
      %717 = vmatpush2.bf16.msra.mxu0 0
      %718 = vmatprep.subr.bf16.mxu0 0
      %719 = vmatpush2.bf16.msra.mxu0 0
      %720 = vmatprep.subr.bf16.mxu0 0
      %721 = vmatpush2.bf16.msra.mxu0 0
      %722 = vmatprep.subr.bf16.mxu0 0
      %723 = vmatpush2.bf16.msra.mxu0 0
      %724 = vmatprep.mubr.bf16.mxu0 0
      %725 = vmatmul.mubr.bf16.gmra.mxu0 %v653
      %v726 = vpop.f32.mrf.mxu0
      %v727 = vadd.f32 %v604, %v726
      %v728 = vpop.f32.mrf.mxu0
      %v729 = vadd.f32 %v608, %v728
      %v730 = vpop.f32.mrf.mxu0
      %v731 = vadd.f32 %v604, %v730
      %v732 = vpop.f32.mrf.mxu0
      %v733 = vadd.f32 %v608, %v732
      %734 = vmatprep.mubr.bf16.mxu0 0
      %735 = vmatmul.mubr.bf16.gmra.mxu0 %v656
      %v736 = vpop.f32.mrf.mxu0
      %v737 = vadd.f32 %v604, %v736
      %v738 = vpop.f32.mrf.mxu0
      %v739 = vadd.f32 %v608, %v738
      %v740 = vpop.f32.mrf.mxu0
      %v741 = vadd.f32 %v604, %v740
      %v742 = vpop.f32.mrf.mxu0
      %v743 = vadd.f32 %v608, %v742
      %744 = vmatprep.mubr.bf16.mxu0 0
      %745 = vmatmul.mubr.bf16.gmra.mxu0 %v659
      %v746 = vpop.f32.mrf.mxu0
      %v747 = vadd.f32 %v604, %v746
      %v748 = vpop.f32.mrf.mxu0
      %v749 = vadd.f32 %v608, %v748
      %v750 = vpop.f32.mrf.mxu0
      %v751 = vadd.f32 %v604, %v750
      %v752 = vpop.f32.mrf.mxu0
      %v753 = vadd.f32 %v608, %v752
      %754 = vmatprep.mubr.bf16.mxu0 0
      %755 = vmatmul.mubr.bf16.gmra.mxu0 %v662
      %v756 = vpop.f32.mrf.mxu0
      %v757 = vadd.f32 %v604, %v756
      %v758 = vpop.f32.mrf.mxu0
      %v759 = vadd.f32 %v608, %v758
      %v760 = vpop.f32.mrf.mxu0
      %v761 = vadd.f32 %v604, %v760
      %v762 = vpop.f32.mrf.mxu0
      %v763 = vadd.f32 %v608, %v762
      %764 = vmatprep.mubr.bf16.mxu0 0
      %765 = vmatmul.mubr.bf16.gmra.mxu0 %v665
      %v766 = vpop.f32.mrf.mxu0
      %v767 = vadd.f32 %v604, %v766
      %v768 = vpop.f32.mrf.mxu0
      %v769 = vadd.f32 %v608, %v768
      %v770 = vpop.f32.mrf.mxu0
      %v771 = vadd.f32 %v604, %v770
      %v772 = vpop.f32.mrf.mxu0
      %v773 = vadd.f32 %v608, %v772
      %774 = vmatprep.mubr.bf16.mxu0 0
      %775 = vmatmul.mubr.bf16.gmra.mxu0 %v668
      %v776 = vpop.f32.mrf.mxu0
      %v777 = vadd.f32 %v604, %v776
      %v778 = vpop.f32.mrf.mxu0
      %v779 = vadd.f32 %v608, %v778
      %v780 = vpop.f32.mrf.mxu0
      %v781 = vadd.f32 %v604, %v780
      %v782 = vpop.f32.mrf.mxu0
      %v783 = vadd.f32 %v608, %v782
      %784 = vmatprep.mubr.bf16.mxu0 0
      %785 = vmatmul.mubr.bf16.gmra.mxu0 %v671
      %v786 = vpop.f32.mrf.mxu0
      %v787 = vadd.f32 %v604, %v786
      %v788 = vpop.f32.mrf.mxu0
      %v789 = vadd.f32 %v608, %v788
      %v790 = vpop.f32.mrf.mxu0
      %v791 = vadd.f32 %v604, %v790
      %v792 = vpop.f32.mrf.mxu0
      %v793 = vadd.f32 %v608, %v792
      %794 = vmatprep.mubr.bf16.mxu0 0
      %795 = vmatmul.mubr.bf16.gmra.mxu0 %v674
      %v796 = vpop.f32.mrf.mxu0
      %v797 = vadd.f32 %v604, %v796
      %v798 = vpop.f32.mrf.mxu0
      %v799 = vadd.f32 %v608, %v798
      %v800 = vpop.f32.mrf.mxu0
      %v801 = vadd.f32 %v604, %v800
      %v802 = vpop.f32.mrf.mxu0
      %v803 = vadd.f32 %v608, %v802
      %804 = vdwg.mxu0
      %805 = vmatprep.subr.bf16.mxu0 0
      %806 = vmatpush1.bf16.msra.mxu0 0
      %807 = vmatprep.subr.bf16.mxu0 0
      %808 = vmatpush1.bf16.msra.mxu0 0
      %809 = vmatprep.subr.bf16.mxu0 0
      %810 = vmatpush1.bf16.msra.mxu0 0
      %811 = vmatprep.subr.bf16.mxu0 0
      %812 = vmatpush1.bf16.msra.mxu0 0
      %813 = vmatprep.subr.bf16.mxu0 0
      %814 = vmatpush1.bf16.msra.mxu0 0
      %815 = vmatprep.subr.bf16.mxu0 0
      %816 = vmatpush1.bf16.msra.mxu0 0
      %817 = vmatprep.subr.bf16.mxu0 0
      %818 = vmatpush1.bf16.msra.mxu0 0
      %819 = vmatprep.subr.bf16.mxu0 %v687
      %820 = vmatpush1.bf16.msra.mxu0 %v684
      %821 = vmatprep.subr.bf16.mxu0 0
      %822 = vmatpush2.bf16.msra.mxu0 0
      %823 = vmatprep.subr.bf16.mxu0 0
      %824 = vmatpush2.bf16.msra.mxu0 0
      %825 = vmatprep.subr.bf16.mxu0 0
      %826 = vmatpush2.bf16.msra.mxu0 0
      %827 = vmatprep.subr.bf16.mxu0 0
      %828 = vmatpush2.bf16.msra.mxu0 0
      %829 = vmatprep.subr.bf16.mxu0 0
      %830 = vmatpush2.bf16.msra.mxu0 0
      %831 = vmatprep.subr.bf16.mxu0 0
      %832 = vmatpush2.bf16.msra.mxu0 0
      %833 = vmatprep.subr.bf16.mxu0 0
      %834 = vmatpush2.bf16.msra.mxu0 0
      %835 = vmatprep.subr.bf16.mxu0 0
      %836 = vmatpush2.bf16.msra.mxu0 0
      %837 = vmatprep.mubr.bf16.mxu0 0
      %838 = vmatmul.mubr.bf16.gmra.mxu0 %v653
      %v839 = vpop.f32.mrf.mxu0
      %v840 = vadd.f32 %v612, %v839
      %v841 = vpop.f32.mrf.mxu0
      %v842 = vadd.f32 %v616, %v841
      %v843 = vpop.f32.mrf.mxu0
      %v844 = vadd.f32 %v612, %v843
      %v845 = vpop.f32.mrf.mxu0
      %v846 = vadd.f32 %v616, %v845
      %847 = vmatprep.mubr.bf16.mxu0 0
      %848 = vmatmul.mubr.bf16.gmra.mxu0 %v656
      %v849 = vpop.f32.mrf.mxu0
      %v850 = vadd.f32 %v612, %v849
      %v851 = vpop.f32.mrf.mxu0
      %v852 = vadd.f32 %v616, %v851
      %v853 = vpop.f32.mrf.mxu0
      %v854 = vadd.f32 %v612, %v853
      %v855 = vpop.f32.mrf.mxu0
      %v856 = vadd.f32 %v616, %v855
      %857 = vmatprep.mubr.bf16.mxu0 0
      %858 = vmatmul.mubr.bf16.gmra.mxu0 %v659
      %v859 = vpop.f32.mrf.mxu0
      %v860 = vadd.f32 %v612, %v859
      %v861 = vpop.f32.mrf.mxu0
      %v862 = vadd.f32 %v616, %v861
      %v863 = vpop.f32.mrf.mxu0
      %v864 = vadd.f32 %v612, %v863
      %v865 = vpop.f32.mrf.mxu0
      %v866 = vadd.f32 %v616, %v865
      %867 = vmatprep.mubr.bf16.mxu0 0
      %868 = vmatmul.mubr.bf16.gmra.mxu0 %v662
      %v869 = vpop.f32.mrf.mxu0
      %v870 = vadd.f32 %v612, %v869
      %v871 = vpop.f32.mrf.mxu0
      %v872 = vadd.f32 %v616, %v871
      %v873 = vpop.f32.mrf.mxu0
      %v874 = vadd.f32 %v612, %v873
      %v875 = vpop.f32.mrf.mxu0
      %v876 = vadd.f32 %v616, %v875
      %877 = vmatprep.mubr.bf16.mxu0 0
      %878 = vmatmul.mubr.bf16.gmra.mxu0 %v665
      %v879 = vpop.f32.mrf.mxu0
      %v880 = vadd.f32 %v612, %v879
      %v881 = vpop.f32.mrf.mxu0
      %v882 = vadd.f32 %v616, %v881
      %v883 = vpop.f32.mrf.mxu0
      %v884 = vadd.f32 %v612, %v883
      %v885 = vpop.f32.mrf.mxu0
      %v886 = vadd.f32 %v616, %v885
      %887 = vmatprep.mubr.bf16.mxu0 0
      %888 = vmatmul.mubr.bf16.gmra.mxu0 %v668
      %v889 = vpop.f32.mrf.mxu0
      %v890 = vadd.f32 %v612, %v889
      %v891 = vpop.f32.mrf.mxu0
      %v892 = vadd.f32 %v616, %v891
      %v893 = vpop.f32.mrf.mxu0
      %v894 = vadd.f32 %v612, %v893
      %v895 = vpop.f32.mrf.mxu0
      %v896 = vadd.f32 %v616, %v895
      %897 = vmatprep.mubr.bf16.mxu0 0
      %898 = vmatmul.mubr.bf16.gmra.mxu0 %v671
      %v899 = vpop.f32.mrf.mxu0
      %v900 = vadd.f32 %v612, %v899
      %v901 = vpop.f32.mrf.mxu0
      %v902 = vadd.f32 %v616, %v901
      %v903 = vpop.f32.mrf.mxu0
      %v904 = vadd.f32 %v612, %v903
      %v905 = vpop.f32.mrf.mxu0
      %v906 = vadd.f32 %v616, %v905
      %907 = vmatprep.mubr.bf16.mxu0 0
      %908 = vmatmul.mubr.bf16.gmra.mxu0 %v674
      %v909 = vpop.f32.mrf.mxu0
      %v910 = vadd.f32 %v612, %v909
      %v911 = vpop.f32.mrf.mxu0
      %v912 = vadd.f32 %v616, %v911
      %v913 = vpop.f32.mrf.mxu0
      %v914 = vadd.f32 %v612, %v913
      %v915 = vpop.f32.mrf.mxu0
      %v916 = vadd.f32 %v616, %v915
      %917 = vdwg.mxu0
      %918 = vmatprep.subr.bf16.mxu0 0
      %919 = vmatpush1.bf16.msra.mxu0 0
      %920 = vmatprep.subr.bf16.mxu0 0
      %921 = vmatpush1.bf16.msra.mxu0 0
      %922 = vmatprep.subr.bf16.mxu0 0
      %923 = vmatpush1.bf16.msra.mxu0 0
      %924 = vmatprep.subr.bf16.mxu0 0
      %925 = vmatpush1.bf16.msra.mxu0 0
      %926 = vmatprep.subr.bf16.mxu0 0
      %927 = vmatpush1.bf16.msra.mxu0 0
      %928 = vmatprep.subr.bf16.mxu0 0
      %929 = vmatpush1.bf16.msra.mxu0 0
      %930 = vmatprep.subr.bf16.mxu0 0
      %931 = vmatpush1.bf16.msra.mxu0 0
      %932 = vmatprep.subr.bf16.mxu0 0
      %933 = vmatpush1.bf16.msra.mxu0 %v690
      %934 = vmatprep.subr.bf16.mxu0 0
      %935 = vmatpush2.bf16.msra.mxu0 0
      %936 = vmatprep.subr.bf16.mxu0 0
      %937 = vmatpush2.bf16.msra.mxu0 0
      %938 = vmatprep.subr.bf16.mxu0 0
      %939 = vmatpush2.bf16.msra.mxu0 0
      %940 = vmatprep.subr.bf16.mxu0 0
      %941 = vmatpush2.bf16.msra.mxu0 0
      %942 = vmatprep.subr.bf16.mxu0 0
      %943 = vmatpush2.bf16.msra.mxu0 0
      %944 = vmatprep.subr.bf16.mxu0 0
      %945 = vmatpush2.bf16.msra.mxu0 0
      %946 = vmatprep.subr.bf16.mxu0 0
      %947 = vmatpush2.bf16.msra.mxu0 0
      %948 = vmatprep.subr.bf16.mxu0 0
      %949 = vmatpush2.bf16.msra.mxu0 0
      %950 = vmatprep.mubr.bf16.mxu0 0
      %951 = vmatmul.mubr.bf16.gmra.mxu0 %v653
      %v952 = vpop.f32.mrf.mxu0
      %v953 = vadd.f32 %v620, %v952
      %v954 = vpop.f32.mrf.mxu0
      %v955 = vpop.f32.mrf.mxu0
      %v956 = vadd.f32 %v620, %v955
      %v957 = vpop.f32.mrf.mxu0
      %958 = vmatprep.mubr.bf16.mxu0 0
      %959 = vmatmul.mubr.bf16.gmra.mxu0 %v656
      %v960 = vpop.f32.mrf.mxu0
      %v961 = vadd.f32 %v620, %v960
      %v962 = vpop.f32.mrf.mxu0
      %v963 = vpop.f32.mrf.mxu0
      %v964 = vadd.f32 %v620, %v963
      %v965 = vpop.f32.mrf.mxu0
      %966 = vmatprep.mubr.bf16.mxu0 0
      %967 = vmatmul.mubr.bf16.gmra.mxu0 %v659
      %v968 = vpop.f32.mrf.mxu0
      %v969 = vadd.f32 %v620, %v968
      %v970 = vpop.f32.mrf.mxu0
      %v971 = vpop.f32.mrf.mxu0
      %v972 = vadd.f32 %v620, %v971
      %v973 = vpop.f32.mrf.mxu0
      %974 = vmatprep.mubr.bf16.mxu0 0
      %975 = vmatmul.mubr.bf16.gmra.mxu0 %v662
      %v976 = vpop.f32.mrf.mxu0
      %v977 = vadd.f32 %v620, %v976
      %v978 = vpop.f32.mrf.mxu0
      %v979 = vpop.f32.mrf.mxu0
      %v980 = vadd.f32 %v620, %v979
      %v981 = vpop.f32.mrf.mxu0
      %982 = vmatprep.mubr.bf16.mxu0 0
      %983 = vmatmul.mubr.bf16.gmra.mxu0 %v665
      %v984 = vpop.f32.mrf.mxu0
      %v985 = vadd.f32 %v620, %v984
      %v986 = vpop.f32.mrf.mxu0
      %v987 = vpop.f32.mrf.mxu0
      %v988 = vadd.f32 %v620, %v987
      %v989 = vpop.f32.mrf.mxu0
      %990 = vmatprep.mubr.bf16.mxu0 0
      %991 = vmatmul.mubr.bf16.gmra.mxu0 %v668
      %v992 = vpop.f32.mrf.mxu0
      %v993 = vadd.f32 %v620, %v992
      %v994 = vpop.f32.mrf.mxu0
      %v995 = vpop.f32.mrf.mxu0
      %v996 = vadd.f32 %v620, %v995
      %v997 = vpop.f32.mrf.mxu0
      %998 = vmatprep.mubr.bf16.mxu0 0
      %999 = vmatmul.mubr.bf16.gmra.mxu0 %v671
      %v1000 = vpop.f32.mrf.mxu0
      %v1001 = vadd.f32 %v620, %v1000
      %v1002 = vpop.f32.mrf.mxu0
      %v1003 = vpop.f32.mrf.mxu0
      %v1004 = vadd.f32 %v620, %v1003
      %v1005 = vpop.f32.mrf.mxu0
      %1006 = vmatprep.mubr.bf16.mxu0 0
      %1007 = vmatmul.mubr.bf16.gmra.mxu0 %v674
      %v1008 = vpop.f32.mrf.mxu0
      %v1009 = vadd.f32 %v620, %v1008
      %v1010 = vpop.f32.mrf.mxu0
      %v1011 = vpop.f32.mrf.mxu0
      %v1012 = vadd.f32 %v620, %v1011
      %v1013 = vpop.f32.mrf.mxu0
      %1014 = vdwg.mxu0
      %v1015 = vpack.c.bf16 %v727, %v727
      %v1016 = vpack.c.bf16 %v731, %v731
      %v1017 = vpack.c.bf16 %v737, %v737
      %v1018 = vpack.c.bf16 %v741, %v741
      %v1019 = vpack.c.bf16 %v747, %v747
      %v1020 = vpack.c.bf16 %v751, %v751
      %v1021 = vpack.c.bf16 %v757, %v757
      %v1022 = vpack.c.bf16 %v761, %v761
      %v1023 = vpack.c.bf16 %v767, %v767
      %v1024 = vpack.c.bf16 %v771, %v771
      %v1025 = vpack.c.bf16 %v777, %v777
      %v1026 = vpack.c.bf16 %v781, %v781
      %v1027 = vpack.c.bf16 %v787, %v787
      %v1028 = vpack.c.bf16 %v791, %v791
      %v1029 = vpack.c.bf16 %v797, %v797
      %v1030 = vpack.c.bf16 %v801, %v801
      %v1031 = vpack.c.bf16 %v729, %v729
      %v1032 = vpack.c.bf16 %v733, %v733
      %v1033 = vpack.c.bf16 %v739, %v739
      %v1034 = vpack.c.bf16 %v743, %v743
      %v1035 = vpack.c.bf16 %v749, %v749
      %v1036 = vpack.c.bf16 %v753, %v753
      %v1037 = vpack.c.bf16 %v759, %v759
      %v1038 = vpack.c.bf16 %v763, %v763
      %v1039 = vpack.c.bf16 %v769, %v769
      %v1040 = vpack.c.bf16 %v773, %v773
      %v1041 = vpack.c.bf16 %v779, %v779
      %v1042 = vpack.c.bf16 %v783, %v783
      %v1043 = vpack.c.bf16 %v789, %v789
      %v1044 = vpack.c.bf16 %v793, %v793
      %v1045 = vpack.c.bf16 %v799, %v799
      %v1046 = vpack.c.bf16 %v803, %v803
      %1047 = vmatprep.subr.bf16.mxu0 0
      %1048 = vmatpush1.bf16.xpose.msra.mxu0 0
      %1049 = vmatprep.subr.bf16.mxu0 0
      %1050 = vmatpush1.bf16.xpose.msra.mxu0 0
      %1051 = vmatprep.subr.bf16.mxu0 0
      %1052 = vmatpush1.bf16.xpose.msra.mxu0 0
      %1053 = vmatprep.subr.bf16.mxu0 0
      %1054 = vmatpush1.bf16.xpose.msra.mxu0 0
      %1055 = vmatprep.subr.bf16.mxu0 0
      %1056 = vmatpush1.bf16.xpose.msra.mxu0 0
      %1057 = vmatprep.subr.bf16.mxu0 0
      %1058 = vmatpush1.bf16.xpose.msra.mxu0 0
      %1059 = vmatprep.subr.bf16.mxu0 0
      %1060 = vmatpush1.bf16.xpose.msra.mxu0 0
      %1061 = vmatprep.subr.bf16.mxu0 0
      %1062 = vmatpush1.bf16.xpose.msra.mxu0 %v1031
      %1063 = vmatprep.subr.bf16.mxu0 0
      %1064 = vmatpush2.bf16.xpose.msra.mxu0 0
      %1065 = vmatprep.subr.bf16.mxu0 0
      %1066 = vmatpush2.bf16.xpose.msra.mxu0 0
      %1067 = vmatprep.subr.bf16.mxu0 0
      %1068 = vmatpush2.bf16.xpose.msra.mxu0 0
      %1069 = vmatprep.subr.bf16.mxu0 0
      %1070 = vmatpush2.bf16.xpose.msra.mxu0 0
      %1071 = vmatprep.subr.bf16.mxu0 0
      %1072 = vmatpush2.bf16.xpose.msra.mxu0 0
      %1073 = vmatprep.subr.bf16.mxu0 0
      %1074 = vmatpush2.bf16.xpose.msra.mxu0 0
      %1075 = vmatprep.subr.bf16.mxu0 0
      %1076 = vmatpush2.bf16.xpose.msra.mxu0 0
      %1077 = vmatprep.subr.bf16.mxu0 0
      %1078 = vmatpush2.bf16.xpose.msra.mxu0 0
      %1079 = vmatprep.mubr.bf16.mxu0 0
      %1080 = vmatmul.mubr.bf16.gmra.mxu0 %v1015
      %v1081 = vpop.f32.mrf.mxu0
      %v1082 = vadd.f32 0.0, %v1081
      %v1083 = vpop.f32.mrf.mxu0
      %v1084 = vpop.f32.mrf.mxu0
      %v1085 = vpop.f32.mrf.mxu0
      %1086 = vdwg.mxu0
      %1087 = vmatprep.subr.bf16.mxu0 0
      %1088 = vmatpush1.bf16.xpose.msra.mxu0 0
      %1089 = vmatprep.subr.bf16.mxu0 0
      %1090 = vmatpush1.bf16.xpose.msra.mxu0 0
      %1091 = vmatprep.subr.bf16.mxu0 0
      %1092 = vmatpush1.bf16.xpose.msra.mxu0 0
      %1093 = vmatprep.subr.bf16.mxu0 0
      %1094 = vmatpush1.bf16.xpose.msra.mxu0 0
      %1095 = vmatprep.subr.bf16.mxu0 0
      %1096 = vmatpush1.bf16.xpose.msra.mxu0 0
      %1097 = vmatprep.subr.bf16.mxu0 0
      %1098 = vmatpush1.bf16.xpose.msra.mxu0 0
      %1099 = vmatprep.subr.bf16.mxu0 0
      %1100 = vmatpush1.bf16.xpose.msra.mxu0 0
      %1101 = vmatprep.subr.bf16.mxu0 0
      %1102 = vmatpush1.bf16.xpose.msra.mxu0 %v1032
      %1103 = vmatprep.subr.bf16.mxu0 0
      %1104 = vmatpush2.bf16.xpose.msra.mxu0 0
      %1105 = vmatprep.subr.bf16.mxu0 0
      %1106 = vmatpush2.bf16.xpose.msra.mxu0 0
      %1107 = vmatprep.subr.bf16.mxu0 0
      %1108 = vmatpush2.bf16.xpose.msra.mxu0 0
      %1109 = vmatprep.subr.bf16.mxu0 0
      %1110 = vmatpush2.bf16.xpose.msra.mxu0 0
      %1111 = vmatprep.subr.bf16.mxu0 0
      %1112 = vmatpush2.bf16.xpose.msra.mxu0 0
      %1113 = vmatprep.subr.bf16.mxu0 0
      %1114 = vmatpush2.bf16.xpose.msra.mxu0 0
      %1115 = vmatprep.subr.bf16.mxu0 0
      %1116 = vmatpush2.bf16.xpose.msra.mxu0 0
      %1117 = vmatprep.subr.bf16.mxu0 0
      %1118 = vmatpush2.bf16.xpose.msra.mxu0 0
      %1119 = vmatprep.mubr.bf16.mxu0 0
      %1120 = vmatmul.mubr.bf16.gmra.mxu0 %v1016
      %v1121 = vpop.f32.mrf.mxu0
      %v1122 = vadd.f32 0.0, %v1121
      %v1123 = vpop.f32.mrf.mxu0
      %v1124 = vpop.f32.mrf.mxu0
      %v1125 = vpop.f32.mrf.mxu0
      %1126 = vdwg.mxu0
      %1127 = vmatprep.subr.bf16.mxu0 0
      %1128 = vmatpush1.bf16.xpose.msra.mxu0 0
      %1129 = vmatprep.subr.bf16.mxu0 0
      %1130 = vmatpush1.bf16.xpose.msra.mxu0 0
      %1131 = vmatprep.subr.bf16.mxu0 0
      %1132 = vmatpush1.bf16.xpose.msra.mxu0 0
      %1133 = vmatprep.subr.bf16.mxu0 0
      %1134 = vmatpush1.bf16.xpose.msra.mxu0 0
      %1135 = vmatprep.subr.bf16.mxu0 0
      %1136 = vmatpush1.bf16.xpose.msra.mxu0 0
      %1137 = vmatprep.subr.bf16.mxu0 0
      %1138 = vmatpush1.bf16.xpose.msra.mxu0 0
      %1139 = vmatprep.subr.bf16.mxu0 0
      %1140 = vmatpush1.bf16.xpose.msra.mxu0 0
      %1141 = vmatprep.subr.bf16.mxu0 0
      %1142 = vmatpush1.bf16.xpose.msra.mxu0 %v1033
      %1143 = vmatprep.subr.bf16.mxu0 0
      %1144 = vmatpush2.bf16.xpose.msra.mxu0 0
      %1145 = vmatprep.subr.bf16.mxu0 0
      %1146 = vmatpush2.bf16.xpose.msra.mxu0 0
      %1147 = vmatprep.subr.bf16.mxu0 0
      %1148 = vmatpush2.bf16.xpose.msra.mxu0 0
      %1149 = vmatprep.subr.bf16.mxu0 0
      %1150 = vmatpush2.bf16.xpose.msra.mxu0 0
      %1151 = vmatprep.subr.bf16.mxu0 0
      %1152 = vmatpush2.bf16.xpose.msra.mxu0 0
      %1153 = vmatprep.subr.bf16.mxu0 0
      %1154 = vmatpush2.bf16.xpose.msra.mxu0 0
      %1155 = vmatprep.subr.bf16.mxu0 0
      %1156 = vmatpush2.bf16.xpose.msra.mxu0 0
      %1157 = vmatprep.subr.bf16.mxu0 0
      %1158 = vmatpush2.bf16.xpose.msra.mxu0 0
      %1159 = vmatprep.mubr.bf16.mxu0 0
      %1160 = vmatmul.mubr.bf16.gmra.mxu0 %v1017
      %v1161 = vpop.f32.mrf.mxu0
      %v1162 = vadd.f32 0.0, %v1161
      %v1163 = vpop.f32.mrf.mxu0
      %v1164 = vpop.f32.mrf.mxu0
      %v1165 = vpop.f32.mrf.mxu0
      %1166 = vdwg.mxu0
      %1167 = vmatprep.subr.bf16.mxu0 0
      %1168 = vmatpush1.bf16.xpose.msra.mxu0 0
      %1169 = vmatprep.subr.bf16.mxu0 0
      %1170 = vmatpush1.bf16.xpose.msra.mxu0 0
      %1171 = vmatprep.subr.bf16.mxu0 0
      %1172 = vmatpush1.bf16.xpose.msra.mxu0 0
      %1173 = vmatprep.subr.bf16.mxu0 0
      %1174 = vmatpush1.bf16.xpose.msra.mxu0 0
      %1175 = vmatprep.subr.bf16.mxu0 0
      %1176 = vmatpush1.bf16.xpose.msra.mxu0 0
      %1177 = vmatprep.subr.bf16.mxu0 0
      %1178 = vmatpush1.bf16.xpose.msra.mxu0 0
      %1179 = vmatprep.subr.bf16.mxu0 0
      %1180 = vmatpush1.bf16.xpose.msra.mxu0 0
      %1181 = vmatprep.subr.bf16.mxu0 0
      %1182 = vmatpush1.bf16.xpose.msra.mxu0 %v1034
      %1183 = vmatprep.subr.bf16.mxu0 0
      %1184 = vmatpush2.bf16.xpose.msra.mxu0 0
      %1185 = vmatprep.subr.bf16.mxu0 0
      %1186 = vmatpush2.bf16.xpose.msra.mxu0 0
      %1187 = vmatprep.subr.bf16.mxu0 0
      %1188 = vmatpush2.bf16.xpose.msra.mxu0 0
      %1189 = vmatprep.subr.bf16.mxu0 0
      %1190 = vmatpush2.bf16.xpose.msra.mxu0 0
      %1191 = vmatprep.subr.bf16.mxu0 0
      %1192 = vmatpush2.bf16.xpose.msra.mxu0 0
      %1193 = vmatprep.subr.bf16.mxu0 0
      %1194 = vmatpush2.bf16.xpose.msra.mxu0 0
      %1195 = vmatprep.subr.bf16.mxu0 0
      %1196 = vmatpush2.bf16.xpose.msra.mxu0 0
      %1197 = vmatprep.subr.bf16.mxu0 0
      %1198 = vmatpush2.bf16.xpose.msra.mxu0 0
      %1199 = vmatprep.mubr.bf16.mxu0 0
      %1200 = vmatmul.mubr.bf16.gmra.mxu0 %v1018
      %v1201 = vpop.f32.mrf.mxu0
      %v1202 = vadd.f32 0.0, %v1201
      %v1203 = vpop.f32.mrf.mxu0
      %v1204 = vpop.f32.mrf.mxu0
      %v1205 = vpop.f32.mrf.mxu0
      %1206 = vdwg.mxu0
      %1207 = vmatprep.subr.bf16.mxu0 0
      %1208 = vmatpush1.bf16.xpose.msra.mxu0 0
      %1209 = vmatprep.subr.bf16.mxu0 0
      %1210 = vmatpush1.bf16.xpose.msra.mxu0 0
      %1211 = vmatprep.subr.bf16.mxu0 0
      %1212 = vmatpush1.bf16.xpose.msra.mxu0 0
      %1213 = vmatprep.subr.bf16.mxu0 0
      %1214 = vmatpush1.bf16.xpose.msra.mxu0 0
      %1215 = vmatprep.subr.bf16.mxu0 0
      %1216 = vmatpush1.bf16.xpose.msra.mxu0 0
      %1217 = vmatprep.subr.bf16.mxu0 0
      %1218 = vmatpush1.bf16.xpose.msra.mxu0 0
      %1219 = vmatprep.subr.bf16.mxu0 0
      %1220 = vmatpush1.bf16.xpose.msra.mxu0 0
      %1221 = vmatprep.subr.bf16.mxu0 0
      %1222 = vmatpush1.bf16.xpose.msra.mxu0 %v1035
      %1223 = vmatprep.subr.bf16.mxu0 0
      %1224 = vmatpush2.bf16.xpose.msra.mxu0 0
      %1225 = vmatprep.subr.bf16.mxu0 0
      %1226 = vmatpush2.bf16.xpose.msra.mxu0 0
      %1227 = vmatprep.subr.bf16.mxu0 0
      %1228 = vmatpush2.bf16.xpose.msra.mxu0 0
      %1229 = vmatprep.subr.bf16.mxu0 0
      %1230 = vmatpush2.bf16.xpose.msra.mxu0 0
      %1231 = vmatprep.subr.bf16.mxu0 0
      %1232 = vmatpush2.bf16.xpose.msra.mxu0 0
      %1233 = vmatprep.subr.bf16.mxu0 0
      %1234 = vmatpush2.bf16.xpose.msra.mxu0 0
      %1235 = vmatprep.subr.bf16.mxu0 0
      %1236 = vmatpush2.bf16.xpose.msra.mxu0 0
      %1237 = vmatprep.subr.bf16.mxu0 0
      %1238 = vmatpush2.bf16.xpose.msra.mxu0 0
      %1239 = vmatprep.mubr.bf16.mxu0 0
      %1240 = vmatmul.mubr.bf16.gmra.mxu0 %v1019
      %v1241 = vpop.f32.mrf.mxu0
      %v1242 = vadd.f32 0.0, %v1241
      %v1243 = vpop.f32.mrf.mxu0
      %v1244 = vpop.f32.mrf.mxu0
      %v1245 = vpop.f32.mrf.mxu0
      %1246 = vdwg.mxu0
      %1247 = vmatprep.subr.bf16.mxu0 0
      %1248 = vmatpush1.bf16.xpose.msra.mxu0 0
      %1249 = vmatprep.subr.bf16.mxu0 0
      %1250 = vmatpush1.bf16.xpose.msra.mxu0 0
      %1251 = vmatprep.subr.bf16.mxu0 0
      %1252 = vmatpush1.bf16.xpose.msra.mxu0 0
      %1253 = vmatprep.subr.bf16.mxu0 0
      %1254 = vmatpush1.bf16.xpose.msra.mxu0 0
      %1255 = vmatprep.subr.bf16.mxu0 0
      %1256 = vmatpush1.bf16.xpose.msra.mxu0 0
      %1257 = vmatprep.subr.bf16.mxu0 0
      %1258 = vmatpush1.bf16.xpose.msra.mxu0 0
      %1259 = vmatprep.subr.bf16.mxu0 0
      %1260 = vmatpush1.bf16.xpose.msra.mxu0 0
      %1261 = vmatprep.subr.bf16.mxu0 0
      %1262 = vmatpush1.bf16.xpose.msra.mxu0 %v1036
      %1263 = vmatprep.subr.bf16.mxu0 0
      %1264 = vmatpush2.bf16.xpose.msra.mxu0 0
      %1265 = vmatprep.subr.bf16.mxu0 0
      %1266 = vmatpush2.bf16.xpose.msra.mxu0 0
      %1267 = vmatprep.subr.bf16.mxu0 0
      %1268 = vmatpush2.bf16.xpose.msra.mxu0 0
      %1269 = vmatprep.subr.bf16.mxu0 0
      %1270 = vmatpush2.bf16.xpose.msra.mxu0 0
      %1271 = vmatprep.subr.bf16.mxu0 0
      %1272 = vmatpush2.bf16.xpose.msra.mxu0 0
      %1273 = vmatprep.subr.bf16.mxu0 0
      %1274 = vmatpush2.bf16.xpose.msra.mxu0 0
      %1275 = vmatprep.subr.bf16.mxu0 0
      %1276 = vmatpush2.bf16.xpose.msra.mxu0 0
      %1277 = vmatprep.subr.bf16.mxu0 0
      %1278 = vmatpush2.bf16.xpose.msra.mxu0 0
      %1279 = vmatprep.mubr.bf16.mxu0 0
      %1280 = vmatmul.mubr.bf16.gmra.mxu0 %v1020
      %v1281 = vpop.f32.mrf.mxu0
      %v1282 = vadd.f32 0.0, %v1281
      %v1283 = vpop.f32.mrf.mxu0
      %v1284 = vpop.f32.mrf.mxu0
      %v1285 = vpop.f32.mrf.mxu0
      %1286 = vdwg.mxu0
      %1287 = vmatprep.subr.bf16.mxu0 0
      %1288 = vmatpush1.bf16.xpose.msra.mxu0 0
      %1289 = vmatprep.subr.bf16.mxu0 0
      %1290 = vmatpush1.bf16.xpose.msra.mxu0 0
      %1291 = vmatprep.subr.bf16.mxu0 0
      %1292 = vmatpush1.bf16.xpose.msra.mxu0 0
      %1293 = vmatprep.subr.bf16.mxu0 0
      %1294 = vmatpush1.bf16.xpose.msra.mxu0 0
      %1295 = vmatprep.subr.bf16.mxu0 0
      %1296 = vmatpush1.bf16.xpose.msra.mxu0 0
      %1297 = vmatprep.subr.bf16.mxu0 0
      %1298 = vmatpush1.bf16.xpose.msra.mxu0 0
      %1299 = vmatprep.subr.bf16.mxu0 0
      %1300 = vmatpush1.bf16.xpose.msra.mxu0 0
      %1301 = vmatprep.subr.bf16.mxu0 0
      %1302 = vmatpush1.bf16.xpose.msra.mxu0 %v1037
      %1303 = vmatprep.subr.bf16.mxu0 0
      %1304 = vmatpush2.bf16.xpose.msra.mxu0 0
      %1305 = vmatprep.subr.bf16.mxu0 0
      %1306 = vmatpush2.bf16.xpose.msra.mxu0 0
      %1307 = vmatprep.subr.bf16.mxu0 0
      %1308 = vmatpush2.bf16.xpose.msra.mxu0 0
      %1309 = vmatprep.subr.bf16.mxu0 0
      %1310 = vmatpush2.bf16.xpose.msra.mxu0 0
      %1311 = vmatprep.subr.bf16.mxu0 0
      %1312 = vmatpush2.bf16.xpose.msra.mxu0 0
      %1313 = vmatprep.subr.bf16.mxu0 0
      %1314 = vmatpush2.bf16.xpose.msra.mxu0 0
      %1315 = vmatprep.subr.bf16.mxu0 0
      %1316 = vmatpush2.bf16.xpose.msra.mxu0 0
      %1317 = vmatprep.subr.bf16.mxu0 0
      %1318 = vmatpush2.bf16.xpose.msra.mxu0 0
      %1319 = vmatprep.mubr.bf16.mxu0 0
      %1320 = vmatmul.mubr.bf16.gmra.mxu0 %v1021
      %v1321 = vpop.f32.mrf.mxu0
      %v1322 = vadd.f32 0.0, %v1321
      %v1323 = vpop.f32.mrf.mxu0
      %v1324 = vpop.f32.mrf.mxu0
      %v1325 = vpop.f32.mrf.mxu0
      %1326 = vdwg.mxu0
      %1327 = vmatprep.subr.bf16.mxu0 0
      %1328 = vmatpush1.bf16.xpose.msra.mxu0 0
      %1329 = vmatprep.subr.bf16.mxu0 0
      %1330 = vmatpush1.bf16.xpose.msra.mxu0 0
      %1331 = vmatprep.subr.bf16.mxu0 0
      %1332 = vmatpush1.bf16.xpose.msra.mxu0 0
      %1333 = vmatprep.subr.bf16.mxu0 0
      %1334 = vmatpush1.bf16.xpose.msra.mxu0 0
      %1335 = vmatprep.subr.bf16.mxu0 0
      %1336 = vmatpush1.bf16.xpose.msra.mxu0 0
      %1337 = vmatprep.subr.bf16.mxu0 0
      %1338 = vmatpush1.bf16.xpose.msra.mxu0 0
      %1339 = vmatprep.subr.bf16.mxu0 0
      %1340 = vmatpush1.bf16.xpose.msra.mxu0 0
      %1341 = vmatprep.subr.bf16.mxu0 0
      %1342 = vmatpush1.bf16.xpose.msra.mxu0 %v1038
      %1343 = vmatprep.subr.bf16.mxu0 0
      %1344 = vmatpush2.bf16.xpose.msra.mxu0 0
      %1345 = vmatprep.subr.bf16.mxu0 0
      %1346 = vmatpush2.bf16.xpose.msra.mxu0 0
      %1347 = vmatprep.subr.bf16.mxu0 0
      %1348 = vmatpush2.bf16.xpose.msra.mxu0 0
      %1349 = vmatprep.subr.bf16.mxu0 0
      %1350 = vmatpush2.bf16.xpose.msra.mxu0 0
      %1351 = vmatprep.subr.bf16.mxu0 0
      %1352 = vmatpush2.bf16.xpose.msra.mxu0 0
      %1353 = vmatprep.subr.bf16.mxu0 0
      %1354 = vmatpush2.bf16.xpose.msra.mxu0 0
      %1355 = vmatprep.subr.bf16.mxu0 0
      %1356 = vmatpush2.bf16.xpose.msra.mxu0 0
      %1357 = vmatprep.subr.bf16.mxu0 0
      %1358 = vmatpush2.bf16.xpose.msra.mxu0 0
      %1359 = vmatprep.mubr.bf16.mxu0 0
      %1360 = vmatmul.mubr.bf16.gmra.mxu0 %v1022
      %v1361 = vpop.f32.mrf.mxu0
      %v1362 = vadd.f32 0.0, %v1361
      %v1363 = vpop.f32.mrf.mxu0
      %v1364 = vpop.f32.mrf.mxu0
      %v1365 = vpop.f32.mrf.mxu0
      %1366 = vdwg.mxu0
      %1367 = vmatprep.subr.bf16.mxu0 0
      %1368 = vmatpush1.bf16.xpose.msra.mxu0 0
      %1369 = vmatprep.subr.bf16.mxu0 0
      %1370 = vmatpush1.bf16.xpose.msra.mxu0 0
      %1371 = vmatprep.subr.bf16.mxu0 0
      %1372 = vmatpush1.bf16.xpose.msra.mxu0 0
      %1373 = vmatprep.subr.bf16.mxu0 0
      %1374 = vmatpush1.bf16.xpose.msra.mxu0 0
      %1375 = vmatprep.subr.bf16.mxu0 0
      %1376 = vmatpush1.bf16.xpose.msra.mxu0 0
      %1377 = vmatprep.subr.bf16.mxu0 0
      %1378 = vmatpush1.bf16.xpose.msra.mxu0 0
      %1379 = vmatprep.subr.bf16.mxu0 0
      %1380 = vmatpush1.bf16.xpose.msra.mxu0 0
      %1381 = vmatprep.subr.bf16.mxu0 0
      %1382 = vmatpush1.bf16.xpose.msra.mxu0 %v1039
      %1383 = vmatprep.subr.bf16.mxu0 0
      %1384 = vmatpush2.bf16.xpose.msra.mxu0 0
      %1385 = vmatprep.subr.bf16.mxu0 0
      %1386 = vmatpush2.bf16.xpose.msra.mxu0 0
      %1387 = vmatprep.subr.bf16.mxu0 0
      %1388 = vmatpush2.bf16.xpose.msra.mxu0 0
      %1389 = vmatprep.subr.bf16.mxu0 0
      %1390 = vmatpush2.bf16.xpose.msra.mxu0 0
      %1391 = vmatprep.subr.bf16.mxu0 0
      %1392 = vmatpush2.bf16.xpose.msra.mxu0 0
      %1393 = vmatprep.subr.bf16.mxu0 0
      %1394 = vmatpush2.bf16.xpose.msra.mxu0 0
      %1395 = vmatprep.subr.bf16.mxu0 0
      %1396 = vmatpush2.bf16.xpose.msra.mxu0 0
      %1397 = vmatprep.subr.bf16.mxu0 0
      %1398 = vmatpush2.bf16.xpose.msra.mxu0 0
      %1399 = vmatprep.mubr.bf16.mxu0 0
      %1400 = vmatmul.mubr.bf16.gmra.mxu0 %v1023
      %v1401 = vpop.f32.mrf.mxu0
      %v1402 = vadd.f32 0.0, %v1401
      %v1403 = vpop.f32.mrf.mxu0
      %v1404 = vpop.f32.mrf.mxu0
      %v1405 = vpop.f32.mrf.mxu0
      %1406 = vdwg.mxu0
      %1407 = vmatprep.subr.bf16.mxu0 0
      %1408 = vmatpush1.bf16.xpose.msra.mxu0 0
      %1409 = vmatprep.subr.bf16.mxu0 0
      %1410 = vmatpush1.bf16.xpose.msra.mxu0 0
      %1411 = vmatprep.subr.bf16.mxu0 0
      %1412 = vmatpush1.bf16.xpose.msra.mxu0 0
      %1413 = vmatprep.subr.bf16.mxu0 0
      %1414 = vmatpush1.bf16.xpose.msra.mxu0 0
      %1415 = vmatprep.subr.bf16.mxu0 0
      %1416 = vmatpush1.bf16.xpose.msra.mxu0 0
      %1417 = vmatprep.subr.bf16.mxu0 0
      %1418 = vmatpush1.bf16.xpose.msra.mxu0 0
      %1419 = vmatprep.subr.bf16.mxu0 0
      %1420 = vmatpush1.bf16.xpose.msra.mxu0 0
      %1421 = vmatprep.subr.bf16.mxu0 0
      %1422 = vmatpush1.bf16.xpose.msra.mxu0 %v1040
      %1423 = vmatprep.subr.bf16.mxu0 0
      %1424 = vmatpush2.bf16.xpose.msra.mxu0 0
      %1425 = vmatprep.subr.bf16.mxu0 0
      %1426 = vmatpush2.bf16.xpose.msra.mxu0 0
      %1427 = vmatprep.subr.bf16.mxu0 0
      %1428 = vmatpush2.bf16.xpose.msra.mxu0 0
      %1429 = vmatprep.subr.bf16.mxu0 0
      %1430 = vmatpush2.bf16.xpose.msra.mxu0 0
      %1431 = vmatprep.subr.bf16.mxu0 0
      %1432 = vmatpush2.bf16.xpose.msra.mxu0 0
      %1433 = vmatprep.subr.bf16.mxu0 0
      %1434 = vmatpush2.bf16.xpose.msra.mxu0 0
      %1435 = vmatprep.subr.bf16.mxu0 0
      %1436 = vmatpush2.bf16.xpose.msra.mxu0 0
      %1437 = vmatprep.subr.bf16.mxu0 0
      %1438 = vmatpush2.bf16.xpose.msra.mxu0 0
      %1439 = vmatprep.mubr.bf16.mxu0 0
      %1440 = vmatmul.mubr.bf16.gmra.mxu0 %v1024
      %v1441 = vpop.f32.mrf.mxu0
      %v1442 = vadd.f32 0.0, %v1441
      %v1443 = vpop.f32.mrf.mxu0
      %v1444 = vpop.f32.mrf.mxu0
      %v1445 = vpop.f32.mrf.mxu0
      %1446 = vdwg.mxu0
      %1447 = vmatprep.subr.bf16.mxu0 0
      %1448 = vmatpush1.bf16.xpose.msra.mxu0 0
      %1449 = vmatprep.subr.bf16.mxu0 0
      %1450 = vmatpush1.bf16.xpose.msra.mxu0 0
      %1451 = vmatprep.subr.bf16.mxu0 0
      %1452 = vmatpush1.bf16.xpose.msra.mxu0 0
      %1453 = vmatprep.subr.bf16.mxu0 0
      %1454 = vmatpush1.bf16.xpose.msra.mxu0 0
      %1455 = vmatprep.subr.bf16.mxu0 0
      %1456 = vmatpush1.bf16.xpose.msra.mxu0 0
      %1457 = vmatprep.subr.bf16.mxu0 0
      %1458 = vmatpush1.bf16.xpose.msra.mxu0 0
      %1459 = vmatprep.subr.bf16.mxu0 0
      %1460 = vmatpush1.bf16.xpose.msra.mxu0 0
      %1461 = vmatprep.subr.bf16.mxu0 0
      %1462 = vmatpush1.bf16.xpose.msra.mxu0 %v1041
      %1463 = vmatprep.subr.bf16.mxu0 0
      %1464 = vmatpush2.bf16.xpose.msra.mxu0 0
      %1465 = vmatprep.subr.bf16.mxu0 0
      %1466 = vmatpush2.bf16.xpose.msra.mxu0 0
      %1467 = vmatprep.subr.bf16.mxu0 0
      %1468 = vmatpush2.bf16.xpose.msra.mxu0 0
      %1469 = vmatprep.subr.bf16.mxu0 0
      %1470 = vmatpush2.bf16.xpose.msra.mxu0 0
      %1471 = vmatprep.subr.bf16.mxu0 0
      %1472 = vmatpush2.bf16.xpose.msra.mxu0 0
      %1473 = vmatprep.subr.bf16.mxu0 0
      %1474 = vmatpush2.bf16.xpose.msra.mxu0 0
      %1475 = vmatprep.subr.bf16.mxu0 0
      %1476 = vmatpush2.bf16.xpose.msra.mxu0 0
      %1477 = vmatprep.subr.bf16.mxu0 0
      %1478 = vmatpush2.bf16.xpose.msra.mxu0 0
      %1479 = vmatprep.mubr.bf16.mxu0 0
      %1480 = vmatmul.mubr.bf16.gmra.mxu0 %v1025
      %v1481 = vpop.f32.mrf.mxu0
      %v1482 = vadd.f32 0.0, %v1481
      %v1483 = vpop.f32.mrf.mxu0
      %v1484 = vpop.f32.mrf.mxu0
      %v1485 = vpop.f32.mrf.mxu0
      %1486 = vdwg.mxu0
      %1487 = vmatprep.subr.bf16.mxu0 0
      %1488 = vmatpush1.bf16.xpose.msra.mxu0 0
      %1489 = vmatprep.subr.bf16.mxu0 0
      %1490 = vmatpush1.bf16.xpose.msra.mxu0 0
      %1491 = vmatprep.subr.bf16.mxu0 0
      %1492 = vmatpush1.bf16.xpose.msra.mxu0 0
      %1493 = vmatprep.subr.bf16.mxu0 0
      %1494 = vmatpush1.bf16.xpose.msra.mxu0 0
      %1495 = vmatprep.subr.bf16.mxu0 0
      %1496 = vmatpush1.bf16.xpose.msra.mxu0 0
      %1497 = vmatprep.subr.bf16.mxu0 0
      %1498 = vmatpush1.bf16.xpose.msra.mxu0 0
      %1499 = vmatprep.subr.bf16.mxu0 0
      %1500 = vmatpush1.bf16.xpose.msra.mxu0 0
      %1501 = vmatprep.subr.bf16.mxu0 0
      %1502 = vmatpush1.bf16.xpose.msra.mxu0 %v1042
      %1503 = vmatprep.subr.bf16.mxu0 0
      %1504 = vmatpush2.bf16.xpose.msra.mxu0 0
      %1505 = vmatprep.subr.bf16.mxu0 0
      %1506 = vmatpush2.bf16.xpose.msra.mxu0 0
      %1507 = vmatprep.subr.bf16.mxu0 0
      %1508 = vmatpush2.bf16.xpose.msra.mxu0 0
      %1509 = vmatprep.subr.bf16.mxu0 0
      %1510 = vmatpush2.bf16.xpose.msra.mxu0 0
      %1511 = vmatprep.subr.bf16.mxu0 0
      %1512 = vmatpush2.bf16.xpose.msra.mxu0 0
      %1513 = vmatprep.subr.bf16.mxu0 0
      %1514 = vmatpush2.bf16.xpose.msra.mxu0 0
      %1515 = vmatprep.subr.bf16.mxu0 0
      %1516 = vmatpush2.bf16.xpose.msra.mxu0 0
      %1517 = vmatprep.subr.bf16.mxu0 0
      %1518 = vmatpush2.bf16.xpose.msra.mxu0 0
      %1519 = vmatprep.mubr.bf16.mxu0 0
      %1520 = vmatmul.mubr.bf16.gmra.mxu0 %v1026
      %v1521 = vpop.f32.mrf.mxu0
      %v1522 = vadd.f32 0.0, %v1521
      %v1523 = vpop.f32.mrf.mxu0
      %v1524 = vpop.f32.mrf.mxu0
      %v1525 = vpop.f32.mrf.mxu0
      %1526 = vdwg.mxu0
      %1527 = vmatprep.subr.bf16.mxu0 0
      %1528 = vmatpush1.bf16.xpose.msra.mxu0 0
      %1529 = vmatprep.subr.bf16.mxu0 0
      %1530 = vmatpush1.bf16.xpose.msra.mxu0 0
      %1531 = vmatprep.subr.bf16.mxu0 0
      %1532 = vmatpush1.bf16.xpose.msra.mxu0 0
      %1533 = vmatprep.subr.bf16.mxu0 0
      %1534 = vmatpush1.bf16.xpose.msra.mxu0 0
      %1535 = vmatprep.subr.bf16.mxu0 0
      %1536 = vmatpush1.bf16.xpose.msra.mxu0 0
      %1537 = vmatprep.subr.bf16.mxu0 0
      %1538 = vmatpush1.bf16.xpose.msra.mxu0 0
      %1539 = vmatprep.subr.bf16.mxu0 0
      %1540 = vmatpush1.bf16.xpose.msra.mxu0 0
      %1541 = vmatprep.subr.bf16.mxu0 0
      %1542 = vmatpush1.bf16.xpose.msra.mxu0 %v1043
      %1543 = vmatprep.subr.bf16.mxu0 0
      %1544 = vmatpush2.bf16.xpose.msra.mxu0 0
      %1545 = vmatprep.subr.bf16.mxu0 0
      %1546 = vmatpush2.bf16.xpose.msra.mxu0 0
      %1547 = vmatprep.subr.bf16.mxu0 0
      %1548 = vmatpush2.bf16.xpose.msra.mxu0 0
      %1549 = vmatprep.subr.bf16.mxu0 0
      %1550 = vmatpush2.bf16.xpose.msra.mxu0 0
      %1551 = vmatprep.subr.bf16.mxu0 0
      %1552 = vmatpush2.bf16.xpose.msra.mxu0 0
      %1553 = vmatprep.subr.bf16.mxu0 0
      %1554 = vmatpush2.bf16.xpose.msra.mxu0 0
      %1555 = vmatprep.subr.bf16.mxu0 0
      %1556 = vmatpush2.bf16.xpose.msra.mxu0 0
      %1557 = vmatprep.subr.bf16.mxu0 0
      %1558 = vmatpush2.bf16.xpose.msra.mxu0 0
      %1559 = vmatprep.mubr.bf16.mxu0 0
      %1560 = vmatmul.mubr.bf16.gmra.mxu0 %v1027
      %v1561 = vpop.f32.mrf.mxu0
      %v1562 = vadd.f32 0.0, %v1561
      %v1563 = vpop.f32.mrf.mxu0
      %v1564 = vpop.f32.mrf.mxu0
      %v1565 = vpop.f32.mrf.mxu0
      %1566 = vdwg.mxu0
      %1567 = vmatprep.subr.bf16.mxu0 0
      %1568 = vmatpush1.bf16.xpose.msra.mxu0 0
      %1569 = vmatprep.subr.bf16.mxu0 0
      %1570 = vmatpush1.bf16.xpose.msra.mxu0 0
      %1571 = vmatprep.subr.bf16.mxu0 0
      %1572 = vmatpush1.bf16.xpose.msra.mxu0 0
      %1573 = vmatprep.subr.bf16.mxu0 0
      %1574 = vmatpush1.bf16.xpose.msra.mxu0 0
      %1575 = vmatprep.subr.bf16.mxu0 0
      %1576 = vmatpush1.bf16.xpose.msra.mxu0 0
      %1577 = vmatprep.subr.bf16.mxu0 0
      %1578 = vmatpush1.bf16.xpose.msra.mxu0 0
      %1579 = vmatprep.subr.bf16.mxu0 0
      %1580 = vmatpush1.bf16.xpose.msra.mxu0 0
      %1581 = vmatprep.subr.bf16.mxu0 0
      %1582 = vmatpush1.bf16.xpose.msra.mxu0 %v1044
      %1583 = vmatprep.subr.bf16.mxu0 0
      %1584 = vmatpush2.bf16.xpose.msra.mxu0 0
      %1585 = vmatprep.subr.bf16.mxu0 0
      %1586 = vmatpush2.bf16.xpose.msra.mxu0 0
      %1587 = vmatprep.subr.bf16.mxu0 0
      %1588 = vmatpush2.bf16.xpose.msra.mxu0 0
      %1589 = vmatprep.subr.bf16.mxu0 0
      %1590 = vmatpush2.bf16.xpose.msra.mxu0 0
      %1591 = vmatprep.subr.bf16.mxu0 0
      %1592 = vmatpush2.bf16.xpose.msra.mxu0 0
      %1593 = vmatprep.subr.bf16.mxu0 0
      %1594 = vmatpush2.bf16.xpose.msra.mxu0 0
      %1595 = vmatprep.subr.bf16.mxu0 0
      %1596 = vmatpush2.bf16.xpose.msra.mxu0 0
      %1597 = vmatprep.subr.bf16.mxu0 0
      %1598 = vmatpush2.bf16.xpose.msra.mxu0 0
      %1599 = vmatprep.mubr.bf16.mxu0 0
      %1600 = vmatmul.mubr.bf16.gmra.mxu0 %v1028
      %v1601 = vpop.f32.mrf.mxu0
      %v1602 = vadd.f32 0.0, %v1601
      %v1603 = vpop.f32.mrf.mxu0
      %v1604 = vpop.f32.mrf.mxu0
      %v1605 = vpop.f32.mrf.mxu0
      %1606 = vdwg.mxu0
      %1607 = vmatprep.subr.bf16.mxu0 0
      %1608 = vmatpush1.bf16.xpose.msra.mxu0 0
      %1609 = vmatprep.subr.bf16.mxu0 0
      %1610 = vmatpush1.bf16.xpose.msra.mxu0 0
      %1611 = vmatprep.subr.bf16.mxu0 0
      %1612 = vmatpush1.bf16.xpose.msra.mxu0 0
      %1613 = vmatprep.subr.bf16.mxu0 0
      %1614 = vmatpush1.bf16.xpose.msra.mxu0 0
      %1615 = vmatprep.subr.bf16.mxu0 0
      %1616 = vmatpush1.bf16.xpose.msra.mxu0 0
      %1617 = vmatprep.subr.bf16.mxu0 0
      %1618 = vmatpush1.bf16.xpose.msra.mxu0 0
      %1619 = vmatprep.subr.bf16.mxu0 0
      %1620 = vmatpush1.bf16.xpose.msra.mxu0 0
      %1621 = vmatprep.subr.bf16.mxu0 0
      %1622 = vmatpush1.bf16.xpose.msra.mxu0 %v1045
      %1623 = vmatprep.subr.bf16.mxu0 0
      %1624 = vmatpush2.bf16.xpose.msra.mxu0 0
      %1625 = vmatprep.subr.bf16.mxu0 0
      %1626 = vmatpush2.bf16.xpose.msra.mxu0 0
      %1627 = vmatprep.subr.bf16.mxu0 0
      %1628 = vmatpush2.bf16.xpose.msra.mxu0 0
      %1629 = vmatprep.subr.bf16.mxu0 0
      %1630 = vmatpush2.bf16.xpose.msra.mxu0 0
      %1631 = vmatprep.subr.bf16.mxu0 0
      %1632 = vmatpush2.bf16.xpose.msra.mxu0 0
      %1633 = vmatprep.subr.bf16.mxu0 0
      %1634 = vmatpush2.bf16.xpose.msra.mxu0 0
      %1635 = vmatprep.subr.bf16.mxu0 0
      %1636 = vmatpush2.bf16.xpose.msra.mxu0 0
      %1637 = vmatprep.subr.bf16.mxu0 0
      %1638 = vmatpush2.bf16.xpose.msra.mxu0 0
      %1639 = vmatprep.mubr.bf16.mxu0 0
      %1640 = vmatmul.mubr.bf16.gmra.mxu0 %v1029
      %v1641 = vpop.f32.mrf.mxu0
      %v1642 = vadd.f32 0.0, %v1641
      %v1643 = vpop.f32.mrf.mxu0
      %v1644 = vpop.f32.mrf.mxu0
      %v1645 = vpop.f32.mrf.mxu0
      %1646 = vdwg.mxu0
      %1647 = vmatprep.subr.bf16.mxu0 0
      %1648 = vmatpush1.bf16.xpose.msra.mxu0 0
      %1649 = vmatprep.subr.bf16.mxu0 0
      %1650 = vmatpush1.bf16.xpose.msra.mxu0 0
      %1651 = vmatprep.subr.bf16.mxu0 0
      %1652 = vmatpush1.bf16.xpose.msra.mxu0 0
      %1653 = vmatprep.subr.bf16.mxu0 0
      %1654 = vmatpush1.bf16.xpose.msra.mxu0 0
      %1655 = vmatprep.subr.bf16.mxu0 0
      %1656 = vmatpush1.bf16.xpose.msra.mxu0 0
      %1657 = vmatprep.subr.bf16.mxu0 0
      %1658 = vmatpush1.bf16.xpose.msra.mxu0 0
      %1659 = vmatprep.subr.bf16.mxu0 0
      %1660 = vmatpush1.bf16.xpose.msra.mxu0 0
      %1661 = vmatprep.subr.bf16.mxu0 0
      %1662 = vmatpush1.bf16.xpose.msra.mxu0 %v1046
      %1663 = vmatprep.subr.bf16.mxu0 0
      %1664 = vmatpush2.bf16.xpose.msra.mxu0 0
      %1665 = vmatprep.subr.bf16.mxu0 0
      %1666 = vmatpush2.bf16.xpose.msra.mxu0 0
      %1667 = vmatprep.subr.bf16.mxu0 0
      %1668 = vmatpush2.bf16.xpose.msra.mxu0 0
      %1669 = vmatprep.subr.bf16.mxu0 0
      %1670 = vmatpush2.bf16.xpose.msra.mxu0 0
      %1671 = vmatprep.subr.bf16.mxu0 0
      %1672 = vmatpush2.bf16.xpose.msra.mxu0 0
      %1673 = vmatprep.subr.bf16.mxu0 0
      %1674 = vmatpush2.bf16.xpose.msra.mxu0 0
      %1675 = vmatprep.subr.bf16.mxu0 0
      %1676 = vmatpush2.bf16.xpose.msra.mxu0 0
      %1677 = vmatprep.subr.bf16.mxu0 0
      %1678 = vmatpush2.bf16.xpose.msra.mxu0 0
      %1679 = vmatprep.mubr.bf16.mxu0 0
      %1680 = vmatmul.mubr.bf16.gmra.mxu0 %v1030
      %v1681 = vpop.f32.mrf.mxu0
      %v1682 = vadd.f32 0.0, %v1681
      %v1683 = vpop.f32.mrf.mxu0
      %v1684 = vpop.f32.mrf.mxu0
      %v1685 = vpop.f32.mrf.mxu0
      %1686 = vdwg.mxu0
      %v1687 = vsel %vm408, %v1082, -inf
      %1688 = vmax.xlane.f32.xlu0 %v1687
      %v1689 = vpop.xlane.xlu0 %1688
      %v1690 = vsel %vm408, %v1122, -inf
      %1691 = vmax.xlane.f32.xlu0 %v1690
      %v1692 = vpop.xlane.xlu0 %1691
      %v1693 = vsel %vm408, %v1162, -inf
      %1694 = vmax.xlane.f32.xlu0 %v1693
      %v1695 = vpop.xlane.xlu0 %1694
      %v1696 = vsel %vm408, %v1202, -inf
      %1697 = vmax.xlane.f32.xlu0 %v1696
      %v1698 = vpop.xlane.xlu0 %1697
      %v1699 = vsel %vm408, %v1242, -inf
      %1700 = vmax.xlane.f32.xlu0 %v1699
      %v1701 = vpop.xlane.xlu0 %1700
      %v1702 = vsel %vm408, %v1282, -inf
      %1703 = vmax.xlane.f32.xlu0 %v1702
      %v1704 = vpop.xlane.xlu0 %1703
      %v1705 = vsel %vm408, %v1322, -inf
      %1706 = vmax.xlane.f32.xlu0 %v1705
      %v1707 = vpop.xlane.xlu0 %1706
      %v1708 = vsel %vm408, %v1362, -inf
      %1709 = vmax.xlane.f32.xlu0 %v1708
      %v1710 = vpop.xlane.xlu0 %1709
      %v1711 = vsel %vm408, %v1402, -inf
      %1712 = vmax.xlane.f32.xlu0 %v1711
      %v1713 = vpop.xlane.xlu0 %1712
      %v1714 = vsel %vm408, %v1442, -inf
      %1715 = vmax.xlane.f32.xlu0 %v1714
      %v1716 = vpop.xlane.xlu0 %1715
      %v1717 = vsel %vm408, %v1482, -inf
      %1718 = vmax.xlane.f32.xlu0 %v1717
      %v1719 = vpop.xlane.xlu0 %1718
      %v1720 = vsel %vm408, %v1522, -inf
      %1721 = vmax.xlane.f32.xlu0 %v1720
      %v1722 = vpop.xlane.xlu0 %1721
      %v1723 = vsel %vm408, %v1562, -inf
      %1724 = vmax.xlane.f32.xlu0 %v1723
      %v1725 = vpop.xlane.xlu0 %1724
      %v1726 = vsel %vm408, %v1602, -inf
      %1727 = vmax.xlane.f32.xlu0 %v1726
      %v1728 = vpop.xlane.xlu0 %1727
      %v1729 = vsel %vm408, %v1642, -inf
      %1730 = vmax.xlane.f32.xlu0 %v1729
      %v1731 = vpop.xlane.xlu0 %1730
      %v1732 = vsel %vm408, %v1682, -inf
      %1733 = vmax.xlane.f32.xlu0 %v1732
      %v1734 = vpop.xlane.xlu0 %1733
      %v1735 = vsub.f32 %v1082, %v1689
      %v1736 = vsub.f32 %v1122, %v1692
      %v1737 = vsub.f32 %v1162, %v1695
      %v1738 = vsub.f32 %v1202, %v1698
      %v1739 = vsub.f32 %v1242, %v1701
      %v1740 = vsub.f32 %v1282, %v1704
      %v1741 = vsub.f32 %v1322, %v1707
      %v1742 = vsub.f32 %v1362, %v1710
      %v1743 = vsub.f32 %v1402, %v1713
      %v1744 = vsub.f32 %v1442, %v1716
      %v1745 = vsub.f32 %v1482, %v1719
      %v1746 = vsub.f32 %v1522, %v1722
      %v1747 = vsub.f32 %v1562, %v1725
      %v1748 = vsub.f32 %v1602, %v1728
      %v1749 = vsub.f32 %v1642, %v1731
      %v1750 = vsub.f32 %v1682, %v1734
      %v1751 = vmul.f32 %v1735, 1.442695
      %v1752 = vpow.pop %v1751
      %v1753 = vmul.f32 %v1736, 1.442695
      %v1754 = vpow.pop %v1753
      %v1755 = vmul.f32 %v1737, 1.442695
      %v1756 = vpow.pop %v1755
      %v1757 = vmul.f32 %v1738, 1.442695
      %v1758 = vpow.pop %v1757
      %v1759 = vmul.f32 %v1739, 1.442695
      %v1760 = vpow.pop %v1759
      %v1761 = vmul.f32 %v1740, 1.442695
      %v1762 = vpow.pop %v1761
      %v1763 = vmul.f32 %v1741, 1.442695
      %v1764 = vpow.pop %v1763
      %v1765 = vmul.f32 %v1742, 1.442695
      %v1766 = vpow.pop %v1765
      %v1767 = vmul.f32 %v1743, 1.442695
      %v1768 = vpow.pop %v1767
      %v1769 = vmul.f32 %v1744, 1.442695
      %v1770 = vpow.pop %v1769
      %v1771 = vmul.f32 %v1745, 1.442695
      %v1772 = vpow.pop %v1771
      %v1773 = vmul.f32 %v1746, 1.442695
      %v1774 = vpow.pop %v1773
      %v1775 = vmul.f32 %v1747, 1.442695
      %v1776 = vpow.pop %v1775
      %v1777 = vmul.f32 %v1748, 1.442695
      %v1778 = vpow.pop %v1777
      %v1779 = vmul.f32 %v1749, 1.442695
      %v1780 = vpow.pop %v1779
      %v1781 = vmul.f32 %v1750, 1.442695
      %v1782 = vpow.pop %v1781
      %v1783 = vsel %vm408, %v1752, 0.0
      %1784 = vadd.xlane.f32.xlu0 %v1783
      %v1785 = vpop.xlane.xlu0 %1784
      %v1786 = vsel %vm408, %v1754, 0.0
      %1787 = vadd.xlane.f32.xlu0 %v1786
      %v1788 = vpop.xlane.xlu0 %1787
      %v1789 = vsel %vm408, %v1756, 0.0
      %1790 = vadd.xlane.f32.xlu0 %v1789
      %v1791 = vpop.xlane.xlu0 %1790
      %v1792 = vsel %vm408, %v1758, 0.0
      %1793 = vadd.xlane.f32.xlu0 %v1792
      %v1794 = vpop.xlane.xlu0 %1793
      %v1795 = vsel %vm408, %v1760, 0.0
      %1796 = vadd.xlane.f32.xlu0 %v1795
      %v1797 = vpop.xlane.xlu0 %1796
      %v1798 = vsel %vm408, %v1762, 0.0
      %1799 = vadd.xlane.f32.xlu0 %v1798
      %v1800 = vpop.xlane.xlu0 %1799
      %v1801 = vsel %vm408, %v1764, 0.0
      %1802 = vadd.xlane.f32.xlu0 %v1801
      %v1803 = vpop.xlane.xlu0 %1802
      %v1804 = vsel %vm408, %v1766, 0.0
      %1805 = vadd.xlane.f32.xlu0 %v1804
      %v1806 = vpop.xlane.xlu0 %1805
      %v1807 = vsel %vm408, %v1768, 0.0
      %1808 = vadd.xlane.f32.xlu0 %v1807
      %v1809 = vpop.xlane.xlu0 %1808
      %v1810 = vsel %vm408, %v1770, 0.0
      %1811 = vadd.xlane.f32.xlu0 %v1810
      %v1812 = vpop.xlane.xlu0 %1811
      %v1813 = vsel %vm408, %v1772, 0.0
      %1814 = vadd.xlane.f32.xlu0 %v1813
      %v1815 = vpop.xlane.xlu0 %1814
      %v1816 = vsel %vm408, %v1774, 0.0
      %1817 = vadd.xlane.f32.xlu0 %v1816
      %v1818 = vpop.xlane.xlu0 %1817
      %v1819 = vsel %vm408, %v1776, 0.0
      %1820 = vadd.xlane.f32.xlu0 %v1819
      %v1821 = vpop.xlane.xlu0 %1820
      %v1822 = vsel %vm408, %v1778, 0.0
      %1823 = vadd.xlane.f32.xlu0 %v1822
      %v1824 = vpop.xlane.xlu0 %1823
      %v1825 = vsel %vm408, %v1780, 0.0
      %1826 = vadd.xlane.f32.xlu0 %v1825
      %v1827 = vpop.xlane.xlu0 %1826
      %v1828 = vsel %vm408, %v1782, 0.0
      %1829 = vadd.xlane.f32.xlu0 %v1828
      %v1830 = vpop.xlane.xlu0 %1829
      %v1831 = vrcp.pop %v1785
      %v1832 = vrcp.pop %v1788
      %v1833 = vrcp.pop %v1791
      %v1834 = vrcp.pop %v1794
      %v1835 = vrcp.pop %v1797
      %v1836 = vrcp.pop %v1800
      %v1837 = vrcp.pop %v1803
      %v1838 = vrcp.pop %v1806
      %v1839 = vrcp.pop %v1809
      %v1840 = vrcp.pop %v1812
      %v1841 = vrcp.pop %v1815
      %v1842 = vrcp.pop %v1818
      %v1843 = vrcp.pop %v1821
      %v1844 = vrcp.pop %v1824
      %v1845 = vrcp.pop %v1827
      %v1846 = vrcp.pop %v1830
      %v1847 = vmul.f32 %v1752, %v1831
      %v1848 = vmul.f32 %v1754, %v1832
      %v1849 = vmul.f32 %v1756, %v1833
      %v1850 = vmul.f32 %v1758, %v1834
      %v1851 = vmul.f32 %v1760, %v1835
      %v1852 = vmul.f32 %v1762, %v1836
      %v1853 = vmul.f32 %v1764, %v1837
      %v1854 = vmul.f32 %v1766, %v1838
      %v1855 = vmul.f32 %v1768, %v1839
      %v1856 = vmul.f32 %v1770, %v1840
      %v1857 = vmul.f32 %v1772, %v1841
      %v1858 = vmul.f32 %v1774, %v1842
      %v1859 = vmul.f32 %v1776, %v1843
      %v1860 = vmul.f32 %v1778, %v1844
      %v1861 = vmul.f32 %v1780, %v1845
      %v1862 = vmul.f32 %v1782, %v1846
      %v1863 = vld [vmem:[%s5] sm:$0xff]
      %v1864 = vadd.f32 %v1847, %v1863
      %v1865 = vadd.f32 %v1848, %v1863
      %v1866 = vadd.f32 %v1849, %v1863
      %v1867 = vadd.f32 %v1850, %v1863
      %v1868 = vadd.f32 %v1851, %v1863
      %v1869 = vadd.f32 %v1852, %v1863
      %v1870 = vadd.f32 %v1853, %v1863
      %v1871 = vadd.f32 %v1854, %v1863
      %v1872 = vadd.f32 %v1855, %v1863
      %v1873 = vadd.f32 %v1856, %v1863
      %v1874 = vadd.f32 %v1857, %v1863
      %v1875 = vadd.f32 %v1858, %v1863
      %v1876 = vadd.f32 %v1859, %v1863
      %v1877 = vadd.f32 %v1860, %v1863
      %v1878 = vadd.f32 %v1861, %v1863
      %v1879 = vadd.f32 %v1862, %v1863
      %v1880 = vpack.c.bf16 %v1864, %v1864
      %v1881 = vpack.c.bf16 %v1865, %v1865
      %v1882 = vpack.c.bf16 %v1866, %v1866
      %v1883 = vpack.c.bf16 %v1867, %v1867
      %v1884 = vpack.c.bf16 %v1868, %v1868
      %v1885 = vpack.c.bf16 %v1869, %v1869
      %v1886 = vpack.c.bf16 %v1870, %v1870
      %v1887 = vpack.c.bf16 %v1871, %v1871
      %v1888 = vpack.c.bf16 %v1872, %v1872
      %v1889 = vpack.c.bf16 %v1873, %v1873
      %v1890 = vpack.c.bf16 %v1874, %v1874
      %v1891 = vpack.c.bf16 %v1875, %v1875
      %v1892 = vpack.c.bf16 %v1876, %v1876
      %v1893 = vpack.c.bf16 %v1877, %v1877
      %v1894 = vpack.c.bf16 %v1878, %v1878
      %v1895 = vpack.c.bf16 %v1879, %v1879
      %v1896 = vpack.c.bf16 %v840, %v840
      %v1897 = vpack.c.bf16 %v844, %v844
      %v1898 = vpack.c.bf16 %v850, %v850
      %v1899 = vpack.c.bf16 %v854, %v854
      %v1900 = vpack.c.bf16 %v860, %v860
      %v1901 = vpack.c.bf16 %v864, %v864
      %v1902 = vpack.c.bf16 %v870, %v870
      %v1903 = vpack.c.bf16 %v874, %v874
      %v1904 = vpack.c.bf16 %v880, %v880
      %v1905 = vpack.c.bf16 %v884, %v884
      %v1906 = vpack.c.bf16 %v890, %v890
      %v1907 = vpack.c.bf16 %v894, %v894
      %v1908 = vpack.c.bf16 %v900, %v900
      %v1909 = vpack.c.bf16 %v904, %v904
      %v1910 = vpack.c.bf16 %v910, %v910
      %v1911 = vpack.c.bf16 %v914, %v914
      %v1912 = vld [vmem:[%s6] sm:$0x1]
      %v1914 = vlaneseq
      %v1915 = vshrl.u32 %v1914, 7
      %v1916 = vsub.s32 0, %v1915
      %v1917 = vrot.slane %v1912, %v1916
      %1919 = vxpose.xlu0.c.b16.start [1/8] %v1880, 128
      %1920 = vxpose.xlu0.c.b16.cont [2/8] 0, 128
      %1921 = vxpose.xlu0.c.b16.cont [3/8] 0, 128
      %1922 = vxpose.xlu0.c.b16.cont [4/8] 0, 128
      %1923 = vxpose.xlu0.c.b16.cont [5/8] 0, 128
      %1924 = vxpose.xlu0.c.b16.cont [6/8] 0, 128
      %1925 = vxpose.xlu0.c.b16.cont [7/8] 0, 128
      %1926 = vxpose.xlu0.c.b16.end [8/8] 0, 128
      %v1927 = vpop.trf.xlu0
      %v1928 = vpop.trf.xlu0
      %v1929 = vpop.trf.xlu0
      %v1930 = vpop.trf.xlu0
      %v1931 = vpop.trf.xlu0
      %v1932 = vpop.trf.xlu0
      %v1933 = vpop.trf.xlu0
      %v1934 = vpop.trf.xlu0
      %v1936 = vsel %vm408, %v1927, 0
      %v1939 = vsel %vm334, %v1896, 0
      %1941 = vmatprep.subr.bf16.mxu0 0
      %1942 = vmatpush1.bf16.msra.mxu0 0
      %1943 = vmatprep.subr.bf16.mxu0 0
      %1944 = vmatpush1.bf16.msra.mxu0 0
      %1945 = vmatprep.subr.bf16.mxu0 0
      %1946 = vmatpush1.bf16.msra.mxu0 0
      %1947 = vmatprep.subr.bf16.mxu0 0
      %1948 = vmatpush1.bf16.msra.mxu0 0
      %1949 = vmatprep.subr.bf16.mxu0 0
      %1950 = vmatpush1.bf16.msra.mxu0 0
      %1951 = vmatprep.subr.bf16.mxu0 0
      %1952 = vmatpush1.bf16.msra.mxu0 0
      %1953 = vmatprep.subr.bf16.mxu0 0
      %1954 = vmatpush1.bf16.msra.mxu0 0
      %1955 = vmatprep.subr.bf16.mxu0 0
      %1956 = vmatpush1.bf16.msra.mxu0 %v1939
      %1957 = vmatprep.subr.bf16.mxu0 0
      %1958 = vmatpush2.bf16.msra.mxu0 0
      %1959 = vmatprep.subr.bf16.mxu0 0
      %1960 = vmatpush2.bf16.msra.mxu0 0
      %1961 = vmatprep.subr.bf16.mxu0 0
      %1962 = vmatpush2.bf16.msra.mxu0 0
      %1963 = vmatprep.subr.bf16.mxu0 0
      %1964 = vmatpush2.bf16.msra.mxu0 0
      %1965 = vmatprep.subr.bf16.mxu0 0
      %1966 = vmatpush2.bf16.msra.mxu0 0
      %1967 = vmatprep.subr.bf16.mxu0 0
      %1968 = vmatpush2.bf16.msra.mxu0 0
      %1969 = vmatprep.subr.bf16.mxu0 0
      %1970 = vmatpush2.bf16.msra.mxu0 0
      %1971 = vmatprep.subr.bf16.mxu0 0
      %1972 = vmatpush2.bf16.msra.mxu0 0
      %1973 = vmatprep.mubr.bf16.mxu0 0
      %1974 = vmatmul.mubr.bf16.gmra.mxu0 %v1936
      %v1975 = vpop.f32.mrf.mxu0
      %v1976 = vadd.f32 %v1917, %v1975
      %v1977 = vpop.f32.mrf.mxu0
      %v1978 = vpop.f32.mrf.mxu0
      %v1979 = vpop.f32.mrf.mxu0
      %1980 = vdwg.mxu0
      %1981 = vxpose.xlu0.c.b16.start [1/8] %v1881, 128
      %1982 = vxpose.xlu0.c.b16.cont [2/8] 0, 128
      %1983 = vxpose.xlu0.c.b16.cont [3/8] 0, 128
      %1984 = vxpose.xlu0.c.b16.cont [4/8] 0, 128
      %1985 = vxpose.xlu0.c.b16.cont [5/8] 0, 128
      %1986 = vxpose.xlu0.c.b16.cont [6/8] 0, 128
      %1987 = vxpose.xlu0.c.b16.cont [7/8] 0, 128
      %1988 = vxpose.xlu0.c.b16.end [8/8] 0, 128
      %v1989 = vpop.trf.xlu0
      %v1990 = vpop.trf.xlu0
      %v1991 = vpop.trf.xlu0
      %v1992 = vpop.trf.xlu0
      %v1993 = vpop.trf.xlu0
      %v1994 = vpop.trf.xlu0
      %v1995 = vpop.trf.xlu0
      %v1996 = vpop.trf.xlu0
      %v1998 = vsel %vm408, %v1989, 0
      %v2001 = vsel %vm334, %v1897, 0
      %2003 = vmatprep.subr.bf16.mxu0 0
      %2004 = vmatpush1.bf16.msra.mxu0 0
      %2005 = vmatprep.subr.bf16.mxu0 0
      %2006 = vmatpush1.bf16.msra.mxu0 0
      %2007 = vmatprep.subr.bf16.mxu0 0
      %2008 = vmatpush1.bf16.msra.mxu0 0
      %2009 = vmatprep.subr.bf16.mxu0 0
      %2010 = vmatpush1.bf16.msra.mxu0 0
      %2011 = vmatprep.subr.bf16.mxu0 0
      %2012 = vmatpush1.bf16.msra.mxu0 0
      %2013 = vmatprep.subr.bf16.mxu0 0
      %2014 = vmatpush1.bf16.msra.mxu0 0
      %2015 = vmatprep.subr.bf16.mxu0 0
      %2016 = vmatpush1.bf16.msra.mxu0 0
      %2017 = vmatprep.subr.bf16.mxu0 0
      %2018 = vmatpush1.bf16.msra.mxu0 %v2001
      %2019 = vmatprep.subr.bf16.mxu0 0
      %2020 = vmatpush2.bf16.msra.mxu0 0
      %2021 = vmatprep.subr.bf16.mxu0 0
      %2022 = vmatpush2.bf16.msra.mxu0 0
      %2023 = vmatprep.subr.bf16.mxu0 0
      %2024 = vmatpush2.bf16.msra.mxu0 0
      %2025 = vmatprep.subr.bf16.mxu0 0
      %2026 = vmatpush2.bf16.msra.mxu0 0
      %2027 = vmatprep.subr.bf16.mxu0 0
      %2028 = vmatpush2.bf16.msra.mxu0 0
      %2029 = vmatprep.subr.bf16.mxu0 0
      %2030 = vmatpush2.bf16.msra.mxu0 0
      %2031 = vmatprep.subr.bf16.mxu0 0
      %2032 = vmatpush2.bf16.msra.mxu0 0
      %2033 = vmatprep.subr.bf16.mxu0 0
      %2034 = vmatpush2.bf16.msra.mxu0 0
      %2035 = vmatprep.mubr.bf16.mxu0 0
      %2036 = vmatmul.mubr.bf16.gmra.mxu0 %v1998
      %v2037 = vpop.f32.mrf.mxu0
      %v2038 = vadd.f32 %v1917, %v2037
      %v2039 = vpop.f32.mrf.mxu0
      %v2040 = vpop.f32.mrf.mxu0
      %v2041 = vpop.f32.mrf.mxu0
      %2042 = vdwg.mxu0
      %2043 = vxpose.xlu0.c.b16.start [1/8] %v1882, 128
      %2044 = vxpose.xlu0.c.b16.cont [2/8] 0, 128
      %2045 = vxpose.xlu0.c.b16.cont [3/8] 0, 128
      %2046 = vxpose.xlu0.c.b16.cont [4/8] 0, 128
      %2047 = vxpose.xlu0.c.b16.cont [5/8] 0, 128
      %2048 = vxpose.xlu0.c.b16.cont [6/8] 0, 128
      %2049 = vxpose.xlu0.c.b16.cont [7/8] 0, 128
      %2050 = vxpose.xlu0.c.b16.end [8/8] 0, 128
      %v2051 = vpop.trf.xlu0
      %v2052 = vpop.trf.xlu0
      %v2053 = vpop.trf.xlu0
      %v2054 = vpop.trf.xlu0
      %v2055 = vpop.trf.xlu0
      %v2056 = vpop.trf.xlu0
      %v2057 = vpop.trf.xlu0
      %v2058 = vpop.trf.xlu0
      %v2060 = vsel %vm408, %v2051, 0
      %v2063 = vsel %vm334, %v1898, 0
      %2065 = vmatprep.subr.bf16.mxu0 0
      %2066 = vmatpush1.bf16.msra.mxu0 0
      %2067 = vmatprep.subr.bf16.mxu0 0
      %2068 = vmatpush1.bf16.msra.mxu0 0
      %2069 = vmatprep.subr.bf16.mxu0 0
      %2070 = vmatpush1.bf16.msra.mxu0 0
      %2071 = vmatprep.subr.bf16.mxu0 0
      %2072 = vmatpush1.bf16.msra.mxu0 0
      %2073 = vmatprep.subr.bf16.mxu0 0
      %2074 = vmatpush1.bf16.msra.mxu0 0
      %2075 = vmatprep.subr.bf16.mxu0 0
      %2076 = vmatpush1.bf16.msra.mxu0 0
      %2077 = vmatprep.subr.bf16.mxu0 0
      %2078 = vmatpush1.bf16.msra.mxu0 0
      %2079 = vmatprep.subr.bf16.mxu0 0
      %2080 = vmatpush1.bf16.msra.mxu0 %v2063
      %2081 = vmatprep.subr.bf16.mxu0 0
      %2082 = vmatpush2.bf16.msra.mxu0 0
      %2083 = vmatprep.subr.bf16.mxu0 0
      %2084 = vmatpush2.bf16.msra.mxu0 0
      %2085 = vmatprep.subr.bf16.mxu0 0
      %2086 = vmatpush2.bf16.msra.mxu0 0
      %2087 = vmatprep.subr.bf16.mxu0 0
      %2088 = vmatpush2.bf16.msra.mxu0 0
      %2089 = vmatprep.subr.bf16.mxu0 0
      %2090 = vmatpush2.bf16.msra.mxu0 0
      %2091 = vmatprep.subr.bf16.mxu0 0
      %2092 = vmatpush2.bf16.msra.mxu0 0
      %2093 = vmatprep.subr.bf16.mxu0 0
      %2094 = vmatpush2.bf16.msra.mxu0 0
      %2095 = vmatprep.subr.bf16.mxu0 0
      %2096 = vmatpush2.bf16.msra.mxu0 0
      %2097 = vmatprep.mubr.bf16.mxu0 0
      %2098 = vmatmul.mubr.bf16.gmra.mxu0 %v2060
      %v2099 = vpop.f32.mrf.mxu0
      %v2100 = vadd.f32 %v1917, %v2099
      %v2101 = vpop.f32.mrf.mxu0
      %v2102 = vpop.f32.mrf.mxu0
      %v2103 = vpop.f32.mrf.mxu0
      %2104 = vdwg.mxu0
      %2105 = vxpose.xlu0.c.b16.start [1/8] %v1883, 128
      %2106 = vxpose.xlu0.c.b16.cont [2/8] 0, 128
      %2107 = vxpose.xlu0.c.b16.cont [3/8] 0, 128
      %2108 = vxpose.xlu0.c.b16.cont [4/8] 0, 128
      %2109 = vxpose.xlu0.c.b16.cont [5/8] 0, 128
      %2110 = vxpose.xlu0.c.b16.cont [6/8] 0, 128
      %2111 = vxpose.xlu0.c.b16.cont [7/8] 0, 128
      %2112 = vxpose.xlu0.c.b16.end [8/8] 0, 128
      %v2113 = vpop.trf.xlu0
      %v2114 = vpop.trf.xlu0
      %v2115 = vpop.trf.xlu0
      %v2116 = vpop.trf.xlu0
      %v2117 = vpop.trf.xlu0
      %v2118 = vpop.trf.xlu0
      %v2119 = vpop.trf.xlu0
      %v2120 = vpop.trf.xlu0
      %v2122 = vsel %vm408, %v2113, 0
      %v2125 = vsel %vm334, %v1899, 0
      %2127 = vmatprep.subr.bf16.mxu0 0
      %2128 = vmatpush1.bf16.msra.mxu0 0
      %2129 = vmatprep.subr.bf16.mxu0 0
      %2130 = vmatpush1.bf16.msra.mxu0 0
      %2131 = vmatprep.subr.bf16.mxu0 0
      %2132 = vmatpush1.bf16.msra.mxu0 0
      %2133 = vmatprep.subr.bf16.mxu0 0
      %2134 = vmatpush1.bf16.msra.mxu0 0
      %2135 = vmatprep.subr.bf16.mxu0 0
      %2136 = vmatpush1.bf16.msra.mxu0 0
      %2137 = vmatprep.subr.bf16.mxu0 0
      %2138 = vmatpush1.bf16.msra.mxu0 0
      %2139 = vmatprep.subr.bf16.mxu0 0
      %2140 = vmatpush1.bf16.msra.mxu0 0
      %2141 = vmatprep.subr.bf16.mxu0 0
      %2142 = vmatpush1.bf16.msra.mxu0 %v2125
      %2143 = vmatprep.subr.bf16.mxu0 0
      %2144 = vmatpush2.bf16.msra.mxu0 0
      %2145 = vmatprep.subr.bf16.mxu0 0
      %2146 = vmatpush2.bf16.msra.mxu0 0
      %2147 = vmatprep.subr.bf16.mxu0 0
      %2148 = vmatpush2.bf16.msra.mxu0 0
      %2149 = vmatprep.subr.bf16.mxu0 0
      %2150 = vmatpush2.bf16.msra.mxu0 0
      %2151 = vmatprep.subr.bf16.mxu0 0
      %2152 = vmatpush2.bf16.msra.mxu0 0
      %2153 = vmatprep.subr.bf16.mxu0 0
      %2154 = vmatpush2.bf16.msra.mxu0 0
      %2155 = vmatprep.subr.bf16.mxu0 0
      %2156 = vmatpush2.bf16.msra.mxu0 0
      %2157 = vmatprep.subr.bf16.mxu0 0
      %2158 = vmatpush2.bf16.msra.mxu0 0
      %2159 = vmatprep.mubr.bf16.mxu0 0
      %2160 = vmatmul.mubr.bf16.gmra.mxu0 %v2122
      %v2161 = vpop.f32.mrf.mxu0
      %v2162 = vadd.f32 %v1917, %v2161
      %v2163 = vpop.f32.mrf.mxu0
      %v2164 = vpop.f32.mrf.mxu0
      %v2165 = vpop.f32.mrf.mxu0
      %2166 = vdwg.mxu0
      %2167 = vxpose.xlu0.c.b16.start [1/8] %v1884, 128
      %2168 = vxpose.xlu0.c.b16.cont [2/8] 0, 128
      %2169 = vxpose.xlu0.c.b16.cont [3/8] 0, 128
      %2170 = vxpose.xlu0.c.b16.cont [4/8] 0, 128
      %2171 = vxpose.xlu0.c.b16.cont [5/8] 0, 128
      %2172 = vxpose.xlu0.c.b16.cont [6/8] 0, 128
      %2173 = vxpose.xlu0.c.b16.cont [7/8] 0, 128
      %2174 = vxpose.xlu0.c.b16.end [8/8] 0, 128
      %v2175 = vpop.trf.xlu0
      %v2176 = vpop.trf.xlu0
      %v2177 = vpop.trf.xlu0
      %v2178 = vpop.trf.xlu0
      %v2179 = vpop.trf.xlu0
      %v2180 = vpop.trf.xlu0
      %v2181 = vpop.trf.xlu0
      %v2182 = vpop.trf.xlu0
      %v2184 = vsel %vm408, %v2175, 0
      %v2187 = vsel %vm334, %v1900, 0
      %2189 = vmatprep.subr.bf16.mxu0 0
      %2190 = vmatpush1.bf16.msra.mxu0 0
      %2191 = vmatprep.subr.bf16.mxu0 0
      %2192 = vmatpush1.bf16.msra.mxu0 0
      %2193 = vmatprep.subr.bf16.mxu0 0
      %2194 = vmatpush1.bf16.msra.mxu0 0
      %2195 = vmatprep.subr.bf16.mxu0 0
      %2196 = vmatpush1.bf16.msra.mxu0 0
      %2197 = vmatprep.subr.bf16.mxu0 0
      %2198 = vmatpush1.bf16.msra.mxu0 0
      %2199 = vmatprep.subr.bf16.mxu0 0
      %2200 = vmatpush1.bf16.msra.mxu0 0
      %2201 = vmatprep.subr.bf16.mxu0 0
      %2202 = vmatpush1.bf16.msra.mxu0 0
      %2203 = vmatprep.subr.bf16.mxu0 0
      %2204 = vmatpush1.bf16.msra.mxu0 %v2187
      %2205 = vmatprep.subr.bf16.mxu0 0
      %2206 = vmatpush2.bf16.msra.mxu0 0
      %2207 = vmatprep.subr.bf16.mxu0 0
      %2208 = vmatpush2.bf16.msra.mxu0 0
      %2209 = vmatprep.subr.bf16.mxu0 0
      %2210 = vmatpush2.bf16.msra.mxu0 0
      %2211 = vmatprep.subr.bf16.mxu0 0
      %2212 = vmatpush2.bf16.msra.mxu0 0
      %2213 = vmatprep.subr.bf16.mxu0 0
      %2214 = vmatpush2.bf16.msra.mxu0 0
      %2215 = vmatprep.subr.bf16.mxu0 0
      %2216 = vmatpush2.bf16.msra.mxu0 0
      %2217 = vmatprep.subr.bf16.mxu0 0
      %2218 = vmatpush2.bf16.msra.mxu0 0
      %2219 = vmatprep.subr.bf16.mxu0 0
      %2220 = vmatpush2.bf16.msra.mxu0 0
      %2221 = vmatprep.mubr.bf16.mxu0 0
      %2222 = vmatmul.mubr.bf16.gmra.mxu0 %v2184
      %v2223 = vpop.f32.mrf.mxu0
      %v2224 = vadd.f32 %v1917, %v2223
      %v2225 = vpop.f32.mrf.mxu0
      %v2226 = vpop.f32.mrf.mxu0
      %v2227 = vpop.f32.mrf.mxu0
      %2228 = vdwg.mxu0
      %2229 = vxpose.xlu0.c.b16.start [1/8] %v1885, 128
      %2230 = vxpose.xlu0.c.b16.cont [2/8] 0, 128
      %2231 = vxpose.xlu0.c.b16.cont [3/8] 0, 128
      %2232 = vxpose.xlu0.c.b16.cont [4/8] 0, 128
      %2233 = vxpose.xlu0.c.b16.cont [5/8] 0, 128
      %2234 = vxpose.xlu0.c.b16.cont [6/8] 0, 128
      %2235 = vxpose.xlu0.c.b16.cont [7/8] 0, 128
      %2236 = vxpose.xlu0.c.b16.end [8/8] 0, 128
      %v2237 = vpop.trf.xlu0
      %v2238 = vpop.trf.xlu0
      %v2239 = vpop.trf.xlu0
      %v2240 = vpop.trf.xlu0
      %v2241 = vpop.trf.xlu0
      %v2242 = vpop.trf.xlu0
      %v2243 = vpop.trf.xlu0
      %v2244 = vpop.trf.xlu0
      %v2246 = vsel %vm408, %v2237, 0
      %v2249 = vsel %vm334, %v1901, 0
      %2251 = vmatprep.subr.bf16.mxu0 0
      %2252 = vmatpush1.bf16.msra.mxu0 0
      %2253 = vmatprep.subr.bf16.mxu0 0
      %2254 = vmatpush1.bf16.msra.mxu0 0
      %2255 = vmatprep.subr.bf16.mxu0 0
      %2256 = vmatpush1.bf16.msra.mxu0 0
      %2257 = vmatprep.subr.bf16.mxu0 0
      %2258 = vmatpush1.bf16.msra.mxu0 0
      %2259 = vmatprep.subr.bf16.mxu0 0
      %2260 = vmatpush1.bf16.msra.mxu0 0
      %2261 = vmatprep.subr.bf16.mxu0 0
      %2262 = vmatpush1.bf16.msra.mxu0 0
      %2263 = vmatprep.subr.bf16.mxu0 0
      %2264 = vmatpush1.bf16.msra.mxu0 0
      %2265 = vmatprep.subr.bf16.mxu0 0
      %2266 = vmatpush1.bf16.msra.mxu0 %v2249
      %2267 = vmatprep.subr.bf16.mxu0 0
      %2268 = vmatpush2.bf16.msra.mxu0 0
      %2269 = vmatprep.subr.bf16.mxu0 0
      %2270 = vmatpush2.bf16.msra.mxu0 0
      %2271 = vmatprep.subr.bf16.mxu0 0
      %2272 = vmatpush2.bf16.msra.mxu0 0
      %2273 = vmatprep.subr.bf16.mxu0 0
      %2274 = vmatpush2.bf16.msra.mxu0 0
      %2275 = vmatprep.subr.bf16.mxu0 0
      %2276 = vmatpush2.bf16.msra.mxu0 0
      %2277 = vmatprep.subr.bf16.mxu0 0
      %2278 = vmatpush2.bf16.msra.mxu0 0
      %2279 = vmatprep.subr.bf16.mxu0 0
      %2280 = vmatpush2.bf16.msra.mxu0 0
      %2281 = vmatprep.subr.bf16.mxu0 0
      %2282 = vmatpush2.bf16.msra.mxu0 0
      %2283 = vmatprep.mubr.bf16.mxu0 0
      %2284 = vmatmul.mubr.bf16.gmra.mxu0 %v2246
      %v2285 = vpop.f32.mrf.mxu0
      %v2286 = vadd.f32 %v1917, %v2285
      %v2287 = vpop.f32.mrf.mxu0
      %v2288 = vpop.f32.mrf.mxu0
      %v2289 = vpop.f32.mrf.mxu0
      %2290 = vdwg.mxu0
      %2291 = vxpose.xlu0.c.b16.start [1/8] %v1886, 128
      %2292 = vxpose.xlu0.c.b16.cont [2/8] 0, 128
      %2293 = vxpose.xlu0.c.b16.cont [3/8] 0, 128
      %2294 = vxpose.xlu0.c.b16.cont [4/8] 0, 128
      %2295 = vxpose.xlu0.c.b16.cont [5/8] 0, 128
      %2296 = vxpose.xlu0.c.b16.cont [6/8] 0, 128
      %2297 = vxpose.xlu0.c.b16.cont [7/8] 0, 128
      %2298 = vxpose.xlu0.c.b16.end [8/8] 0, 128
      %v2299 = vpop.trf.xlu0
      %v2300 = vpop.trf.xlu0
      %v2301 = vpop.trf.xlu0
      %v2302 = vpop.trf.xlu0
      %v2303 = vpop.trf.xlu0
      %v2304 = vpop.trf.xlu0
      %v2305 = vpop.trf.xlu0
      %v2306 = vpop.trf.xlu0
      %v2308 = vsel %vm408, %v2299, 0
      %v2311 = vsel %vm334, %v1902, 0
      %2313 = vmatprep.subr.bf16.mxu0 0
      %2314 = vmatpush1.bf16.msra.mxu0 0
      %2315 = vmatprep.subr.bf16.mxu0 0
      %2316 = vmatpush1.bf16.msra.mxu0 0
      %2317 = vmatprep.subr.bf16.mxu0 0
      %2318 = vmatpush1.bf16.msra.mxu0 0
      %2319 = vmatprep.subr.bf16.mxu0 0
      %2320 = vmatpush1.bf16.msra.mxu0 0
      %2321 = vmatprep.subr.bf16.mxu0 0
      %2322 = vmatpush1.bf16.msra.mxu0 0
      %2323 = vmatprep.subr.bf16.mxu0 0
      %2324 = vmatpush1.bf16.msra.mxu0 0
      %2325 = vmatprep.subr.bf16.mxu0 0
      %2326 = vmatpush1.bf16.msra.mxu0 0
      %2327 = vmatprep.subr.bf16.mxu0 0
      %2328 = vmatpush1.bf16.msra.mxu0 %v2311
      %2329 = vmatprep.subr.bf16.mxu0 0
      %2330 = vmatpush2.bf16.msra.mxu0 0
      %2331 = vmatprep.subr.bf16.mxu0 0
      %2332 = vmatpush2.bf16.msra.mxu0 0
      %2333 = vmatprep.subr.bf16.mxu0 0
      %2334 = vmatpush2.bf16.msra.mxu0 0
      %2335 = vmatprep.subr.bf16.mxu0 0
      %2336 = vmatpush2.bf16.msra.mxu0 0
      %2337 = vmatprep.subr.bf16.mxu0 0
      %2338 = vmatpush2.bf16.msra.mxu0 0
      %2339 = vmatprep.subr.bf16.mxu0 0
      %2340 = vmatpush2.bf16.msra.mxu0 0
      %2341 = vmatprep.subr.bf16.mxu0 0
      %2342 = vmatpush2.bf16.msra.mxu0 0
      %2343 = vmatprep.subr.bf16.mxu0 0
      %2344 = vmatpush2.bf16.msra.mxu0 0
      %2345 = vmatprep.mubr.bf16.mxu0 0
      %2346 = vmatmul.mubr.bf16.gmra.mxu0 %v2308
      %v2347 = vpop.f32.mrf.mxu0
      %v2348 = vadd.f32 %v1917, %v2347
      %v2349 = vpop.f32.mrf.mxu0
      %v2350 = vpop.f32.mrf.mxu0
      %v2351 = vpop.f32.mrf.mxu0
      %2352 = vdwg.mxu0
      %2353 = vxpose.xlu0.c.b16.start [1/8] %v1887, 128
      %2354 = vxpose.xlu0.c.b16.cont [2/8] 0, 128
      %2355 = vxpose.xlu0.c.b16.cont [3/8] 0, 128
      %2356 = vxpose.xlu0.c.b16.cont [4/8] 0, 128
      %2357 = vxpose.xlu0.c.b16.cont [5/8] 0, 128
      %2358 = vxpose.xlu0.c.b16.cont [6/8] 0, 128
      %2359 = vxpose.xlu0.c.b16.cont [7/8] 0, 128
      %2360 = vxpose.xlu0.c.b16.end [8/8] 0, 128
      %v2361 = vpop.trf.xlu0
      %v2362 = vpop.trf.xlu0
      %v2363 = vpop.trf.xlu0
      %v2364 = vpop.trf.xlu0
      %v2365 = vpop.trf.xlu0
      %v2366 = vpop.trf.xlu0
      %v2367 = vpop.trf.xlu0
      %v2368 = vpop.trf.xlu0
      %v2370 = vsel %vm408, %v2361, 0
      %v2373 = vsel %vm334, %v1903, 0
      %2375 = vmatprep.subr.bf16.mxu0 0
      %2376 = vmatpush1.bf16.msra.mxu0 0
      %2377 = vmatprep.subr.bf16.mxu0 0
      %2378 = vmatpush1.bf16.msra.mxu0 0
      %2379 = vmatprep.subr.bf16.mxu0 0
      %2380 = vmatpush1.bf16.msra.mxu0 0
      %2381 = vmatprep.subr.bf16.mxu0 0
      %2382 = vmatpush1.bf16.msra.mxu0 0
      %2383 = vmatprep.subr.bf16.mxu0 0
      %2384 = vmatpush1.bf16.msra.mxu0 0
      %2385 = vmatprep.subr.bf16.mxu0 0
      %2386 = vmatpush1.bf16.msra.mxu0 0
      %2387 = vmatprep.subr.bf16.mxu0 0
      %2388 = vmatpush1.bf16.msra.mxu0 0
      %2389 = vmatprep.subr.bf16.mxu0 0
      %2390 = vmatpush1.bf16.msra.mxu0 %v2373
      %2391 = vmatprep.subr.bf16.mxu0 0
      %2392 = vmatpush2.bf16.msra.mxu0 0
      %2393 = vmatprep.subr.bf16.mxu0 0
      %2394 = vmatpush2.bf16.msra.mxu0 0
      %2395 = vmatprep.subr.bf16.mxu0 0
      %2396 = vmatpush2.bf16.msra.mxu0 0
      %2397 = vmatprep.subr.bf16.mxu0 0
      %2398 = vmatpush2.bf16.msra.mxu0 0
      %2399 = vmatprep.subr.bf16.mxu0 0
      %2400 = vmatpush2.bf16.msra.mxu0 0
      %2401 = vmatprep.subr.bf16.mxu0 0
      %2402 = vmatpush2.bf16.msra.mxu0 0
      %2403 = vmatprep.subr.bf16.mxu0 0
      %2404 = vmatpush2.bf16.msra.mxu0 0
      %2405 = vmatprep.subr.bf16.mxu0 0
      %2406 = vmatpush2.bf16.msra.mxu0 0
      %2407 = vmatprep.mubr.bf16.mxu0 0
      %2408 = vmatmul.mubr.bf16.gmra.mxu0 %v2370
      %v2409 = vpop.f32.mrf.mxu0
      %v2410 = vadd.f32 %v1917, %v2409
      %v2411 = vpop.f32.mrf.mxu0
      %v2412 = vpop.f32.mrf.mxu0
      %v2413 = vpop.f32.mrf.mxu0
      %2414 = vdwg.mxu0
      %2415 = vxpose.xlu0.c.b16.start [1/8] %v1888, 128
      %2416 = vxpose.xlu0.c.b16.cont [2/8] 0, 128
      %2417 = vxpose.xlu0.c.b16.cont [3/8] 0, 128
      %2418 = vxpose.xlu0.c.b16.cont [4/8] 0, 128
      %2419 = vxpose.xlu0.c.b16.cont [5/8] 0, 128
      %2420 = vxpose.xlu0.c.b16.cont [6/8] 0, 128
      %2421 = vxpose.xlu0.c.b16.cont [7/8] 0, 128
      %2422 = vxpose.xlu0.c.b16.end [8/8] 0, 128
      %v2423 = vpop.trf.xlu0
      %v2424 = vpop.trf.xlu0
      %v2425 = vpop.trf.xlu0
      %v2426 = vpop.trf.xlu0
      %v2427 = vpop.trf.xlu0
      %v2428 = vpop.trf.xlu0
      %v2429 = vpop.trf.xlu0
      %v2430 = vpop.trf.xlu0
      %v2432 = vsel %vm408, %v2423, 0
      %v2435 = vsel %vm334, %v1904, 0
      %2437 = vmatprep.subr.bf16.mxu0 0
      %2438 = vmatpush1.bf16.msra.mxu0 0
      %2439 = vmatprep.subr.bf16.mxu0 0
      %2440 = vmatpush1.bf16.msra.mxu0 0
      %2441 = vmatprep.subr.bf16.mxu0 0
      %2442 = vmatpush1.bf16.msra.mxu0 0
      %2443 = vmatprep.subr.bf16.mxu0 0
      %2444 = vmatpush1.bf16.msra.mxu0 0
      %2445 = vmatprep.subr.bf16.mxu0 0
      %2446 = vmatpush1.bf16.msra.mxu0 0
      %2447 = vmatprep.subr.bf16.mxu0 0
      %2448 = vmatpush1.bf16.msra.mxu0 0
      %2449 = vmatprep.subr.bf16.mxu0 0
      %2450 = vmatpush1.bf16.msra.mxu0 0
      %2451 = vmatprep.subr.bf16.mxu0 0
      %2452 = vmatpush1.bf16.msra.mxu0 %v2435
      %2453 = vmatprep.subr.bf16.mxu0 0
      %2454 = vmatpush2.bf16.msra.mxu0 0
      %2455 = vmatprep.subr.bf16.mxu0 0
      %2456 = vmatpush2.bf16.msra.mxu0 0
      %2457 = vmatprep.subr.bf16.mxu0 0
      %2458 = vmatpush2.bf16.msra.mxu0 0
      %2459 = vmatprep.subr.bf16.mxu0 0
      %2460 = vmatpush2.bf16.msra.mxu0 0
      %2461 = vmatprep.subr.bf16.mxu0 0
      %2462 = vmatpush2.bf16.msra.mxu0 0
      %2463 = vmatprep.subr.bf16.mxu0 0
      %2464 = vmatpush2.bf16.msra.mxu0 0
      %2465 = vmatprep.subr.bf16.mxu0 0
      %2466 = vmatpush2.bf16.msra.mxu0 0
      %2467 = vmatprep.subr.bf16.mxu0 0
      %2468 = vmatpush2.bf16.msra.mxu0 0
      %2469 = vmatprep.mubr.bf16.mxu0 0
      %2470 = vmatmul.mubr.bf16.gmra.mxu0 %v2432
      %v2471 = vpop.f32.mrf.mxu0
      %v2472 = vadd.f32 %v1917, %v2471
      %v2473 = vpop.f32.mrf.mxu0
      %v2474 = vpop.f32.mrf.mxu0
      %v2475 = vpop.f32.mrf.mxu0
      %2476 = vdwg.mxu0
      %2477 = vxpose.xlu0.c.b16.start [1/8] %v1889, 128
      %2478 = vxpose.xlu0.c.b16.cont [2/8] 0, 128
      %2479 = vxpose.xlu0.c.b16.cont [3/8] 0, 128
      %2480 = vxpose.xlu0.c.b16.cont [4/8] 0, 128
      %2481 = vxpose.xlu0.c.b16.cont [5/8] 0, 128
      %2482 = vxpose.xlu0.c.b16.cont [6/8] 0, 128
      %2483 = vxpose.xlu0.c.b16.cont [7/8] 0, 128
      %2484 = vxpose.xlu0.c.b16.end [8/8] 0, 128
      %v2485 = vpop.trf.xlu0
      %v2486 = vpop.trf.xlu0
      %v2487 = vpop.trf.xlu0
      %v2488 = vpop.trf.xlu0
      %v2489 = vpop.trf.xlu0
      %v2490 = vpop.trf.xlu0
      %v2491 = vpop.trf.xlu0
      %v2492 = vpop.trf.xlu0
      %v2494 = vsel %vm408, %v2485, 0
      %v2497 = vsel %vm334, %v1905, 0
      %2499 = vmatprep.subr.bf16.mxu0 0
      %2500 = vmatpush1.bf16.msra.mxu0 0
      %2501 = vmatprep.subr.bf16.mxu0 0
      %2502 = vmatpush1.bf16.msra.mxu0 0
      %2503 = vmatprep.subr.bf16.mxu0 0
      %2504 = vmatpush1.bf16.msra.mxu0 0
      %2505 = vmatprep.subr.bf16.mxu0 0
      %2506 = vmatpush1.bf16.msra.mxu0 0
      %2507 = vmatprep.subr.bf16.mxu0 0
      %2508 = vmatpush1.bf16.msra.mxu0 0
      %2509 = vmatprep.subr.bf16.mxu0 0
      %2510 = vmatpush1.bf16.msra.mxu0 0
      %2511 = vmatprep.subr.bf16.mxu0 0
      %2512 = vmatpush1.bf16.msra.mxu0 0
      %2513 = vmatprep.subr.bf16.mxu0 0
      %2514 = vmatpush1.bf16.msra.mxu0 %v2497
      %2515 = vmatprep.subr.bf16.mxu0 0
      %2516 = vmatpush2.bf16.msra.mxu0 0
      %2517 = vmatprep.subr.bf16.mxu0 0
      %2518 = vmatpush2.bf16.msra.mxu0 0
      %2519 = vmatprep.subr.bf16.mxu0 0
      %2520 = vmatpush2.bf16.msra.mxu0 0
      %2521 = vmatprep.subr.bf16.mxu0 0
      %2522 = vmatpush2.bf16.msra.mxu0 0
      %2523 = vmatprep.subr.bf16.mxu0 0
      %2524 = vmatpush2.bf16.msra.mxu0 0
      %2525 = vmatprep.subr.bf16.mxu0 0
      %2526 = vmatpush2.bf16.msra.mxu0 0
      %2527 = vmatprep.subr.bf16.mxu0 0
      %2528 = vmatpush2.bf16.msra.mxu0 0
      %2529 = vmatprep.subr.bf16.mxu0 0
      %2530 = vmatpush2.bf16.msra.mxu0 0
      %2531 = vmatprep.mubr.bf16.mxu0 0
      %2532 = vmatmul.mubr.bf16.gmra.mxu0 %v2494
      %v2533 = vpop.f32.mrf.mxu0
      %v2534 = vadd.f32 %v1917, %v2533
      %v2535 = vpop.f32.mrf.mxu0
      %v2536 = vpop.f32.mrf.mxu0
      %v2537 = vpop.f32.mrf.mxu0
      %2538 = vdwg.mxu0
      %2539 = vxpose.xlu0.c.b16.start [1/8] %v1890, 128
      %2540 = vxpose.xlu0.c.b16.cont [2/8] 0, 128
      %2541 = vxpose.xlu0.c.b16.cont [3/8] 0, 128
      %2542 = vxpose.xlu0.c.b16.cont [4/8] 0, 128
      %2543 = vxpose.xlu0.c.b16.cont [5/8] 0, 128
      %2544 = vxpose.xlu0.c.b16.cont [6/8] 0, 128
      %2545 = vxpose.xlu0.c.b16.cont [7/8] 0, 128
      %2546 = vxpose.xlu0.c.b16.end [8/8] 0, 128
      %v2547 = vpop.trf.xlu0
      %v2548 = vpop.trf.xlu0
      %v2549 = vpop.trf.xlu0
      %v2550 = vpop.trf.xlu0
      %v2551 = vpop.trf.xlu0
      %v2552 = vpop.trf.xlu0
      %v2553 = vpop.trf.xlu0
      %v2554 = vpop.trf.xlu0
      %v2556 = vsel %vm408, %v2547, 0
      %v2559 = vsel %vm334, %v1906, 0
      %2561 = vmatprep.subr.bf16.mxu0 0
      %2562 = vmatpush1.bf16.msra.mxu0 0
      %2563 = vmatprep.subr.bf16.mxu0 0
      %2564 = vmatpush1.bf16.msra.mxu0 0
      %2565 = vmatprep.subr.bf16.mxu0 0
      %2566 = vmatpush1.bf16.msra.mxu0 0
      %2567 = vmatprep.subr.bf16.mxu0 0
      %2568 = vmatpush1.bf16.msra.mxu0 0
      %2569 = vmatprep.subr.bf16.mxu0 0
      %2570 = vmatpush1.bf16.msra.mxu0 0
      %2571 = vmatprep.subr.bf16.mxu0 0
      %2572 = vmatpush1.bf16.msra.mxu0 0
      %2573 = vmatprep.subr.bf16.mxu0 0
      %2574 = vmatpush1.bf16.msra.mxu0 0
      %2575 = vmatprep.subr.bf16.mxu0 0
      %2576 = vmatpush1.bf16.msra.mxu0 %v2559
      %2577 = vmatprep.subr.bf16.mxu0 0
      %2578 = vmatpush2.bf16.msra.mxu0 0
      %2579 = vmatprep.subr.bf16.mxu0 0
      %2580 = vmatpush2.bf16.msra.mxu0 0
      %2581 = vmatprep.subr.bf16.mxu0 0
      %2582 = vmatpush2.bf16.msra.mxu0 0
      %2583 = vmatprep.subr.bf16.mxu0 0
      %2584 = vmatpush2.bf16.msra.mxu0 0
      %2585 = vmatprep.subr.bf16.mxu0 0
      %2586 = vmatpush2.bf16.msra.mxu0 0
      %2587 = vmatprep.subr.bf16.mxu0 0
      %2588 = vmatpush2.bf16.msra.mxu0 0
      %2589 = vmatprep.subr.bf16.mxu0 0
      %2590 = vmatpush2.bf16.msra.mxu0 0
      %2591 = vmatprep.subr.bf16.mxu0 0
      %2592 = vmatpush2.bf16.msra.mxu0 0
      %2593 = vmatprep.mubr.bf16.mxu0 0
      %2594 = vmatmul.mubr.bf16.gmra.mxu0 %v2556
      %v2595 = vpop.f32.mrf.mxu0
      %v2596 = vadd.f32 %v1917, %v2595
      %v2597 = vpop.f32.mrf.mxu0
      %v2598 = vpop.f32.mrf.mxu0
      %v2599 = vpop.f32.mrf.mxu0
      %2600 = vdwg.mxu0
      %2601 = vxpose.xlu0.c.b16.start [1/8] %v1891, 128
      %2602 = vxpose.xlu0.c.b16.cont [2/8] 0, 128
      %2603 = vxpose.xlu0.c.b16.cont [3/8] 0, 128
      %2604 = vxpose.xlu0.c.b16.cont [4/8] 0, 128
      %2605 = vxpose.xlu0.c.b16.cont [5/8] 0, 128
      %2606 = vxpose.xlu0.c.b16.cont [6/8] 0, 128
      %2607 = vxpose.xlu0.c.b16.cont [7/8] 0, 128
      %2608 = vxpose.xlu0.c.b16.end [8/8] 0, 128
      %v2609 = vpop.trf.xlu0
      %v2610 = vpop.trf.xlu0
      %v2611 = vpop.trf.xlu0
      %v2612 = vpop.trf.xlu0
      %v2613 = vpop.trf.xlu0
      %v2614 = vpop.trf.xlu0
      %v2615 = vpop.trf.xlu0
      %v2616 = vpop.trf.xlu0
      %v2618 = vsel %vm408, %v2609, 0
      %v2621 = vsel %vm334, %v1907, 0
      %2623 = vmatprep.subr.bf16.mxu0 0
      %2624 = vmatpush1.bf16.msra.mxu0 0
      %2625 = vmatprep.subr.bf16.mxu0 0
      %2626 = vmatpush1.bf16.msra.mxu0 0
      %2627 = vmatprep.subr.bf16.mxu0 0
      %2628 = vmatpush1.bf16.msra.mxu0 0
      %2629 = vmatprep.subr.bf16.mxu0 0
      %2630 = vmatpush1.bf16.msra.mxu0 0
      %2631 = vmatprep.subr.bf16.mxu0 0
      %2632 = vmatpush1.bf16.msra.mxu0 0
      %2633 = vmatprep.subr.bf16.mxu0 0
      %2634 = vmatpush1.bf16.msra.mxu0 0
      %2635 = vmatprep.subr.bf16.mxu0 0
      %2636 = vmatpush1.bf16.msra.mxu0 0
      %2637 = vmatprep.subr.bf16.mxu0 0
      %2638 = vmatpush1.bf16.msra.mxu0 %v2621
      %2639 = vmatprep.subr.bf16.mxu0 0
      %2640 = vmatpush2.bf16.msra.mxu0 0
      %2641 = vmatprep.subr.bf16.mxu0 0
      %2642 = vmatpush2.bf16.msra.mxu0 0
      %2643 = vmatprep.subr.bf16.mxu0 0
      %2644 = vmatpush2.bf16.msra.mxu0 0
      %2645 = vmatprep.subr.bf16.mxu0 0
      %2646 = vmatpush2.bf16.msra.mxu0 0
      %2647 = vmatprep.subr.bf16.mxu0 0
      %2648 = vmatpush2.bf16.msra.mxu0 0
      %2649 = vmatprep.subr.bf16.mxu0 0
      %2650 = vmatpush2.bf16.msra.mxu0 0
      %2651 = vmatprep.subr.bf16.mxu0 0
      %2652 = vmatpush2.bf16.msra.mxu0 0
      %2653 = vmatprep.subr.bf16.mxu0 0
      %2654 = vmatpush2.bf16.msra.mxu0 0
      %2655 = vmatprep.mubr.bf16.mxu0 0
      %2656 = vmatmul.mubr.bf16.gmra.mxu0 %v2618
      %v2657 = vpop.f32.mrf.mxu0
      %v2658 = vadd.f32 %v1917, %v2657
      %v2659 = vpop.f32.mrf.mxu0
      %v2660 = vpop.f32.mrf.mxu0
      %v2661 = vpop.f32.mrf.mxu0
      %2662 = vdwg.mxu0
      %2663 = vxpose.xlu0.c.b16.start [1/8] %v1892, 128
      %2664 = vxpose.xlu0.c.b16.cont [2/8] 0, 128
      %2665 = vxpose.xlu0.c.b16.cont [3/8] 0, 128
      %2666 = vxpose.xlu0.c.b16.cont [4/8] 0, 128
      %2667 = vxpose.xlu0.c.b16.cont [5/8] 0, 128
      %2668 = vxpose.xlu0.c.b16.cont [6/8] 0, 128
      %2669 = vxpose.xlu0.c.b16.cont [7/8] 0, 128
      %2670 = vxpose.xlu0.c.b16.end [8/8] 0, 128
      %v2671 = vpop.trf.xlu0
      %v2672 = vpop.trf.xlu0
      %v2673 = vpop.trf.xlu0
      %v2674 = vpop.trf.xlu0
      %v2675 = vpop.trf.xlu0
      %v2676 = vpop.trf.xlu0
      %v2677 = vpop.trf.xlu0
      %v2678 = vpop.trf.xlu0
      %v2680 = vsel %vm408, %v2671, 0
      %v2683 = vsel %vm334, %v1908, 0
      %2685 = vmatprep.subr.bf16.mxu0 0
      %2686 = vmatpush1.bf16.msra.mxu0 0
      %2687 = vmatprep.subr.bf16.mxu0 0
      %2688 = vmatpush1.bf16.msra.mxu0 0
      %2689 = vmatprep.subr.bf16.mxu0 0
      %2690 = vmatpush1.bf16.msra.mxu0 0
      %2691 = vmatprep.subr.bf16.mxu0 0
      %2692 = vmatpush1.bf16.msra.mxu0 0
      %2693 = vmatprep.subr.bf16.mxu0 0
      %2694 = vmatpush1.bf16.msra.mxu0 0
      %2695 = vmatprep.subr.bf16.mxu0 0
      %2696 = vmatpush1.bf16.msra.mxu0 0
      %2697 = vmatprep.subr.bf16.mxu0 0
      %2698 = vmatpush1.bf16.msra.mxu0 0
      %2699 = vmatprep.subr.bf16.mxu0 0
      %2700 = vmatpush1.bf16.msra.mxu0 %v2683
      %2701 = vmatprep.subr.bf16.mxu0 0
      %2702 = vmatpush2.bf16.msra.mxu0 0
      %2703 = vmatprep.subr.bf16.mxu0 0
      %2704 = vmatpush2.bf16.msra.mxu0 0
      %2705 = vmatprep.subr.bf16.mxu0 0
      %2706 = vmatpush2.bf16.msra.mxu0 0
      %2707 = vmatprep.subr.bf16.mxu0 0
      %2708 = vmatpush2.bf16.msra.mxu0 0
      %2709 = vmatprep.subr.bf16.mxu0 0
      %2710 = vmatpush2.bf16.msra.mxu0 0
      %2711 = vmatprep.subr.bf16.mxu0 0
      %2712 = vmatpush2.bf16.msra.mxu0 0
      %2713 = vmatprep.subr.bf16.mxu0 0
      %2714 = vmatpush2.bf16.msra.mxu0 0
      %2715 = vmatprep.subr.bf16.mxu0 0
      %2716 = vmatpush2.bf16.msra.mxu0 0
      %2717 = vmatprep.mubr.bf16.mxu0 0
      %2718 = vmatmul.mubr.bf16.gmra.mxu0 %v2680
      %v2719 = vpop.f32.mrf.mxu0
      %v2720 = vadd.f32 %v1917, %v2719
      %v2721 = vpop.f32.mrf.mxu0
      %v2722 = vpop.f32.mrf.mxu0
      %v2723 = vpop.f32.mrf.mxu0
      %2724 = vdwg.mxu0
      %2725 = vxpose.xlu0.c.b16.start [1/8] %v1893, 128
      %2726 = vxpose.xlu0.c.b16.cont [2/8] 0, 128
      %2727 = vxpose.xlu0.c.b16.cont [3/8] 0, 128
      %2728 = vxpose.xlu0.c.b16.cont [4/8] 0, 128
      %2729 = vxpose.xlu0.c.b16.cont [5/8] 0, 128
      %2730 = vxpose.xlu0.c.b16.cont [6/8] 0, 128
      %2731 = vxpose.xlu0.c.b16.cont [7/8] 0, 128
      %2732 = vxpose.xlu0.c.b16.end [8/8] 0, 128
      %v2733 = vpop.trf.xlu0
      %v2734 = vpop.trf.xlu0
      %v2735 = vpop.trf.xlu0
      %v2736 = vpop.trf.xlu0
      %v2737 = vpop.trf.xlu0
      %v2738 = vpop.trf.xlu0
      %v2739 = vpop.trf.xlu0
      %v2740 = vpop.trf.xlu0
      %v2742 = vsel %vm408, %v2733, 0
      %v2745 = vsel %vm334, %v1909, 0
      %2747 = vmatprep.subr.bf16.mxu0 0
      %2748 = vmatpush1.bf16.msra.mxu0 0
      %2749 = vmatprep.subr.bf16.mxu0 0
      %2750 = vmatpush1.bf16.msra.mxu0 0
      %2751 = vmatprep.subr.bf16.mxu0 0
      %2752 = vmatpush1.bf16.msra.mxu0 0
      %2753 = vmatprep.subr.bf16.mxu0 0
      %2754 = vmatpush1.bf16.msra.mxu0 0
      %2755 = vmatprep.subr.bf16.mxu0 0
      %2756 = vmatpush1.bf16.msra.mxu0 0
      %2757 = vmatprep.subr.bf16.mxu0 0
      %2758 = vmatpush1.bf16.msra.mxu0 0
      %2759 = vmatprep.subr.bf16.mxu0 0
      %2760 = vmatpush1.bf16.msra.mxu0 0
      %2761 = vmatprep.subr.bf16.mxu0 0
      %2762 = vmatpush1.bf16.msra.mxu0 %v2745
      %2763 = vmatprep.subr.bf16.mxu0 0
      %2764 = vmatpush2.bf16.msra.mxu0 0
      %2765 = vmatprep.subr.bf16.mxu0 0
      %2766 = vmatpush2.bf16.msra.mxu0 0
      %2767 = vmatprep.subr.bf16.mxu0 0
      %2768 = vmatpush2.bf16.msra.mxu0 0
      %2769 = vmatprep.subr.bf16.mxu0 0
      %2770 = vmatpush2.bf16.msra.mxu0 0
      %2771 = vmatprep.subr.bf16.mxu0 0
      %2772 = vmatpush2.bf16.msra.mxu0 0
      %2773 = vmatprep.subr.bf16.mxu0 0
      %2774 = vmatpush2.bf16.msra.mxu0 0
      %2775 = vmatprep.subr.bf16.mxu0 0
      %2776 = vmatpush2.bf16.msra.mxu0 0
      %2777 = vmatprep.subr.bf16.mxu0 0
      %2778 = vmatpush2.bf16.msra.mxu0 0
      %2779 = vmatprep.mubr.bf16.mxu0 0
      %2780 = vmatmul.mubr.bf16.gmra.mxu0 %v2742
      %v2781 = vpop.f32.mrf.mxu0
      %v2782 = vadd.f32 %v1917, %v2781
      %v2783 = vpop.f32.mrf.mxu0
      %v2784 = vpop.f32.mrf.mxu0
      %v2785 = vpop.f32.mrf.mxu0
      %2786 = vdwg.mxu0
      %2787 = vxpose.xlu0.c.b16.start [1/8] %v1894, 128
      %2788 = vxpose.xlu0.c.b16.cont [2/8] 0, 128
      %2789 = vxpose.xlu0.c.b16.cont [3/8] 0, 128
      %2790 = vxpose.xlu0.c.b16.cont [4/8] 0, 128
      %2791 = vxpose.xlu0.c.b16.cont [5/8] 0, 128
      %2792 = vxpose.xlu0.c.b16.cont [6/8] 0, 128
      %2793 = vxpose.xlu0.c.b16.cont [7/8] 0, 128
      %2794 = vxpose.xlu0.c.b16.end [8/8] 0, 128
      %v2795 = vpop.trf.xlu0
      %v2796 = vpop.trf.xlu0
      %v2797 = vpop.trf.xlu0
      %v2798 = vpop.trf.xlu0
      %v2799 = vpop.trf.xlu0
      %v2800 = vpop.trf.xlu0
      %v2801 = vpop.trf.xlu0
      %v2802 = vpop.trf.xlu0
      %v2804 = vsel %vm408, %v2795, 0
      %v2807 = vsel %vm334, %v1910, 0
      %2809 = vmatprep.subr.bf16.mxu0 0
      %2810 = vmatpush1.bf16.msra.mxu0 0
      %2811 = vmatprep.subr.bf16.mxu0 0
      %2812 = vmatpush1.bf16.msra.mxu0 0
      %2813 = vmatprep.subr.bf16.mxu0 0
      %2814 = vmatpush1.bf16.msra.mxu0 0
      %2815 = vmatprep.subr.bf16.mxu0 0
      %2816 = vmatpush1.bf16.msra.mxu0 0
      %2817 = vmatprep.subr.bf16.mxu0 0
      %2818 = vmatpush1.bf16.msra.mxu0 0
      %2819 = vmatprep.subr.bf16.mxu0 0
      %2820 = vmatpush1.bf16.msra.mxu0 0
      %2821 = vmatprep.subr.bf16.mxu0 0
      %2822 = vmatpush1.bf16.msra.mxu0 0
      %2823 = vmatprep.subr.bf16.mxu0 0
      %2824 = vmatpush1.bf16.msra.mxu0 %v2807
      %2825 = vmatprep.subr.bf16.mxu0 0
      %2826 = vmatpush2.bf16.msra.mxu0 0
      %2827 = vmatprep.subr.bf16.mxu0 0
      %2828 = vmatpush2.bf16.msra.mxu0 0
      %2829 = vmatprep.subr.bf16.mxu0 0
      %2830 = vmatpush2.bf16.msra.mxu0 0
      %2831 = vmatprep.subr.bf16.mxu0 0
      %2832 = vmatpush2.bf16.msra.mxu0 0
      %2833 = vmatprep.subr.bf16.mxu0 0
      %2834 = vmatpush2.bf16.msra.mxu0 0
      %2835 = vmatprep.subr.bf16.mxu0 0
      %2836 = vmatpush2.bf16.msra.mxu0 0
      %2837 = vmatprep.subr.bf16.mxu0 0
      %2838 = vmatpush2.bf16.msra.mxu0 0
      %2839 = vmatprep.subr.bf16.mxu0 0
      %2840 = vmatpush2.bf16.msra.mxu0 0
      %2841 = vmatprep.mubr.bf16.mxu0 0
      %2842 = vmatmul.mubr.bf16.gmra.mxu0 %v2804
      %v2843 = vpop.f32.mrf.mxu0
      %v2844 = vadd.f32 %v1917, %v2843
      %v2845 = vpop.f32.mrf.mxu0
      %v2846 = vpop.f32.mrf.mxu0
      %v2847 = vpop.f32.mrf.mxu0
      %2848 = vdwg.mxu0
      %2849 = vxpose.xlu0.c.b16.start [1/8] %v1895, 128
      %2850 = vxpose.xlu0.c.b16.cont [2/8] 0, 128
      %2851 = vxpose.xlu0.c.b16.cont [3/8] 0, 128
      %2852 = vxpose.xlu0.c.b16.cont [4/8] 0, 128
      %2853 = vxpose.xlu0.c.b16.cont [5/8] 0, 128
      %2854 = vxpose.xlu0.c.b16.cont [6/8] 0, 128
      %2855 = vxpose.xlu0.c.b16.cont [7/8] 0, 128
      %2856 = vxpose.xlu0.c.b16.end [8/8] 0, 128
      %v2857 = vpop.trf.xlu0
      %v2858 = vpop.trf.xlu0
      %v2859 = vpop.trf.xlu0
      %v2860 = vpop.trf.xlu0
      %v2861 = vpop.trf.xlu0
      %v2862 = vpop.trf.xlu0
      %v2863 = vpop.trf.xlu0
      %v2864 = vpop.trf.xlu0
      %v2866 = vsel %vm408, %v2857, 0
      %v2869 = vsel %vm334, %v1911, 0
      %2871 = vmatprep.subr.bf16.mxu0 0
      %2872 = vmatpush1.bf16.msra.mxu0 0
      %2873 = vmatprep.subr.bf16.mxu0 0
      %2874 = vmatpush1.bf16.msra.mxu0 0
      %2875 = vmatprep.subr.bf16.mxu0 0
      %2876 = vmatpush1.bf16.msra.mxu0 0
      %2877 = vmatprep.subr.bf16.mxu0 0
      %2878 = vmatpush1.bf16.msra.mxu0 0
      %2879 = vmatprep.subr.bf16.mxu0 0
      %2880 = vmatpush1.bf16.msra.mxu0 0
      %2881 = vmatprep.subr.bf16.mxu0 0
      %2882 = vmatpush1.bf16.msra.mxu0 0
      %2883 = vmatprep.subr.bf16.mxu0 0
      %2884 = vmatpush1.bf16.msra.mxu0 0
      %2885 = vmatprep.subr.bf16.mxu0 0
      %2886 = vmatpush1.bf16.msra.mxu0 %v2869
      %2887 = vmatprep.subr.bf16.mxu0 0
      %2888 = vmatpush2.bf16.msra.mxu0 0
      %2889 = vmatprep.subr.bf16.mxu0 0
      %2890 = vmatpush2.bf16.msra.mxu0 0
      %2891 = vmatprep.subr.bf16.mxu0 0
      %2892 = vmatpush2.bf16.msra.mxu0 0
      %2893 = vmatprep.subr.bf16.mxu0 0
      %2894 = vmatpush2.bf16.msra.mxu0 0
      %2895 = vmatprep.subr.bf16.mxu0 0
      %2896 = vmatpush2.bf16.msra.mxu0 0
      %2897 = vmatprep.subr.bf16.mxu0 0
      %2898 = vmatpush2.bf16.msra.mxu0 0
      %2899 = vmatprep.subr.bf16.mxu0 0
      %2900 = vmatpush2.bf16.msra.mxu0 0
      %2901 = vmatprep.subr.bf16.mxu0 0
      %2902 = vmatpush2.bf16.msra.mxu0 0
      %2903 = vmatprep.mubr.bf16.mxu0 0
      %2904 = vmatmul.mubr.bf16.gmra.mxu0 %v2866
      %v2905 = vpop.f32.mrf.mxu0
      %v2906 = vadd.f32 %v1917, %v2905
      %v2907 = vpop.f32.mrf.mxu0
      %v2908 = vpop.f32.mrf.mxu0
      %v2909 = vpop.f32.mrf.mxu0
      %2910 = vdwg.mxu0
      %v2911 = vmax.f32 %v1976, 0.0
      %v2912 = vmax.f32 %v2038, 0.0
      %v2913 = vmax.f32 %v2100, 0.0
      %v2914 = vmax.f32 %v2162, 0.0
      %v2915 = vmax.f32 %v2224, 0.0
      %v2916 = vmax.f32 %v2286, 0.0
      %v2917 = vmax.f32 %v2348, 0.0
      %v2918 = vmax.f32 %v2410, 0.0
      %v2919 = vmax.f32 %v2472, 0.0
      %v2920 = vmax.f32 %v2534, 0.0
      %v2921 = vmax.f32 %v2596, 0.0
      %v2922 = vmax.f32 %v2658, 0.0
      %v2923 = vmax.f32 %v2720, 0.0
      %v2924 = vmax.f32 %v2782, 0.0
      %v2925 = vmax.f32 %v2844, 0.0
      %v2926 = vmax.f32 %v2906, 0.0
      %v2927 = vadd.f32 %v2911, %v842
      %v2928 = vadd.f32 %v2912, %v846
      %v2929 = vadd.f32 %v2913, %v852
      %v2930 = vadd.f32 %v2914, %v856
      %v2931 = vadd.f32 %v2915, %v862
      %v2932 = vadd.f32 %v2916, %v866
      %v2933 = vadd.f32 %v2917, %v872
      %v2934 = vadd.f32 %v2918, %v876
      %v2935 = vadd.f32 %v2919, %v882
      %v2936 = vadd.f32 %v2920, %v886
      %v2937 = vadd.f32 %v2921, %v892
      %v2938 = vadd.f32 %v2922, %v896
      %v2939 = vadd.f32 %v2923, %v902
      %v2940 = vadd.f32 %v2924, %v906
      %v2941 = vadd.f32 %v2925, %v912
      %v2942 = vadd.f32 %v2926, %v916
      %v2943 = vmax.f32 %v953, 0.0
      %v2944 = vmax.f32 %v956, 0.0
      %v2945 = vmax.f32 %v961, 0.0
      %v2946 = vmax.f32 %v964, 0.0
      %v2947 = vmax.f32 %v969, 0.0
      %v2948 = vmax.f32 %v972, 0.0
      %v2949 = vmax.f32 %v977, 0.0
      %v2950 = vmax.f32 %v980, 0.0
      %v2951 = vmax.f32 %v985, 0.0
      %v2952 = vmax.f32 %v988, 0.0
      %v2953 = vmax.f32 %v993, 0.0
      %v2954 = vmax.f32 %v996, 0.0
      %v2955 = vmax.f32 %v1001, 0.0
      %v2956 = vmax.f32 %v1004, 0.0
      %v2957 = vmax.f32 %v1009, 0.0
      %v2958 = vmax.f32 %v1012, 0.0
      %v2959 = vadd.f32 %v2927, %v2943
      %v2960 = vadd.f32 %v2928, %v2944
      %v2961 = vadd.f32 %v2929, %v2945
      %v2962 = vadd.f32 %v2930, %v2946
      %v2963 = vadd.f32 %v2931, %v2947
      %v2964 = vadd.f32 %v2932, %v2948
      %v2965 = vadd.f32 %v2933, %v2949
      %v2966 = vadd.f32 %v2934, %v2950
      %v2967 = vadd.f32 %v2935, %v2951
      %v2968 = vadd.f32 %v2936, %v2952
      %v2969 = vadd.f32 %v2937, %v2953
      %v2970 = vadd.f32 %v2938, %v2954
      %v2971 = vadd.f32 %v2939, %v2955
      %v2972 = vadd.f32 %v2940, %v2956
      %v2973 = vadd.f32 %v2941, %v2957
      %v2974 = vadd.f32 %v2942, %v2958
      %v2975 = vpack.c.bf16 %v2960, %v2959
      %v2976 = vpack.c.bf16 %v2962, %v2961
      %v2977 = vpack.c.bf16 %v2964, %v2963
      %v2978 = vpack.c.bf16 %v2966, %v2965
      %v2979 = vpack.c.bf16 %v2968, %v2967
      %v2980 = vpack.c.bf16 %v2970, %v2969
      %v2981 = vpack.c.bf16 %v2972, %v2971
      %v2982 = vpack.c.bf16 %v2974, %v2973
      %v2991 = vunpack.c.l.b16 %v2975
      %v2992 = vunpack.c.h.b16 %v2975
      %v2993 = vunpack.c.l.b16 %v2976
      %v2994 = vunpack.c.h.b16 %v2976
      %v2995 = vunpack.c.l.b16 %v2977
      %v2996 = vunpack.c.h.b16 %v2977
      %v2997 = vunpack.c.l.b16 %v2978
      %v2998 = vunpack.c.h.b16 %v2978
      %v2999 = vunpack.c.l.b16 %v2979
      %v3000 = vunpack.c.h.b16 %v2979
      %v3001 = vunpack.c.l.b16 %v2980
      %v3002 = vunpack.c.h.b16 %v2980
      %v3003 = vunpack.c.l.b16 %v2981
      %v3004 = vunpack.c.h.b16 %v2981
      %v3005 = vunpack.c.l.b16 %v2982
      %v3006 = vunpack.c.h.b16 %v2982
      %v3007 = vpack.c.b16 %v2991, %v2991
      %v3008 = vpack.c.b16 %v2992, %v2992
      %v3009 = vpack.c.b16 %v2993, %v2993
      %v3010 = vpack.c.b16 %v2994, %v2994
      %v3011 = vpack.c.b16 %v2995, %v2995
      %v3012 = vpack.c.b16 %v2996, %v2996
      %v3013 = vpack.c.b16 %v2997, %v2997
      %v3014 = vpack.c.b16 %v2998, %v2998
      %v3015 = vpack.c.b16 %v2999, %v2999
      %v3016 = vpack.c.b16 %v3000, %v3000
      %v3017 = vpack.c.b16 %v3001, %v3001
      %v3018 = vpack.c.b16 %v3002, %v3002
      %v3019 = vpack.c.b16 %v3003, %v3003
      %v3020 = vpack.c.b16 %v3004, %v3004
      %v3021 = vpack.c.b16 %v3005, %v3005
      %v3022 = vpack.c.b16 %v3006, %v3006
      %3039 = vst [vmem:[%s278] sm:$0xf] %v3007
      %3040 = vst [vmem:[%s278 + $0x4] sm:$0xf] %v3008
      %3041 = vst [vmem:[%s278 + $0x8] sm:$0xf] %v3009
      %3042 = vst [vmem:[%s278 + $0xc] sm:$0xf] %v3010
      %3043 = vst [vmem:[%s278 + $0x10] sm:$0xf] %v3011
      %3044 = vst [vmem:[%s278 + $0x14] sm:$0xf] %v3012
      %3045 = vst [vmem:[%s278 + $0x18] sm:$0xf] %v3013
      %3046 = vst [vmem:[%s278 + $0x1c] sm:$0xf] %v3014
      %3047 = vst [vmem:[%s278 + $0x20] sm:$0xf] %v3015
      %3048 = vst [vmem:[%s278 + $0x24] sm:$0xf] %v3016
      %3049 = vst [vmem:[%s278 + $0x28] sm:$0xf] %v3017
      %3050 = vst [vmem:[%s278 + $0x2c] sm:$0xf] %v3018
      %3051 = vst [vmem:[%s278 + $0x30] sm:$0xf] %v3019
      %3052 = vst [vmem:[%s278 + $0x34] sm:$0xf] %v3020
      %3053 = vst [vmem:[%s278 + $0x38] sm:$0xf] %v3021
      %3054 = vst [vmem:[%s278 + $0x3c] sm:$0xf] %v3022
      %p3055 = scmp.lt.s32.totalorder %s18, 1
      %s3056 = scalar_select %p3055, %s18, 1
      %s3057 = smul.addr %s3056, 16
      %s3058 = smul.addr %s3057, 4
      %s3059 = scalar_lea.vmem %s7, %s3058
      // Predicated region
      $region49: #{gag_block_forward.1} parent=47 // pred_check
        %p3060 = pneg %p188
      $region50: #{gag_block_forward.1} parent=47 // pred_check_branch
        %3062 = sbr.rel (%p3060) target = $region52
      $region51: #{gag_block_forward.1} parent=47 // pred_region
        _
      $region52: #{gag_block_forward.1} parent=47 // pred_fallthru
        _
    $region48: #{gag_block_forward.1} parent=5 // pred_fallthru
      _
    %p3063 = scmp.le.s32.totalorder 2, %s13
    // Predicated region
    $region53: #{gag_block_forward.1} parent=5 // pred_check
      %p3064 = pneg %p3063
    $region54: #{gag_block_forward.1} parent=5 // pred_check_branch
      %3066 = sbr.rel (%p3064) target = $region56
    $region55: #{gag_block_forward.1} parent=5 // pred_region
      %s3067 = ssub.s32 %s13, 2
      // Predicated region
      $region57: #{gag_block_forward.1} parent=55 // pred_check
        %p3068 = pneg %p194
      $region58: #{gag_block_forward.1} parent=55 // pred_check_branch
        %3070 = sbr.rel (%p3068) target = $region60
      $region59: #{gag_block_forward.1} parent=55 // pred_region
        %p3071 = scmp.lt.s32.totalorder %s19, 1
        %s3072 = scalar_select %p3071, %s19, 1
        %s3073 = smul.addr %s3072, 16
        %s3074 = smul.addr %s3073, 4
        %s3075 = scalar_lea.vmem %s7, %s3074
      $region60: #{gag_block_forward.1} parent=55 // pred_fallthru
        _
    $region56: #{gag_block_forward.1} parent=5 // pred_fallthru
      _
  $region6: #{gag_block_forward.1} parent=0 // loop_footer
    %s17 = sadd.s32 1, %s13
  $region7: #{gag_block_forward.1} parent=0 // loop_footer_branch
    %12 = sbr.rel target = $region3
  $region8: #{gag_block_forward.1} parent=0 // loop_exit
    _

</llo_original>
